<compile_context>
chip_gen: v7x
topology: tpu7x:2x2x1
jax: 0.10.0
libtpu: 0.0.40
codegen_flags: <defaults>
</compile_context>

<pallas_src>
import functools

import jax
import jax.numpy as jnp
from jax import lax
from jax.experimental import pallas as pl
from jax.experimental.pallas import tpu as pltpu


def _relu_conv_kernel(xb_ref, wb_ref, b_ref, o_ref, *, rows, row_pitch):
    # grid = (Cout blocks [parallel], dh taps [arbitrary / reduction])
    d = pl.program_id(1)

    @pl.when(d == 0)
    def _():
        # Initialize the resident output block with the bias.
        o_ref[...] = jnp.broadcast_to(b_ref[...], o_ref.shape).astype(o_ref.dtype)

    # Aligned slice of the resident activation slab for vertical tap dh = d.
    start = pl.multiple_of(d * row_pitch, row_pitch)        # 0 / 16 / 32
    x_d = xb_ref[pl.ds(start, rows), :]                     # (256, 3*Cin) bf16
    o_ref[...] += jnp.dot(x_d, wb_ref[0],
                          preferred_element_type=jnp.float32)


def relu_conv2d(x_nchw, w_oihw, bias, *, cout_blk=256):
    N, Cin, H, W = x_nchw.shape
    Cout, Cin2, KH, KW = w_oihw.shape
    assert N == 1 and Cin2 == Cin and (KH, KW) == (3, 3)
    assert Cout % cout_blk == 0 and cout_blk % 128 == 0

    Hp, Wp = H + 2, W + 2            # zero padding = 1 on each side
    assert Wp % 8 == 0               # keeps in-kernel row slices sublane aligned
    R = Hp * Wp                      # padded-frame rows = output block rows (256)
    KB = (KH - 1) * Wp + R           # rows of the activation slab (288)
    K = KW * Cin                     # folded contraction depth (1536)

    # --- activations: ReLU -> HWC -> bf16 -> pad -> flatten padded frame ------
    x_hwc = jnp.transpose(x_nchw[0], (1, 2, 0))                   # (H, W, Cin)
    x_act = jnp.maximum(x_hwc, 0.0).astype(jnp.bfloat16)          # fused ReLU
    xp = jnp.pad(x_act, ((1, 1), (1, 1), (0, 0)))                 # (Hp, Wp, Cin)
    xpf = xp.reshape(R, Cin)                                      # (256, Cin)
    # Extra top/bottom rows so every (dh, dw) tap is an in-bounds static window.
    xbig = jnp.pad(xpf, ((Wp + 1, Wp + 1), (0, 0)))               # (290, Cin)
    # Fold the 3 horizontal taps into the channel axis: xb[k, dw*Cin + ci].
    xb = jnp.concatenate([xbig[dw:dw + KB] for dw in range(KW)], axis=1)  # (288, 3*Cin)

    # --- weights: OIHW -> (KH, KW*Cin, Cout), bf16 (single cheap prep pass) ---
    wb = (jnp.transpose(w_oihw, (2, 3, 1, 0))                     # (KH, KW, Cin, Cout)
             .reshape(KH, K, Cout)
             .astype(jnp.bfloat16))
    b2 = bias.reshape(1, Cout).astype(jnp.float32)

    kernel = functools.partial(_relu_conv_kernel, rows=R, row_pitch=Wp)

    out_flat = pl.pallas_call(
        kernel,
        out_shape=jax.ShapeDtypeStruct((R, Cout), jnp.float32),
        grid_spec=pltpu.PrefetchScalarGridSpec(
            num_scalar_prefetch=0,
            grid=(Cout // cout_blk, KH),
            in_specs=[
                pl.BlockSpec((KB, K), lambda j, d: (0, 0)),            # resident slab
                pl.BlockSpec((1, K, cout_blk), lambda j, d: (d, 0, j)),  # weight slice
                pl.BlockSpec((1, cout_blk), lambda j, d: (0, j)),        # bias slice
            ],
            out_specs=pl.BlockSpec((R, cout_blk), lambda j, d: (0, j)),
        ),
        compiler_params=pltpu.CompilerParams(
            dimension_semantics=("parallel", "arbitrary"),
            vmem_limit_bytes=16 * 1024 * 1024,
        ),
    )(xb, wb, b2)

    # Padded-frame rows -> NCHW output (drop the border/garbage rows).
    out = out_flat.reshape(Hp, Wp, Cout)[1:1 + H, 1:1 + W, :]     # (H, W, Cout)
    return jnp.transpose(out, (2, 0, 1))[None].astype(x_nchw.dtype)


if __name__ == "__main__":
    key = jax.random.PRNGKey(0)
    kx, kw, kb = jax.random.split(key, 3)

    # Shapes implied by the module: Conv2d(512, 512, 3, padding=1), input [1, 512, 14, 14]
    N, C, H, W = 1, 512, 14, 14
    x = jax.random.normal(kx, (N, C, H, W), dtype=jnp.float32)

    fan_in = C * 3 * 3
    bound = 1.0 / jnp.sqrt(fan_in)
    w = jax.random.uniform(kw, (C, C, 3, 3), dtype=jnp.float32, minval=-bound, maxval=bound)
    # Larger bias than torch's default init so a dropped/misplaced bias add
    # cannot hide inside the bf16 tolerance of the check below.
    b = jax.random.uniform(kb, (C,), dtype=jnp.float32, minval=-0.5, maxval=0.5)

    y = jax.jit(relu_conv2d)(x, w, b)
    y = jax.block_until_ready(y)

    # Pure-JAX f32 reference.
    y_ref = lax.conv_general_dilated(
        jnp.maximum(x, 0.0), w, window_strides=(1, 1),
        padding=((1, 1), (1, 1)),
        dimension_numbers=("NCHW", "OIHW", "NCHW"),
        precision=lax.Precision.HIGHEST,
    ) + b[None, :, None, None]

    assert y.shape == (N, C, H, W), y.shape
    # bf16 inputs with f32 accumulation over fan_in=4608 -> expected max |err| ~3e-3.
    err = float(jnp.max(jnp.abs(y - y_ref)))
    assert jnp.allclose(y, y_ref, atol=2e-2, rtol=2e-2), err

    print("KERNEL_OK")
</pallas_src>

<mosaic_0001>
module attributes {stable_mosaic.version = 11 : i64} {
  func.func @_relu_conv_kernel(%arg0: i32, %arg1: i32, %arg2: memref<288x1536xbf16, #tpu.memory_space<vmem>>, %arg3: memref<1x1536x256xbf16, #tpu.memory_space<vmem>>, %arg4: memref<1x256xf32, #tpu.memory_space<vmem>>, %arg5: memref<256x256xf32, #tpu.memory_space<vmem>>) attributes {dimension_semantics = [#tpu.dimension_semantics<parallel>, #tpu.dimension_semantics<arbitrary>], iteration_bounds = array<i64: 2, 3>, scalar_prefetch = 0 : i64, scratch_operands = 0 : i64, tpu.core_type = #tpu.core_type<tc>, window_params = [{pipeline_mode = #tpu.pipeline_mode<synchronous>, transform_indices = @transform_0, window_bounds = array<i64: 288, 1536>}, {transform_indices = @transform_1, window_bounds = array<i64: 1, 1536, 256>}, {transform_indices = @transform_2, window_bounds = array<i64: 1, 256>}, {transform_indices = @transform_3, window_bounds = array<i64: 256, 256>}]} {
    %c0_i32 = arith.constant 0 : i32
    %0 = arith.cmpi eq, %arg1, %c0_i32 : i32
    %1 = arith.extui %0 : i1 to i32
    %c0_i32_0 = arith.constant 0 : i32
    %2 = arith.cmpi ne, %1, %c0_i32_0 : i32
    scf.if %2 {
      %c0_8 = arith.constant 0 : index
      %c0_9 = arith.constant 0 : index
      %13 = vector.load %arg4[%c0_8, %c0_9] : memref<1x256xf32, #tpu.memory_space<vmem>>, vector<1x256xf32>
      %14 = vector.shape_cast %13 : vector<1x256xf32> to vector<1x256xf32>
      %15 = vector.broadcast %14 : vector<1x256xf32> to vector<256x256xf32>
      %c0_10 = arith.constant 0 : index
      %c0_11 = arith.constant 0 : index
      %16 = vector.load %arg5[%c0_10, %c0_11] : memref<256x256xf32, #tpu.memory_space<vmem>>, vector<256x256xf32>
      tpu.vector_store %arg5[%c0_10, %c0_11], %15 {strides = array<i32>} : memref<256x256xf32, #tpu.memory_space<vmem>>, vector<256x256xf32>,
    } else {
    }
    %c16_i32 = arith.constant 16 : i32
    %3 = arith.muli %arg1, %c16_i32 : i32
    %4 = tpu.assume_multiple %3, 16 : i32
    %5 = arith.index_cast %4 : i32 to index
    %c0 = arith.constant 0 : index
    %6 = vector.load %arg2[%5, %c0] : memref<288x1536xbf16, #tpu.memory_space<vmem>>, vector<256x1536xbf16>
    %c0_1 = arith.constant 0 : index
    %c0_2 = arith.constant 0 : index
    %7 = vector.load %arg5[%c0_1, %c0_2] : memref<256x256xf32, #tpu.memory_space<vmem>>, vector<256x256xf32>
    %c0_3 = arith.constant 0 : index
    %c0_4 = arith.constant 0 : index
    %c0_5 = arith.constant 0 : index
    %8 = vector.load %arg3[%c0_3, %c0_4, %c0_5] : memref<1x1536x256xbf16, #tpu.memory_space<vmem>>, vector<1x1536x256xbf16>
    %9 = vector.shape_cast %8 : vector<1x1536x256xbf16> to vector<1536x256xbf16>
    %cst = arith.constant dense<0.000000e+00> : vector<256x256xf32>
    %10 = tpu.matmul %6, %9, %cst {dimension_numbers = #tpu.dot_dimension_numbers<[1], [0], [0], [1], [0, 0, 1, 1], [], []>} : vector<256x1536xbf16>, vector<1536x256xbf16>, vector<256x256xf32> -> vector<256x256xf32>
    %11 = arith.addf %7, %10 : vector<256x256xf32>
    %c0_6 = arith.constant 0 : index
    %c0_7 = arith.constant 0 : index
    %12 = vector.load %arg5[%c0_6, %c0_7] : memref<256x256xf32, #tpu.memory_space<vmem>>, vector<256x256xf32>
    tpu.vector_store %arg5[%c0_6, %c0_7], %11 {strides = array<i32>} : memref<256x256xf32, #tpu.memory_space<vmem>>, vector<256x256xf32>,
    return
  }
  func.func @transform_0(%arg0: i32, %arg1: i32) -> (i32, i32) {
    %c0_i32 = arith.constant 0 : i32
    %c0_i32_0 = arith.constant 0 : i32
    %c0_i32_1 = arith.constant 0 : i32
    return %c0_i32, %c0_i32_0 : i32, i32
  }
  func.func @transform_1(%arg0: i32, %arg1: i32) -> (i32, i32, i32) {
    %c0_i32 = arith.constant 0 : i32
    %c0_i32_0 = arith.constant 0 : i32
    return %arg1, %c0_i32, %arg0 : i32, i32, i32
  }
  func.func @transform_2(%arg0: i32, %arg1: i32) -> (i32, i32) {
    %c0_i32 = arith.constant 0 : i32
    %c0_i32_0 = arith.constant 0 : i32
    return %c0_i32, %arg0 : i32, i32
  }
  func.func @transform_3(%arg0: i32, %arg1: i32) -> (i32, i32) {
    %c0_i32 = arith.constant 0 : i32
    %c0_i32_0 = arith.constant 0 : i32
    return %c0_i32, %arg0 : i32, i32
  }
}

</mosaic_0001>

<llo_original>
// kernel: relu_conv2d.1
$region0: #{relu_conv2d.1}
  #allocation0 [shape = 'u32[]', space=smem, size = 0x4, offset = 0x4, fixed_abs, tag = 'smem constant byte address 0x4 - core index']
  #allocation1 [shape = 'u32[144,128]{1,0:T(1,128)}', space=vmem, size = 0x12000, scoped, tag = 'internal scratch']
  %s0 = inlined_call_operand.vmem [shape: bf16[288,1536], index: 0, kind: input, shape index: {}]
  %s1 = inlined_call_operand.vmem [shape: bf16[3,1536,512], index: 1, kind: input, shape index: {}]
  %s2 = inlined_call_operand.vmem [shape: f32[1,512], index: 2, kind: input, shape index: {}]
  %s3 = inlined_call_operand.vmem [shape: f32[256,512], index: 3, kind: output, shape index: {}]
  %s4 = sld [smem:[#allocation0]]
  $region106: #{relu_conv2d.1} parent=0
    _
  %s6 = ssub.s32 1, %s4
  %s7 = scalar_select 0, %s6, %s4
  $region1: #{relu_conv2d.1} parent=0
    #allocation2 [shape = 'u8[1572864]{0}', space=vmem, size = 0x180000, scoped, tag = 'input window, operand 1']
    #allocation3 [shape = 'u8[524288]{0}', space=vmem, size = 0x80000, scoped, tag = 'output window, operand 0']
    loop: start=0, step=1, limit=8
    $region2: #{relu_conv2d.1} parent=1 // loop_pre_header
      _
    $region3: #{relu_conv2d.1} parent=1 // loop_header
      %s9 = sphi 0, %s13
      %p10 = scmp.ge.s32.totalorder %s9, 8
      %s16 = sphi 0, %s28
      %s17 = sphi 0, %s24
      %s18 = sphi 0, %s16
      %s19 = sphi 0, %s17
      %s20 = sphi 0, %s18
      %s21 = sphi 0, %s19
      %s29 = sphi 0, %s29
      %s31 = sphi 0, %s29
      %s32 = sphi 0, %s31
      %s46 = sphi 0, %s32
      %s54 = sphi 0, %s56
      %s57 = sphi 0, %s54
      %s58 = sphi 0, %s57
      %s74 = sphi 0, %s58
      %s80 = sphi 0, %s82
      %s83 = sphi 0, %s80
      %s84 = sphi 0, %s83
      %s100 = sphi 0, %s84
      %s106 = sphi 0, %s108
      %s109 = sphi 0, %s106
      %s110 = sphi 0, %s109
      %s126 = sphi 0, %s110
    $region4: #{relu_conv2d.1} parent=1 // loop_header_branch
      %12 = sbr.rel (%p10) target = $region8
    $region5: #{relu_conv2d.1} parent=1 // loop_body
      %s14 = ssub.s32 %s9, 1
      %s15 = ssub.s32 %s9, 2
      %s22 = sadd.s32 1, %s17
      %p23 = scmp.ge.s32.totalorder %s22, 3
      %s24 = scalar_select %p23, 0, %s22
      %s25 = sadd.s32 1, %s16
      %s26 = scalar_select %p23, %s25, %s16
      %p27 = scmp.ge.s32.totalorder %s26, 2
      %s28 = scalar_select %p27, 0, %s26
      %s30 = sadd.s32 %s29, 1
      %p33 = scmp.eq.s32.totalorder %s9, 5
      %p34 = scmp.ne.s32.totalorder %s29, %s31
      %p35 = scmp.eq.s32.totalorder %s9, 0
      %p36 = por %p34, %p35
      %p37 = scmp.ne.s32.totalorder %s29, %s31
      %p38 = scmp.eq.s32.totalorder %s14, 5
      %p39 = por %p37, %p38
      %p40 = scmp.ne.s32.totalorder %s31, %s32
      %p41 = scmp.eq.s32.totalorder %s14, 0
      %p42 = por %p40, %p41
      %p43 = scmp.ne.s32.totalorder %s31, %s32
      %p44 = scmp.eq.s32.totalorder %s15, 5
      %p45 = por %p43, %p44
      %p47 = scmp.ne.s32.totalorder %s32, %s46
      %p48 = scmp.eq.s32.totalorder %s15, 0
      %p49 = por %p47, %p48
      %s50 = ssub.s32 %s17, %s24
      %s51 = ssub.s32 %s16, %s28
      %s52 = sor.u32 %s50, %s51
      %p53 = scmp.eq.s32.totalorder %s52, 0
      %s55 = sadd.s32 %s54, 1
      %s56 = scalar_select %p53, %s54, %s55
      %p59 = pneg %p53
      %p60 = scmp.eq.s32.totalorder %s9, 5
      %p61 = por %p59, %p60
      %p62 = scmp.ne.s32.totalorder %s54, %s57
      %p63 = scmp.eq.s32.totalorder %s9, 0
      %p64 = por %p62, %p63
      %p65 = scmp.ne.s32.totalorder %s54, %s57
      %p66 = scmp.eq.s32.totalorder %s14, 5
      %p67 = por %p65, %p66
      %p68 = scmp.ne.s32.totalorder %s57, %s58
      %p69 = scmp.eq.s32.totalorder %s14, 0
      %p70 = por %p68, %p69
      %p71 = scmp.ne.s32.totalorder %s57, %s58
      %p72 = scmp.eq.s32.totalorder %s15, 5
      %p73 = por %p71, %p72
      %p75 = scmp.ne.s32.totalorder %s58, %s74
      %p76 = scmp.eq.s32.totalorder %s15, 0
      %p77 = por %p75, %p76
      %s78 = ssub.s32 %s16, %s28
      %p79 = scmp.eq.s32.totalorder %s78, 0
      %s81 = sadd.s32 %s80, 1
      %s82 = scalar_select %p79, %s80, %s81
      %p85 = pneg %p79
      %p86 = scmp.eq.s32.totalorder %s9, 5
      %p87 = por %p85, %p86
      %p88 = scmp.ne.s32.totalorder %s80, %s83
      %p89 = scmp.eq.s32.totalorder %s9, 0
      %p90 = por %p88, %p89
      %p91 = scmp.ne.s32.totalorder %s80, %s83
      %p92 = scmp.eq.s32.totalorder %s14, 5
      %p93 = por %p91, %p92
      %p94 = scmp.ne.s32.totalorder %s83, %s84
      %p95 = scmp.eq.s32.totalorder %s14, 0
      %p96 = por %p94, %p95
      %p97 = scmp.ne.s32.totalorder %s83, %s84
      %p98 = scmp.eq.s32.totalorder %s15, 5
      %p99 = por %p97, %p98
      %p101 = scmp.ne.s32.totalorder %s84, %s100
      %p102 = scmp.eq.s32.totalorder %s15, 0
      %p103 = por %p101, %p102
      %s104 = ssub.s32 %s16, %s28
      %p105 = scmp.eq.s32.totalorder %s104, 0
      %s107 = sadd.s32 %s106, 1
      %s108 = scalar_select %p105, %s106, %s107
      %p111 = pneg %p105
      %p112 = scmp.eq.s32.totalorder %s9, 5
      %p113 = por %p111, %p112
      %p114 = scmp.ne.s32.totalorder %s106, %s109
      %p115 = scmp.eq.s32.totalorder %s9, 0
      %p116 = por %p114, %p115
      %p117 = scmp.ne.s32.totalorder %s106, %s109
      %p118 = scmp.eq.s32.totalorder %s14, 5
      %p119 = por %p117, %p118
      %p120 = scmp.ne.s32.totalorder %s109, %s110
      %p121 = scmp.eq.s32.totalorder %s14, 0
      %p122 = por %p120, %p121
      %p123 = scmp.ne.s32.totalorder %s109, %s110
      %p124 = scmp.eq.s32.totalorder %s15, 5
      %p125 = por %p123, %p124
      %p127 = scmp.ne.s32.totalorder %s110, %s126
      %p128 = scmp.eq.s32.totalorder %s15, 0
      %p129 = por %p127, %p128
      %p130 = scmp.le.s32.totalorder 1, %s9
      %p131 = scmp.lt.s32.totalorder %s9, 7
      %p132 = pnand %p130, %p131
      %p133 = pneg %p132
      // Predicated region
      $region9: #{relu_conv2d.1} parent=5 // pred_check
        _
      $region10: #{relu_conv2d.1} parent=5 // pred_check_branch
        %135 = sbr.rel (%p132) target = $region12
      $region11: #{relu_conv2d.1} parent=5 // pred_region
        %s136 = ssub.s32 %s9, 1
        // Predicated region
        $region13: #{relu_conv2d.1} parent=11 // pred_check
          %p137 = pneg %p42
        $region14: #{relu_conv2d.1} parent=11 // pred_check_branch
          %139 = sbr.rel (%p137) target = $region16
        $region15: #{relu_conv2d.1} parent=11 // pred_region
          _
        $region16: #{relu_conv2d.1} parent=11 // pred_fallthru
          _
      $region12: #{relu_conv2d.1} parent=5 // pred_fallthru
        _
      %p140 = scmp.lt.s32.totalorder %s9, 6
      // Predicated region
      $region17: #{relu_conv2d.1} parent=5 // pred_check
        %p141 = pneg %p140
      $region18: #{relu_conv2d.1} parent=5 // pred_check_branch
        %143 = sbr.rel (%p141) target = $region20
      $region19: #{relu_conv2d.1} parent=5 // pred_region
        // Predicated region
        $region21: #{relu_conv2d.1} parent=19 // pred_check
          %p144 = pneg %p64
        $region22: #{relu_conv2d.1} parent=19 // pred_check_branch
          %146 = sbr.rel (%p144) target = $region24
        $region23: #{relu_conv2d.1} parent=19 // pred_region
          %s147 = sand.u32 %s54, 1
          %s148 = sand.u32 %s54, 1
          %s149 = smul.addr %s148, 1536
          %s150 = scalar_lea.vmem [#allocation2], %s149
          %s151 = smul.u32 2, %s16
          %s152 = smul.addr %s17, 768
          %s153 = sadd.s32 %s151, %s152
          %s154 = smul.addr %s153, 4
          %s155 = scalar_lea.vmem %s1, %s154
          // Predicated region
          $region25: #{relu_conv2d.1} parent=23 // pred_check
            _
          $region26: #{relu_conv2d.1} parent=23 // pred_check_branch
            %157 = sbr.rel (0) target = $region28
          $region27: #{relu_conv2d.1} parent=23 // pred_region
            // Predicated region
            $region29: #{relu_conv2d.1} parent=27 // pred_check
              _
            $region30: #{relu_conv2d.1} parent=27 // pred_check_branch
              %159 = sbr.rel (0) target = $region32
            $region31: #{relu_conv2d.1} parent=27 // pred_region
              // Predicated region
              $region44: #{relu_conv2d.1} parent=31 // pred_check
                _
              $region45: #{relu_conv2d.1} parent=31 // pred_check_branch
                %556 = sbr.rel (0) target = $region47
              $region46: #{relu_conv2d.1} parent=31 // pred_region
                loop: start=0, step=1, limit=1
                $region48: #{relu_conv2d.1} parent=46 // loop_pre_header
                  _
                $region49: #{relu_conv2d.1} parent=46 // loop_header
                  %s558 = sphi 0, %s562
                  %p559 = scmp.ge.s32.totalorder %s558, 1
                  %s563 = sphi %s155, %s155
                  %s564 = sphi %s150, %s150
                $region50: #{relu_conv2d.1} parent=46 // loop_header_branch
                  %561 = sbr.rel (%p559) target = $region54
                $region51: #{relu_conv2d.1} parent=46 // loop_body
                  %v565 = vld [vmem:[%s563] sm:$0xff]
                  %566 = vst [vmem:[%s564] sm:$0xff] %v565
                  %v567 = vld [vmem:[%s563 + $0x10] sm:$0xff]
                  %568 = vst [vmem:[%s564 + $0x8] sm:$0xff] %v567
                  %v569 = vld [vmem:[%s563 + $0x20] sm:$0xff]
                  %570 = vst [vmem:[%s564 + $0x10] sm:$0xff] %v569
                  %v571 = vld [vmem:[%s563 + $0x30] sm:$0xff]
                  %572 = vst [vmem:[%s564 + $0x18] sm:$0xff] %v571
                  %v573 = vld [vmem:[%s563 + $0x40] sm:$0xff]
                  %574 = vst [vmem:[%s564 + $0x20] sm:$0xff] %v573
                  %v575 = vld [vmem:[%s563 + $0x50] sm:$0xff]
                  %576 = vst [vmem:[%s564 + $0x28] sm:$0xff] %v575
                  %v577 = vld [vmem:[%s563 + $0x60] sm:$0xff]
                  %578 = vst [vmem:[%s564 + $0x30] sm:$0xff] %v577
                  %v579 = vld [vmem:[%s563 + $0x70] sm:$0xff]
                  %580 = vst [vmem:[%s564 + $0x38] sm:$0xff] %v579
                  %v581 = vld [vmem:[%s563 + $0x80] sm:$0xff]
                  %582 = vst [vmem:[%s564 + $0x40] sm:$0xff] %v581
                  %v583 = vld [vmem:[%s563 + $0x90] sm:$0xff]
                  %584 = vst [vmem:[%s564 + $0x48] sm:$0xff] %v583
                  %v585 = vld [vmem:[%s563 + $0xa0] sm:$0xff]
                  %586 = vst [vmem:[%s564 + $0x50] sm:$0xff] %v585
                  %v587 = vld [vmem:[%s563 + $0xb0] sm:$0xff]
                  %588 = vst [vmem:[%s564 + $0x58] sm:$0xff] %v587
                  %v589 = vld [vmem:[%s563 + $0xc0] sm:$0xff]
                  %590 = vst [vmem:[%s564 + $0x60] sm:$0xff] %v589
                  %v591 = vld [vmem:[%s563 + $0xd0] sm:$0xff]
                  %592 = vst [vmem:[%s564 + $0x68] sm:$0xff] %v591
                  %v593 = vld [vmem:[%s563 + $0xe0] sm:$0xff]
                  %594 = vst [vmem:[%s564 + $0x70] sm:$0xff] %v593
                  %v595 = vld [vmem:[%s563 + $0xf0] sm:$0xff]
                  %596 = vst [vmem:[%s564 + $0x78] sm:$0xff] %v595
                  %v597 = vld [vmem:[%s563 + $0x100] sm:$0xff]
                  %598 = vst [vmem:[%s564 + $0x80] sm:$0xff] %v597
                  %v599 = vld [vmem:[%s563 + $0x110] sm:$0xff]
                  %600 = vst [vmem:[%s564 + $0x88] sm:$0xff] %v599
                  %v601 = vld [vmem:[%s563 + $0x120] sm:$0xff]
                  %602 = vst [vmem:[%s564 + $0x90] sm:$0xff] %v601
                  %v603 = vld [vmem:[%s563 + $0x130] sm:$0xff]
                  %604 = vst [vmem:[%s564 + $0x98] sm:$0xff] %v603
                  %v605 = vld [vmem:[%s563 + $0x140] sm:$0xff]
                  %606 = vst [vmem:[%s564 + $0xa0] sm:$0xff] %v605
                  %v607 = vld [vmem:[%s563 + $0x150] sm:$0xff]
                  %608 = vst [vmem:[%s564 + $0xa8] sm:$0xff] %v607
                  %v609 = vld [vmem:[%s563 + $0x160] sm:$0xff]
                  %610 = vst [vmem:[%s564 + $0xb0] sm:$0xff] %v609
                  %v611 = vld [vmem:[%s563 + $0x170] sm:$0xff]
                  %612 = vst [vmem:[%s564 + $0xb8] sm:$0xff] %v611
                  %v613 = vld [vmem:[%s563 + $0x180] sm:$0xff]
                  %614 = vst [vmem:[%s564 + $0xc0] sm:$0xff] %v613
                  %v615 = vld [vmem:[%s563 + $0x190] sm:$0xff]
                  %616 = vst [vmem:[%s564 + $0xc8] sm:$0xff] %v615
                  %v617 = vld [vmem:[%s563 + $0x1a0] sm:$0xff]
                  %618 = vst [vmem:[%s564 + $0xd0] sm:$0xff] %v617
                  %v619 = vld [vmem:[%s563 + $0x1b0] sm:$0xff]
                  %620 = vst [vmem:[%s564 + $0xd8] sm:$0xff] %v619
                  %v621 = vld [vmem:[%s563 + $0x1c0] sm:$0xff]
                  %622 = vst [vmem:[%s564 + $0xe0] sm:$0xff] %v621
                  %v623 = vld [vmem:[%s563 + $0x1d0] sm:$0xff]
                  %624 = vst [vmem:[%s564 + $0xe8] sm:$0xff] %v623
                  %v625 = vld [vmem:[%s563 + $0x1e0] sm:$0xff]
                  %626 = vst [vmem:[%s564 + $0xf0] sm:$0xff] %v625
                  %v627 = vld [vmem:[%s563 + $0x1f0] sm:$0xff]
                  %628 = vst [vmem:[%s564 + $0xf8] sm:$0xff] %v627
                  %v629 = vld [vmem:[%s563 + $0x200] sm:$0xff]
                  %630 = vst [vmem:[%s564 + $0x100] sm:$0xff] %v629
                  %v631 = vld [vmem:[%s563 + $0x210] sm:$0xff]
                  %632 = vst [vmem:[%s564 + $0x108] sm:$0xff] %v631
                  %v633 = vld [vmem:[%s563 + $0x220] sm:$0xff]
                  %634 = vst [vmem:[%s564 + $0x110] sm:$0xff] %v633
                  %v635 = vld [vmem:[%s563 + $0x230] sm:$0xff]
                  %636 = vst [vmem:[%s564 + $0x118] sm:$0xff] %v635
                  %v637 = vld [vmem:[%s563 + $0x240] sm:$0xff]
                  %638 = vst [vmem:[%s564 + $0x120] sm:$0xff] %v637
                  %v639 = vld [vmem:[%s563 + $0x250] sm:$0xff]
                  %640 = vst [vmem:[%s564 + $0x128] sm:$0xff] %v639
                  %v641 = vld [vmem:[%s563 + $0x260] sm:$0xff]
                  %642 = vst [vmem:[%s564 + $0x130] sm:$0xff] %v641
                  %v643 = vld [vmem:[%s563 + $0x270] sm:$0xff]
                  %644 = vst [vmem:[%s564 + $0x138] sm:$0xff] %v643
                  %v645 = vld [vmem:[%s563 + $0x280] sm:$0xff]
                  %646 = vst [vmem:[%s564 + $0x140] sm:$0xff] %v645
                  %v647 = vld [vmem:[%s563 + $0x290] sm:$0xff]
                  %648 = vst [vmem:[%s564 + $0x148] sm:$0xff] %v647
                  %v649 = vld [vmem:[%s563 + $0x2a0] sm:$0xff]
                  %650 = vst [vmem:[%s564 + $0x150] sm:$0xff] %v649
                  %v651 = vld [vmem:[%s563 + $0x2b0] sm:$0xff]
                  %652 = vst [vmem:[%s564 + $0x158] sm:$0xff] %v651
                  %v653 = vld [vmem:[%s563 + $0x2c0] sm:$0xff]
                  %654 = vst [vmem:[%s564 + $0x160] sm:$0xff] %v653
                  %v655 = vld [vmem:[%s563 + $0x2d0] sm:$0xff]
                  %656 = vst [vmem:[%s564 + $0x168] sm:$0xff] %v655
                  %v657 = vld [vmem:[%s563 + $0x2e0] sm:$0xff]
                  %658 = vst [vmem:[%s564 + $0x170] sm:$0xff] %v657
                  %v659 = vld [vmem:[%s563 + $0x2f0] sm:$0xff]
                  %660 = vst [vmem:[%s564 + $0x178] sm:$0xff] %v659
                  %v661 = vld [vmem:[%s563 + $0x300] sm:$0xff]
                  %662 = vst [vmem:[%s564 + $0x180] sm:$0xff] %v661
                  %v663 = vld [vmem:[%s563 + $0x310] sm:$0xff]
                  %664 = vst [vmem:[%s564 + $0x188] sm:$0xff] %v663
                  %v665 = vld [vmem:[%s563 + $0x320] sm:$0xff]
                  %666 = vst [vmem:[%s564 + $0x190] sm:$0xff] %v665
                  %v667 = vld [vmem:[%s563 + $0x330] sm:$0xff]
                  %668 = vst [vmem:[%s564 + $0x198] sm:$0xff] %v667
                  %v669 = vld [vmem:[%s563 + $0x340] sm:$0xff]
                  %670 = vst [vmem:[%s564 + $0x1a0] sm:$0xff] %v669
                  %v671 = vld [vmem:[%s563 + $0x350] sm:$0xff]
                  %672 = vst [vmem:[%s564 + $0x1a8] sm:$0xff] %v671
                  %v673 = vld [vmem:[%s563 + $0x360] sm:$0xff]
                  %674 = vst [vmem:[%s564 + $0x1b0] sm:$0xff] %v673
                  %v675 = vld [vmem:[%s563 + $0x370] sm:$0xff]
                  %676 = vst [vmem:[%s564 + $0x1b8] sm:$0xff] %v675
                  %v677 = vld [vmem:[%s563 + $0x380] sm:$0xff]
                  %678 = vst [vmem:[%s564 + $0x1c0] sm:$0xff] %v677
                  %v679 = vld [vmem:[%s563 + $0x390] sm:$0xff]
                  %680 = vst [vmem:[%s564 + $0x1c8] sm:$0xff] %v679
                  %v681 = vld [vmem:[%s563 + $0x3a0] sm:$0xff]
                  %682 = vst [vmem:[%s564 + $0x1d0] sm:$0xff] %v681
                  %v683 = vld [vmem:[%s563 + $0x3b0] sm:$0xff]
                  %684 = vst [vmem:[%s564 + $0x1d8] sm:$0xff] %v683
                  %v685 = vld [vmem:[%s563 + $0x3c0] sm:$0xff]
                  %686 = vst [vmem:[%s564 + $0x1e0] sm:$0xff] %v685
                  %v687 = vld [vmem:[%s563 + $0x3d0] sm:$0xff]
                  %688 = vst [vmem:[%s564 + $0x1e8] sm:$0xff] %v687
                  %v689 = vld [vmem:[%s563 + $0x3e0] sm:$0xff]
                  %690 = vst [vmem:[%s564 + $0x1f0] sm:$0xff] %v689
                  %v691 = vld [vmem:[%s563 + $0x3f0] sm:$0xff]
                  %692 = vst [vmem:[%s564 + $0x1f8] sm:$0xff] %v691
                  %v693 = vld [vmem:[%s563 + $0x400] sm:$0xff]
                  %694 = vst [vmem:[%s564 + $0x200] sm:$0xff] %v693
                  %v695 = vld [vmem:[%s563 + $0x410] sm:$0xff]
                  %696 = vst [vmem:[%s564 + $0x208] sm:$0xff] %v695
                  %v697 = vld [vmem:[%s563 + $0x420] sm:$0xff]
                  %698 = vst [vmem:[%s564 + $0x210] sm:$0xff] %v697
                  %v699 = vld [vmem:[%s563 + $0x430] sm:$0xff]
                  %700 = vst [vmem:[%s564 + $0x218] sm:$0xff] %v699
                  %v701 = vld [vmem:[%s563 + $0x440] sm:$0xff]
                  %702 = vst [vmem:[%s564 + $0x220] sm:$0xff] %v701
                  %v703 = vld [vmem:[%s563 + $0x450] sm:$0xff]
                  %704 = vst [vmem:[%s564 + $0x228] sm:$0xff] %v703
                  %v705 = vld [vmem:[%s563 + $0x460] sm:$0xff]
                  %706 = vst [vmem:[%s564 + $0x230] sm:$0xff] %v705
                  %v707 = vld [vmem:[%s563 + $0x470] sm:$0xff]
                  %708 = vst [vmem:[%s564 + $0x238] sm:$0xff] %v707
                  %v709 = vld [vmem:[%s563 + $0x480] sm:$0xff]
                  %710 = vst [vmem:[%s564 + $0x240] sm:$0xff] %v709
                  %v711 = vld [vmem:[%s563 + $0x490] sm:$0xff]
                  %712 = vst [vmem:[%s564 + $0x248] sm:$0xff] %v711
                  %v713 = vld [vmem:[%s563 + $0x4a0] sm:$0xff]
                  %714 = vst [vmem:[%s564 + $0x250] sm:$0xff] %v713
                  %v715 = vld [vmem:[%s563 + $0x4b0] sm:$0xff]
                  %716 = vst [vmem:[%s564 + $0x258] sm:$0xff] %v715
                  %v717 = vld [vmem:[%s563 + $0x4c0] sm:$0xff]
                  %718 = vst [vmem:[%s564 + $0x260] sm:$0xff] %v717
                  %v719 = vld [vmem:[%s563 + $0x4d0] sm:$0xff]
                  %720 = vst [vmem:[%s564 + $0x268] sm:$0xff] %v719
                  %v721 = vld [vmem:[%s563 + $0x4e0] sm:$0xff]
                  %722 = vst [vmem:[%s564 + $0x270] sm:$0xff] %v721
                  %v723 = vld [vmem:[%s563 + $0x4f0] sm:$0xff]
                  %724 = vst [vmem:[%s564 + $0x278] sm:$0xff] %v723
                  %v725 = vld [vmem:[%s563 + $0x500] sm:$0xff]
                  %726 = vst [vmem:[%s564 + $0x280] sm:$0xff] %v725
                  %v727 = vld [vmem:[%s563 + $0x510] sm:$0xff]
                  %728 = vst [vmem:[%s564 + $0x288] sm:$0xff] %v727
                  %v729 = vld [vmem:[%s563 + $0x520] sm:$0xff]
                  %730 = vst [vmem:[%s564 + $0x290] sm:$0xff] %v729
                  %v731 = vld [vmem:[%s563 + $0x530] sm:$0xff]
                  %732 = vst [vmem:[%s564 + $0x298] sm:$0xff] %v731
                  %v733 = vld [vmem:[%s563 + $0x540] sm:$0xff]
                  %734 = vst [vmem:[%s564 + $0x2a0] sm:$0xff] %v733
                  %v735 = vld [vmem:[%s563 + $0x550] sm:$0xff]
                  %736 = vst [vmem:[%s564 + $0x2a8] sm:$0xff] %v735
                  %v737 = vld [vmem:[%s563 + $0x560] sm:$0xff]
                  %738 = vst [vmem:[%s564 + $0x2b0] sm:$0xff] %v737
                  %v739 = vld [vmem:[%s563 + $0x570] sm:$0xff]
                  %740 = vst [vmem:[%s564 + $0x2b8] sm:$0xff] %v739
                  %v741 = vld [vmem:[%s563 + $0x580] sm:$0xff]
                  %742 = vst [vmem:[%s564 + $0x2c0] sm:$0xff] %v741
                  %v743 = vld [vmem:[%s563 + $0x590] sm:$0xff]
                  %744 = vst [vmem:[%s564 + $0x2c8] sm:$0xff] %v743
                  %v745 = vld [vmem:[%s563 + $0x5a0] sm:$0xff]
                  %746 = vst [vmem:[%s564 + $0x2d0] sm:$0xff] %v745
                  %v747 = vld [vmem:[%s563 + $0x5b0] sm:$0xff]
                  %748 = vst [vmem:[%s564 + $0x2d8] sm:$0xff] %v747
                  %v749 = vld [vmem:[%s563 + $0x5c0] sm:$0xff]
                  %750 = vst [vmem:[%s564 + $0x2e0] sm:$0xff] %v749
                  %v751 = vld [vmem:[%s563 + $0x5d0] sm:$0xff]
                  %752 = vst [vmem:[%s564 + $0x2e8] sm:$0xff] %v751
                  %v753 = vld [vmem:[%s563 + $0x5e0] sm:$0xff]
                  %754 = vst [vmem:[%s564 + $0x2f0] sm:$0xff] %v753
                  %v755 = vld [vmem:[%s563 + $0x5f0] sm:$0xff]
                  %756 = vst [vmem:[%s564 + $0x2f8] sm:$0xff] %v755
                  %v757 = vld [vmem:[%s563 + $0x600] sm:$0xff]
                  %758 = vst [vmem:[%s564 + $0x300] sm:$0xff] %v757
                  %v759 = vld [vmem:[%s563 + $0x610] sm:$0xff]
                  %760 = vst [vmem:[%s564 + $0x308] sm:$0xff] %v759
                  %v761 = vld [vmem:[%s563 + $0x620] sm:$0xff]
                  %762 = vst [vmem:[%s564 + $0x310] sm:$0xff] %v761
                  %v763 = vld [vmem:[%s563 + $0x630] sm:$0xff]
                  %764 = vst [vmem:[%s564 + $0x318] sm:$0xff] %v763
                  %v765 = vld [vmem:[%s563 + $0x640] sm:$0xff]
                  %766 = vst [vmem:[%s564 + $0x320] sm:$0xff] %v765
                  %v767 = vld [vmem:[%s563 + $0x650] sm:$0xff]
                  %768 = vst [vmem:[%s564 + $0x328] sm:$0xff] %v767
                  %v769 = vld [vmem:[%s563 + $0x660] sm:$0xff]
                  %770 = vst [vmem:[%s564 + $0x330] sm:$0xff] %v769
                  %v771 = vld [vmem:[%s563 + $0x670] sm:$0xff]
                  %772 = vst [vmem:[%s564 + $0x338] sm:$0xff] %v771
                  %v773 = vld [vmem:[%s563 + $0x680] sm:$0xff]
                  %774 = vst [vmem:[%s564 + $0x340] sm:$0xff] %v773
                  %v775 = vld [vmem:[%s563 + $0x690] sm:$0xff]
                  %776 = vst [vmem:[%s564 + $0x348] sm:$0xff] %v775
                  %v777 = vld [vmem:[%s563 + $0x6a0] sm:$0xff]
                  %778 = vst [vmem:[%s564 + $0x350] sm:$0xff] %v777
                  %v779 = vld [vmem:[%s563 + $0x6b0] sm:$0xff]
                  %780 = vst [vmem:[%s564 + $0x358] sm:$0xff] %v779
                  %v781 = vld [vmem:[%s563 + $0x6c0] sm:$0xff]
                  %782 = vst [vmem:[%s564 + $0x360] sm:$0xff] %v781
                  %v783 = vld [vmem:[%s563 + $0x6d0] sm:$0xff]
                  %784 = vst [vmem:[%s564 + $0x368] sm:$0xff] %v783
                  %v785 = vld [vmem:[%s563 + $0x6e0] sm:$0xff]
                  %786 = vst [vmem:[%s564 + $0x370] sm:$0xff] %v785
                  %v787 = vld [vmem:[%s563 + $0x6f0] sm:$0xff]
                  %788 = vst [vmem:[%s564 + $0x378] sm:$0xff] %v787
                  %v789 = vld [vmem:[%s563 + $0x700] sm:$0xff]
                  %790 = vst [vmem:[%s564 + $0x380] sm:$0xff] %v789
                  %v791 = vld [vmem:[%s563 + $0x710] sm:$0xff]
                  %792 = vst [vmem:[%s564 + $0x388] sm:$0xff] %v791
                  %v793 = vld [vmem:[%s563 + $0x720] sm:$0xff]
                  %794 = vst [vmem:[%s564 + $0x390] sm:$0xff] %v793
                  %v795 = vld [vmem:[%s563 + $0x730] sm:$0xff]
                  %796 = vst [vmem:[%s564 + $0x398] sm:$0xff] %v795
                  %v797 = vld [vmem:[%s563 + $0x740] sm:$0xff]
                  %798 = vst [vmem:[%s564 + $0x3a0] sm:$0xff] %v797
                  %v799 = vld [vmem:[%s563 + $0x750] sm:$0xff]
                  %800 = vst [vmem:[%s564 + $0x3a8] sm:$0xff] %v799
                  %v801 = vld [vmem:[%s563 + $0x760] sm:$0xff]
                  %802 = vst [vmem:[%s564 + $0x3b0] sm:$0xff] %v801
                  %v803 = vld [vmem:[%s563 + $0x770] sm:$0xff]
                  %804 = vst [vmem:[%s564 + $0x3b8] sm:$0xff] %v803
                  %v805 = vld [vmem:[%s563 + $0x780] sm:$0xff]
                  %806 = vst [vmem:[%s564 + $0x3c0] sm:$0xff] %v805
                  %v807 = vld [vmem:[%s563 + $0x790] sm:$0xff]
                  %808 = vst [vmem:[%s564 + $0x3c8] sm:$0xff] %v807
                  %v809 = vld [vmem:[%s563 + $0x7a0] sm:$0xff]
                  %810 = vst [vmem:[%s564 + $0x3d0] sm:$0xff] %v809
                  %v811 = vld [vmem:[%s563 + $0x7b0] sm:$0xff]
                  %812 = vst [vmem:[%s564 + $0x3d8] sm:$0xff] %v811
                  %v813 = vld [vmem:[%s563 + $0x7c0] sm:$0xff]
                  %814 = vst [vmem:[%s564 + $0x3e0] sm:$0xff] %v813
                  %v815 = vld [vmem:[%s563 + $0x7d0] sm:$0xff]
                  %816 = vst [vmem:[%s564 + $0x3e8] sm:$0xff] %v815
                  %v817 = vld [vmem:[%s563 + $0x7e0] sm:$0xff]
                  %818 = vst [vmem:[%s564 + $0x3f0] sm:$0xff] %v817
                  %v819 = vld [vmem:[%s563 + $0x7f0] sm:$0xff]
                  %820 = vst [vmem:[%s564 + $0x3f8] sm:$0xff] %v819
                  %v821 = vld [vmem:[%s563 + $0x800] sm:$0xff]
                  %822 = vst [vmem:[%s564 + $0x400] sm:$0xff] %v821
                  %v823 = vld [vmem:[%s563 + $0x810] sm:$0xff]
                  %824 = vst [vmem:[%s564 + $0x408] sm:$0xff] %v823
                  %v825 = vld [vmem:[%s563 + $0x820] sm:$0xff]
                  %826 = vst [vmem:[%s564 + $0x410] sm:$0xff] %v825
                  %v827 = vld [vmem:[%s563 + $0x830] sm:$0xff]
                  %828 = vst [vmem:[%s564 + $0x418] sm:$0xff] %v827
                  %v829 = vld [vmem:[%s563 + $0x840] sm:$0xff]
                  %830 = vst [vmem:[%s564 + $0x420] sm:$0xff] %v829
                  %v831 = vld [vmem:[%s563 + $0x850] sm:$0xff]
                  %832 = vst [vmem:[%s564 + $0x428] sm:$0xff] %v831
                  %v833 = vld [vmem:[%s563 + $0x860] sm:$0xff]
                  %834 = vst [vmem:[%s564 + $0x430] sm:$0xff] %v833
                  %v835 = vld [vmem:[%s563 + $0x870] sm:$0xff]
                  %836 = vst [vmem:[%s564 + $0x438] sm:$0xff] %v835
                  %v837 = vld [vmem:[%s563 + $0x880] sm:$0xff]
                  %838 = vst [vmem:[%s564 + $0x440] sm:$0xff] %v837
                  %v839 = vld [vmem:[%s563 + $0x890] sm:$0xff]
                  %840 = vst [vmem:[%s564 + $0x448] sm:$0xff] %v839
                  %v841 = vld [vmem:[%s563 + $0x8a0] sm:$0xff]
                  %842 = vst [vmem:[%s564 + $0x450] sm:$0xff] %v841
                  %v843 = vld [vmem:[%s563 + $0x8b0] sm:$0xff]
                  %844 = vst [vmem:[%s564 + $0x458] sm:$0xff] %v843
                  %v845 = vld [vmem:[%s563 + $0x8c0] sm:$0xff]
                  %846 = vst [vmem:[%s564 + $0x460] sm:$0xff] %v845
                  %v847 = vld [vmem:[%s563 + $0x8d0] sm:$0xff]
                  %848 = vst [vmem:[%s564 + $0x468] sm:$0xff] %v847
                  %v849 = vld [vmem:[%s563 + $0x8e0] sm:$0xff]
                  %850 = vst [vmem:[%s564 + $0x470] sm:$0xff] %v849
                  %v851 = vld [vmem:[%s563 + $0x8f0] sm:$0xff]
                  %852 = vst [vmem:[%s564 + $0x478] sm:$0xff] %v851
                  %v853 = vld [vmem:[%s563 + $0x900] sm:$0xff]
                  %854 = vst [vmem:[%s564 + $0x480] sm:$0xff] %v853
                  %v855 = vld [vmem:[%s563 + $0x910] sm:$0xff]
                  %856 = vst [vmem:[%s564 + $0x488] sm:$0xff] %v855
                  %v857 = vld [vmem:[%s563 + $0x920] sm:$0xff]
                  %858 = vst [vmem:[%s564 + $0x490] sm:$0xff] %v857
                  %v859 = vld [vmem:[%s563 + $0x930] sm:$0xff]
                  %860 = vst [vmem:[%s564 + $0x498] sm:$0xff] %v859
                  %v861 = vld [vmem:[%s563 + $0x940] sm:$0xff]
                  %862 = vst [vmem:[%s564 + $0x4a0] sm:$0xff] %v861
                  %v863 = vld [vmem:[%s563 + $0x950] sm:$0xff]
                  %864 = vst [vmem:[%s564 + $0x4a8] sm:$0xff] %v863
                  %v865 = vld [vmem:[%s563 + $0x960] sm:$0xff]
                  %866 = vst [vmem:[%s564 + $0x4b0] sm:$0xff] %v865
                  %v867 = vld [vmem:[%s563 + $0x970] sm:$0xff]
                  %868 = vst [vmem:[%s564 + $0x4b8] sm:$0xff] %v867
                  %v869 = vld [vmem:[%s563 + $0x980] sm:$0xff]
                  %870 = vst [vmem:[%s564 + $0x4c0] sm:$0xff] %v869
                  %v871 = vld [vmem:[%s563 + $0x990] sm:$0xff]
                  %872 = vst [vmem:[%s564 + $0x4c8] sm:$0xff] %v871
                  %v873 = vld [vmem:[%s563 + $0x9a0] sm:$0xff]
                  %874 = vst [vmem:[%s564 + $0x4d0] sm:$0xff] %v873
                  %v875 = vld [vmem:[%s563 + $0x9b0] sm:$0xff]
                  %876 = vst [vmem:[%s564 + $0x4d8] sm:$0xff] %v875
                  %v877 = vld [vmem:[%s563 + $0x9c0] sm:$0xff]
                  %878 = vst [vmem:[%s564 + $0x4e0] sm:$0xff] %v877
                  %v879 = vld [vmem:[%s563 + $0x9d0] sm:$0xff]
                  %880 = vst [vmem:[%s564 + $0x4e8] sm:$0xff] %v879
                  %v881 = vld [vmem:[%s563 + $0x9e0] sm:$0xff]
                  %882 = vst [vmem:[%s564 + $0x4f0] sm:$0xff] %v881
                  %v883 = vld [vmem:[%s563 + $0x9f0] sm:$0xff]
                  %884 = vst [vmem:[%s564 + $0x4f8] sm:$0xff] %v883
                  %v885 = vld [vmem:[%s563 + $0xa00] sm:$0xff]
                  %886 = vst [vmem:[%s564 + $0x500] sm:$0xff] %v885
                  %v887 = vld [vmem:[%s563 + $0xa10] sm:$0xff]
                  %888 = vst [vmem:[%s564 + $0x508] sm:$0xff] %v887
                  %v889 = vld [vmem:[%s563 + $0xa20] sm:$0xff]
                  %890 = vst [vmem:[%s564 + $0x510] sm:$0xff] %v889
                  %v891 = vld [vmem:[%s563 + $0xa30] sm:$0xff]
                  %892 = vst [vmem:[%s564 + $0x518] sm:$0xff] %v891
                  %v893 = vld [vmem:[%s563 + $0xa40] sm:$0xff]
                  %894 = vst [vmem:[%s564 + $0x520] sm:$0xff] %v893
                  %v895 = vld [vmem:[%s563 + $0xa50] sm:$0xff]
                  %896 = vst [vmem:[%s564 + $0x528] sm:$0xff] %v895
                  %v897 = vld [vmem:[%s563 + $0xa60] sm:$0xff]
                  %898 = vst [vmem:[%s564 + $0x530] sm:$0xff] %v897
                  %v899 = vld [vmem:[%s563 + $0xa70] sm:$0xff]
                  %900 = vst [vmem:[%s564 + $0x538] sm:$0xff] %v899
                  %v901 = vld [vmem:[%s563 + $0xa80] sm:$0xff]
                  %902 = vst [vmem:[%s564 + $0x540] sm:$0xff] %v901
                  %v903 = vld [vmem:[%s563 + $0xa90] sm:$0xff]
                  %904 = vst [vmem:[%s564 + $0x548] sm:$0xff] %v903
                  %v905 = vld [vmem:[%s563 + $0xaa0] sm:$0xff]
                  %906 = vst [vmem:[%s564 + $0x550] sm:$0xff] %v905
                  %v907 = vld [vmem:[%s563 + $0xab0] sm:$0xff]
                  %908 = vst [vmem:[%s564 + $0x558] sm:$0xff] %v907
                  %v909 = vld [vmem:[%s563 + $0xac0] sm:$0xff]
                  %910 = vst [vmem:[%s564 + $0x560] sm:$0xff] %v909
                  %v911 = vld [vmem:[%s563 + $0xad0] sm:$0xff]
                  %912 = vst [vmem:[%s564 + $0x568] sm:$0xff] %v911
                  %v913 = vld [vmem:[%s563 + $0xae0] sm:$0xff]
                  %914 = vst [vmem:[%s564 + $0x570] sm:$0xff] %v913
                  %v915 = vld [vmem:[%s563 + $0xaf0] sm:$0xff]
                  %916 = vst [vmem:[%s564 + $0x578] sm:$0xff] %v915
                  %v917 = vld [vmem:[%s563 + $0xb00] sm:$0xff]
                  %918 = vst [vmem:[%s564 + $0x580] sm:$0xff] %v917
                  %v919 = vld [vmem:[%s563 + $0xb10] sm:$0xff]
                  %920 = vst [vmem:[%s564 + $0x588] sm:$0xff] %v919
                  %v921 = vld [vmem:[%s563 + $0xb20] sm:$0xff]
                  %922 = vst [vmem:[%s564 + $0x590] sm:$0xff] %v921
                  %v923 = vld [vmem:[%s563 + $0xb30] sm:$0xff]
                  %924 = vst [vmem:[%s564 + $0x598] sm:$0xff] %v923
                  %v925 = vld [vmem:[%s563 + $0xb40] sm:$0xff]
                  %926 = vst [vmem:[%s564 + $0x5a0] sm:$0xff] %v925
                  %v927 = vld [vmem:[%s563 + $0xb50] sm:$0xff]
                  %928 = vst [vmem:[%s564 + $0x5a8] sm:$0xff] %v927
                  %v929 = vld [vmem:[%s563 + $0xb60] sm:$0xff]
                  %930 = vst [vmem:[%s564 + $0x5b0] sm:$0xff] %v929
                  %v931 = vld [vmem:[%s563 + $0xb70] sm:$0xff]
                  %932 = vst [vmem:[%s564 + $0x5b8] sm:$0xff] %v931
                  %v933 = vld [vmem:[%s563 + $0xb80] sm:$0xff]
                  %934 = vst [vmem:[%s564 + $0x5c0] sm:$0xff] %v933
                  %v935 = vld [vmem:[%s563 + $0xb90] sm:$0xff]
                  %936 = vst [vmem:[%s564 + $0x5c8] sm:$0xff] %v935
                  %v937 = vld [vmem:[%s563 + $0xba0] sm:$0xff]
                  %938 = vst [vmem:[%s564 + $0x5d0] sm:$0xff] %v937
                  %v939 = vld [vmem:[%s563 + $0xbb0] sm:$0xff]
                  %940 = vst [vmem:[%s564 + $0x5d8] sm:$0xff] %v939
                  %v941 = vld [vmem:[%s563 + $0xbc0] sm:$0xff]
                  %942 = vst [vmem:[%s564 + $0x5e0] sm:$0xff] %v941
                  %v943 = vld [vmem:[%s563 + $0xbd0] sm:$0xff]
                  %944 = vst [vmem:[%s564 + $0x5e8] sm:$0xff] %v943
                  %v945 = vld [vmem:[%s563 + $0xbe0] sm:$0xff]
                  %946 = vst [vmem:[%s564 + $0x5f0] sm:$0xff] %v945
                  %v947 = vld [vmem:[%s563 + $0xbf0] sm:$0xff]
                  %948 = vst [vmem:[%s564 + $0x5f8] sm:$0xff] %v947
                $region52: #{relu_conv2d.1} parent=46 // loop_footer
                  %s562 = sadd.s32 1, %s558
                $region53: #{relu_conv2d.1} parent=46 // loop_footer_branch
                  %557 = sbr.rel target = $region49
                $region54: #{relu_conv2d.1} parent=46 // loop_exit
                  _
              $region47: #{relu_conv2d.1} parent=31 // pred_fallthru
                _
              // Predicated region
              $region55: #{relu_conv2d.1} parent=31 // pred_check
                _
              $region56: #{relu_conv2d.1} parent=31 // pred_check_branch
                %950 = sbr.rel target = $region58
              $region57: #{relu_conv2d.1} parent=31 // pred_region
                _
              $region58: #{relu_conv2d.1} parent=31 // pred_fallthru
                _
            $region32: #{relu_conv2d.1} parent=27 // pred_fallthru
              _
            // Predicated region
            $region33: #{relu_conv2d.1} parent=27 // pred_check
              _
            $region34: #{relu_conv2d.1} parent=27 // pred_check_branch
              %161 = sbr.rel target = $region36
            $region35: #{relu_conv2d.1} parent=27 // pred_region
              loop: start=0, step=1, limit=1
              $region37: #{relu_conv2d.1} parent=35 // loop_pre_header
                _
              $region38: #{relu_conv2d.1} parent=35 // loop_header
                %s164 = sphi 0, %s168
                %p165 = scmp.ge.s32.totalorder %s164, 1
                %s169 = sphi %s155, %s155
                %s170 = sphi %s150, %s150
              $region39: #{relu_conv2d.1} parent=35 // loop_header_branch
                %167 = sbr.rel (%p165) target = $region43
              $region40: #{relu_conv2d.1} parent=35 // loop_body
                %v171 = vld [vmem:[%s169] sm:$0xff]
                %172 = vst [vmem:[%s170] sm:$0xff] %v171
                %v173 = vld [vmem:[%s169 + $0x10] sm:$0xff]
                %174 = vst [vmem:[%s170 + $0x8] sm:$0xff] %v173
                %v175 = vld [vmem:[%s169 + $0x20] sm:$0xff]
                %176 = vst [vmem:[%s170 + $0x10] sm:$0xff] %v175
                %v177 = vld [vmem:[%s169 + $0x30] sm:$0xff]
                %178 = vst [vmem:[%s170 + $0x18] sm:$0xff] %v177
                %v179 = vld [vmem:[%s169 + $0x40] sm:$0xff]
                %180 = vst [vmem:[%s170 + $0x20] sm:$0xff] %v179
                %v181 = vld [vmem:[%s169 + $0x50] sm:$0xff]
                %182 = vst [vmem:[%s170 + $0x28] sm:$0xff] %v181
                %v183 = vld [vmem:[%s169 + $0x60] sm:$0xff]
                %184 = vst [vmem:[%s170 + $0x30] sm:$0xff] %v183
                %v185 = vld [vmem:[%s169 + $0x70] sm:$0xff]
                %186 = vst [vmem:[%s170 + $0x38] sm:$0xff] %v185
                %v187 = vld [vmem:[%s169 + $0x80] sm:$0xff]
                %188 = vst [vmem:[%s170 + $0x40] sm:$0xff] %v187
                %v189 = vld [vmem:[%s169 + $0x90] sm:$0xff]
                %190 = vst [vmem:[%s170 + $0x48] sm:$0xff] %v189
                %v191 = vld [vmem:[%s169 + $0xa0] sm:$0xff]
                %192 = vst [vmem:[%s170 + $0x50] sm:$0xff] %v191
                %v193 = vld [vmem:[%s169 + $0xb0] sm:$0xff]
                %194 = vst [vmem:[%s170 + $0x58] sm:$0xff] %v193
                %v195 = vld [vmem:[%s169 + $0xc0] sm:$0xff]
                %196 = vst [vmem:[%s170 + $0x60] sm:$0xff] %v195
                %v197 = vld [vmem:[%s169 + $0xd0] sm:$0xff]
                %198 = vst [vmem:[%s170 + $0x68] sm:$0xff] %v197
                %v199 = vld [vmem:[%s169 + $0xe0] sm:$0xff]
                %200 = vst [vmem:[%s170 + $0x70] sm:$0xff] %v199
                %v201 = vld [vmem:[%s169 + $0xf0] sm:$0xff]
                %202 = vst [vmem:[%s170 + $0x78] sm:$0xff] %v201
                %v203 = vld [vmem:[%s169 + $0x100] sm:$0xff]
                %204 = vst [vmem:[%s170 + $0x80] sm:$0xff] %v203
                %v205 = vld [vmem:[%s169 + $0x110] sm:$0xff]
                %206 = vst [vmem:[%s170 + $0x88] sm:$0xff] %v205
                %v207 = vld [vmem:[%s169 + $0x120] sm:$0xff]
                %208 = vst [vmem:[%s170 + $0x90] sm:$0xff] %v207
                %v209 = vld [vmem:[%s169 + $0x130] sm:$0xff]
                %210 = vst [vmem:[%s170 + $0x98] sm:$0xff] %v209
                %v211 = vld [vmem:[%s169 + $0x140] sm:$0xff]
                %212 = vst [vmem:[%s170 + $0xa0] sm:$0xff] %v211
                %v213 = vld [vmem:[%s169 + $0x150] sm:$0xff]
                %214 = vst [vmem:[%s170 + $0xa8] sm:$0xff] %v213
                %v215 = vld [vmem:[%s169 + $0x160] sm:$0xff]
                %216 = vst [vmem:[%s170 + $0xb0] sm:$0xff] %v215
                %v217 = vld [vmem:[%s169 + $0x170] sm:$0xff]
                %218 = vst [vmem:[%s170 + $0xb8] sm:$0xff] %v217
                %v219 = vld [vmem:[%s169 + $0x180] sm:$0xff]
                %220 = vst [vmem:[%s170 + $0xc0] sm:$0xff] %v219
                %v221 = vld [vmem:[%s169 + $0x190] sm:$0xff]
                %222 = vst [vmem:[%s170 + $0xc8] sm:$0xff] %v221
                %v223 = vld [vmem:[%s169 + $0x1a0] sm:$0xff]
                %224 = vst [vmem:[%s170 + $0xd0] sm:$0xff] %v223
                %v225 = vld [vmem:[%s169 + $0x1b0] sm:$0xff]
                %226 = vst [vmem:[%s170 + $0xd8] sm:$0xff] %v225
                %v227 = vld [vmem:[%s169 + $0x1c0] sm:$0xff]
                %228 = vst [vmem:[%s170 + $0xe0] sm:$0xff] %v227
                %v229 = vld [vmem:[%s169 + $0x1d0] sm:$0xff]
                %230 = vst [vmem:[%s170 + $0xe8] sm:$0xff] %v229
                %v231 = vld [vmem:[%s169 + $0x1e0] sm:$0xff]
                %232 = vst [vmem:[%s170 + $0xf0] sm:$0xff] %v231
                %v233 = vld [vmem:[%s169 + $0x1f0] sm:$0xff]
                %234 = vst [vmem:[%s170 + $0xf8] sm:$0xff] %v233
                %v235 = vld [vmem:[%s169 + $0x200] sm:$0xff]
                %236 = vst [vmem:[%s170 + $0x100] sm:$0xff] %v235
                %v237 = vld [vmem:[%s169 + $0x210] sm:$0xff]
                %238 = vst [vmem:[%s170 + $0x108] sm:$0xff] %v237
                %v239 = vld [vmem:[%s169 + $0x220] sm:$0xff]
                %240 = vst [vmem:[%s170 + $0x110] sm:$0xff] %v239
                %v241 = vld [vmem:[%s169 + $0x230] sm:$0xff]
                %242 = vst [vmem:[%s170 + $0x118] sm:$0xff] %v241
                %v243 = vld [vmem:[%s169 + $0x240] sm:$0xff]
                %244 = vst [vmem:[%s170 + $0x120] sm:$0xff] %v243
                %v245 = vld [vmem:[%s169 + $0x250] sm:$0xff]
                %246 = vst [vmem:[%s170 + $0x128] sm:$0xff] %v245
                %v247 = vld [vmem:[%s169 + $0x260] sm:$0xff]
                %248 = vst [vmem:[%s170 + $0x130] sm:$0xff] %v247
                %v249 = vld [vmem:[%s169 + $0x270] sm:$0xff]
                %250 = vst [vmem:[%s170 + $0x138] sm:$0xff] %v249
                %v251 = vld [vmem:[%s169 + $0x280] sm:$0xff]
                %252 = vst [vmem:[%s170 + $0x140] sm:$0xff] %v251
                %v253 = vld [vmem:[%s169 + $0x290] sm:$0xff]
                %254 = vst [vmem:[%s170 + $0x148] sm:$0xff] %v253
                %v255 = vld [vmem:[%s169 + $0x2a0] sm:$0xff]
                %256 = vst [vmem:[%s170 + $0x150] sm:$0xff] %v255
                %v257 = vld [vmem:[%s169 + $0x2b0] sm:$0xff]
                %258 = vst [vmem:[%s170 + $0x158] sm:$0xff] %v257
                %v259 = vld [vmem:[%s169 + $0x2c0] sm:$0xff]
                %260 = vst [vmem:[%s170 + $0x160] sm:$0xff] %v259
                %v261 = vld [vmem:[%s169 + $0x2d0] sm:$0xff]
                %262 = vst [vmem:[%s170 + $0x168] sm:$0xff] %v261
                %v263 = vld [vmem:[%s169 + $0x2e0] sm:$0xff]
                %264 = vst [vmem:[%s170 + $0x170] sm:$0xff] %v263
                %v265 = vld [vmem:[%s169 + $0x2f0] sm:$0xff]
                %266 = vst [vmem:[%s170 + $0x178] sm:$0xff] %v265
                %v267 = vld [vmem:[%s169 + $0x300] sm:$0xff]
                %268 = vst [vmem:[%s170 + $0x180] sm:$0xff] %v267
                %v269 = vld [vmem:[%s169 + $0x310] sm:$0xff]
                %270 = vst [vmem:[%s170 + $0x188] sm:$0xff] %v269
                %v271 = vld [vmem:[%s169 + $0x320] sm:$0xff]
                %272 = vst [vmem:[%s170 + $0x190] sm:$0xff] %v271
                %v273 = vld [vmem:[%s169 + $0x330] sm:$0xff]
                %274 = vst [vmem:[%s170 + $0x198] sm:$0xff] %v273
                %v275 = vld [vmem:[%s169 + $0x340] sm:$0xff]
                %276 = vst [vmem:[%s170 + $0x1a0] sm:$0xff] %v275
                %v277 = vld [vmem:[%s169 + $0x350] sm:$0xff]
                %278 = vst [vmem:[%s170 + $0x1a8] sm:$0xff] %v277
                %v279 = vld [vmem:[%s169 + $0x360] sm:$0xff]
                %280 = vst [vmem:[%s170 + $0x1b0] sm:$0xff] %v279
                %v281 = vld [vmem:[%s169 + $0x370] sm:$0xff]
                %282 = vst [vmem:[%s170 + $0x1b8] sm:$0xff] %v281
                %v283 = vld [vmem:[%s169 + $0x380] sm:$0xff]
                %284 = vst [vmem:[%s170 + $0x1c0] sm:$0xff] %v283
                %v285 = vld [vmem:[%s169 + $0x390] sm:$0xff]
                %286 = vst [vmem:[%s170 + $0x1c8] sm:$0xff] %v285
                %v287 = vld [vmem:[%s169 + $0x3a0] sm:$0xff]
                %288 = vst [vmem:[%s170 + $0x1d0] sm:$0xff] %v287
                %v289 = vld [vmem:[%s169 + $0x3b0] sm:$0xff]
                %290 = vst [vmem:[%s170 + $0x1d8] sm:$0xff] %v289
                %v291 = vld [vmem:[%s169 + $0x3c0] sm:$0xff]
                %292 = vst [vmem:[%s170 + $0x1e0] sm:$0xff] %v291
                %v293 = vld [vmem:[%s169 + $0x3d0] sm:$0xff]
                %294 = vst [vmem:[%s170 + $0x1e8] sm:$0xff] %v293
                %v295 = vld [vmem:[%s169 + $0x3e0] sm:$0xff]
                %296 = vst [vmem:[%s170 + $0x1f0] sm:$0xff] %v295
                %v297 = vld [vmem:[%s169 + $0x3f0] sm:$0xff]
                %298 = vst [vmem:[%s170 + $0x1f8] sm:$0xff] %v297
                %v299 = vld [vmem:[%s169 + $0x400] sm:$0xff]
                %300 = vst [vmem:[%s170 + $0x200] sm:$0xff] %v299
                %v301 = vld [vmem:[%s169 + $0x410] sm:$0xff]
                %302 = vst [vmem:[%s170 + $0x208] sm:$0xff] %v301
                %v303 = vld [vmem:[%s169 + $0x420] sm:$0xff]
                %304 = vst [vmem:[%s170 + $0x210] sm:$0xff] %v303
                %v305 = vld [vmem:[%s169 + $0x430] sm:$0xff]
                %306 = vst [vmem:[%s170 + $0x218] sm:$0xff] %v305
                %v307 = vld [vmem:[%s169 + $0x440] sm:$0xff]
                %308 = vst [vmem:[%s170 + $0x220] sm:$0xff] %v307
                %v309 = vld [vmem:[%s169 + $0x450] sm:$0xff]
                %310 = vst [vmem:[%s170 + $0x228] sm:$0xff] %v309
                %v311 = vld [vmem:[%s169 + $0x460] sm:$0xff]
                %312 = vst [vmem:[%s170 + $0x230] sm:$0xff] %v311
                %v313 = vld [vmem:[%s169 + $0x470] sm:$0xff]
                %314 = vst [vmem:[%s170 + $0x238] sm:$0xff] %v313
                %v315 = vld [vmem:[%s169 + $0x480] sm:$0xff]
                %316 = vst [vmem:[%s170 + $0x240] sm:$0xff] %v315
                %v317 = vld [vmem:[%s169 + $0x490] sm:$0xff]
                %318 = vst [vmem:[%s170 + $0x248] sm:$0xff] %v317
                %v319 = vld [vmem:[%s169 + $0x4a0] sm:$0xff]
                %320 = vst [vmem:[%s170 + $0x250] sm:$0xff] %v319
                %v321 = vld [vmem:[%s169 + $0x4b0] sm:$0xff]
                %322 = vst [vmem:[%s170 + $0x258] sm:$0xff] %v321
                %v323 = vld [vmem:[%s169 + $0x4c0] sm:$0xff]
                %324 = vst [vmem:[%s170 + $0x260] sm:$0xff] %v323
                %v325 = vld [vmem:[%s169 + $0x4d0] sm:$0xff]
                %326 = vst [vmem:[%s170 + $0x268] sm:$0xff] %v325
                %v327 = vld [vmem:[%s169 + $0x4e0] sm:$0xff]
                %328 = vst [vmem:[%s170 + $0x270] sm:$0xff] %v327
                %v329 = vld [vmem:[%s169 + $0x4f0] sm:$0xff]
                %330 = vst [vmem:[%s170 + $0x278] sm:$0xff] %v329
                %v331 = vld [vmem:[%s169 + $0x500] sm:$0xff]
                %332 = vst [vmem:[%s170 + $0x280] sm:$0xff] %v331
                %v333 = vld [vmem:[%s169 + $0x510] sm:$0xff]
                %334 = vst [vmem:[%s170 + $0x288] sm:$0xff] %v333
                %v335 = vld [vmem:[%s169 + $0x520] sm:$0xff]
                %336 = vst [vmem:[%s170 + $0x290] sm:$0xff] %v335
                %v337 = vld [vmem:[%s169 + $0x530] sm:$0xff]
                %338 = vst [vmem:[%s170 + $0x298] sm:$0xff] %v337
                %v339 = vld [vmem:[%s169 + $0x540] sm:$0xff]
                %340 = vst [vmem:[%s170 + $0x2a0] sm:$0xff] %v339
                %v341 = vld [vmem:[%s169 + $0x550] sm:$0xff]
                %342 = vst [vmem:[%s170 + $0x2a8] sm:$0xff] %v341
                %v343 = vld [vmem:[%s169 + $0x560] sm:$0xff]
                %344 = vst [vmem:[%s170 + $0x2b0] sm:$0xff] %v343
                %v345 = vld [vmem:[%s169 + $0x570] sm:$0xff]
                %346 = vst [vmem:[%s170 + $0x2b8] sm:$0xff] %v345
                %v347 = vld [vmem:[%s169 + $0x580] sm:$0xff]
                %348 = vst [vmem:[%s170 + $0x2c0] sm:$0xff] %v347
                %v349 = vld [vmem:[%s169 + $0x590] sm:$0xff]
                %350 = vst [vmem:[%s170 + $0x2c8] sm:$0xff] %v349
                %v351 = vld [vmem:[%s169 + $0x5a0] sm:$0xff]
                %352 = vst [vmem:[%s170 + $0x2d0] sm:$0xff] %v351
                %v353 = vld [vmem:[%s169 + $0x5b0] sm:$0xff]
                %354 = vst [vmem:[%s170 + $0x2d8] sm:$0xff] %v353
                %v355 = vld [vmem:[%s169 + $0x5c0] sm:$0xff]
                %356 = vst [vmem:[%s170 + $0x2e0] sm:$0xff] %v355
                %v357 = vld [vmem:[%s169 + $0x5d0] sm:$0xff]
                %358 = vst [vmem:[%s170 + $0x2e8] sm:$0xff] %v357
                %v359 = vld [vmem:[%s169 + $0x5e0] sm:$0xff]
                %360 = vst [vmem:[%s170 + $0x2f0] sm:$0xff] %v359
                %v361 = vld [vmem:[%s169 + $0x5f0] sm:$0xff]
                %362 = vst [vmem:[%s170 + $0x2f8] sm:$0xff] %v361
                %v363 = vld [vmem:[%s169 + $0x600] sm:$0xff]
                %364 = vst [vmem:[%s170 + $0x300] sm:$0xff] %v363
                %v365 = vld [vmem:[%s169 + $0x610] sm:$0xff]
                %366 = vst [vmem:[%s170 + $0x308] sm:$0xff] %v365
                %v367 = vld [vmem:[%s169 + $0x620] sm:$0xff]
                %368 = vst [vmem:[%s170 + $0x310] sm:$0xff] %v367
                %v369 = vld [vmem:[%s169 + $0x630] sm:$0xff]
                %370 = vst [vmem:[%s170 + $0x318] sm:$0xff] %v369
                %v371 = vld [vmem:[%s169 + $0x640] sm:$0xff]
                %372 = vst [vmem:[%s170 + $0x320] sm:$0xff] %v371
                %v373 = vld [vmem:[%s169 + $0x650] sm:$0xff]
                %374 = vst [vmem:[%s170 + $0x328] sm:$0xff] %v373
                %v375 = vld [vmem:[%s169 + $0x660] sm:$0xff]
                %376 = vst [vmem:[%s170 + $0x330] sm:$0xff] %v375
                %v377 = vld [vmem:[%s169 + $0x670] sm:$0xff]
                %378 = vst [vmem:[%s170 + $0x338] sm:$0xff] %v377
                %v379 = vld [vmem:[%s169 + $0x680] sm:$0xff]
                %380 = vst [vmem:[%s170 + $0x340] sm:$0xff] %v379
                %v381 = vld [vmem:[%s169 + $0x690] sm:$0xff]
                %382 = vst [vmem:[%s170 + $0x348] sm:$0xff] %v381
                %v383 = vld [vmem:[%s169 + $0x6a0] sm:$0xff]
                %384 = vst [vmem:[%s170 + $0x350] sm:$0xff] %v383
                %v385 = vld [vmem:[%s169 + $0x6b0] sm:$0xff]
                %386 = vst [vmem:[%s170 + $0x358] sm:$0xff] %v385
                %v387 = vld [vmem:[%s169 + $0x6c0] sm:$0xff]
                %388 = vst [vmem:[%s170 + $0x360] sm:$0xff] %v387
                %v389 = vld [vmem:[%s169 + $0x6d0] sm:$0xff]
                %390 = vst [vmem:[%s170 + $0x368] sm:$0xff] %v389
                %v391 = vld [vmem:[%s169 + $0x6e0] sm:$0xff]
                %392 = vst [vmem:[%s170 + $0x370] sm:$0xff] %v391
                %v393 = vld [vmem:[%s169 + $0x6f0] sm:$0xff]
                %394 = vst [vmem:[%s170 + $0x378] sm:$0xff] %v393
                %v395 = vld [vmem:[%s169 + $0x700] sm:$0xff]
                %396 = vst [vmem:[%s170 + $0x380] sm:$0xff] %v395
                %v397 = vld [vmem:[%s169 + $0x710] sm:$0xff]
                %398 = vst [vmem:[%s170 + $0x388] sm:$0xff] %v397
                %v399 = vld [vmem:[%s169 + $0x720] sm:$0xff]
                %400 = vst [vmem:[%s170 + $0x390] sm:$0xff] %v399
                %v401 = vld [vmem:[%s169 + $0x730] sm:$0xff]
                %402 = vst [vmem:[%s170 + $0x398] sm:$0xff] %v401
                %v403 = vld [vmem:[%s169 + $0x740] sm:$0xff]
                %404 = vst [vmem:[%s170 + $0x3a0] sm:$0xff] %v403
                %v405 = vld [vmem:[%s169 + $0x750] sm:$0xff]
                %406 = vst [vmem:[%s170 + $0x3a8] sm:$0xff] %v405
                %v407 = vld [vmem:[%s169 + $0x760] sm:$0xff]
                %408 = vst [vmem:[%s170 + $0x3b0] sm:$0xff] %v407
                %v409 = vld [vmem:[%s169 + $0x770] sm:$0xff]
                %410 = vst [vmem:[%s170 + $0x3b8] sm:$0xff] %v409
                %v411 = vld [vmem:[%s169 + $0x780] sm:$0xff]
                %412 = vst [vmem:[%s170 + $0x3c0] sm:$0xff] %v411
                %v413 = vld [vmem:[%s169 + $0x790] sm:$0xff]
                %414 = vst [vmem:[%s170 + $0x3c8] sm:$0xff] %v413
                %v415 = vld [vmem:[%s169 + $0x7a0] sm:$0xff]
                %416 = vst [vmem:[%s170 + $0x3d0] sm:$0xff] %v415
                %v417 = vld [vmem:[%s169 + $0x7b0] sm:$0xff]
                %418 = vst [vmem:[%s170 + $0x3d8] sm:$0xff] %v417
                %v419 = vld [vmem:[%s169 + $0x7c0] sm:$0xff]
                %420 = vst [vmem:[%s170 + $0x3e0] sm:$0xff] %v419
                %v421 = vld [vmem:[%s169 + $0x7d0] sm:$0xff]
                %422 = vst [vmem:[%s170 + $0x3e8] sm:$0xff] %v421
                %v423 = vld [vmem:[%s169 + $0x7e0] sm:$0xff]
                %424 = vst [vmem:[%s170 + $0x3f0] sm:$0xff] %v423
                %v425 = vld [vmem:[%s169 + $0x7f0] sm:$0xff]
                %426 = vst [vmem:[%s170 + $0x3f8] sm:$0xff] %v425
                %v427 = vld [vmem:[%s169 + $0x800] sm:$0xff]
                %428 = vst [vmem:[%s170 + $0x400] sm:$0xff] %v427
                %v429 = vld [vmem:[%s169 + $0x810] sm:$0xff]
                %430 = vst [vmem:[%s170 + $0x408] sm:$0xff] %v429
                %v431 = vld [vmem:[%s169 + $0x820] sm:$0xff]
                %432 = vst [vmem:[%s170 + $0x410] sm:$0xff] %v431
                %v433 = vld [vmem:[%s169 + $0x830] sm:$0xff]
                %434 = vst [vmem:[%s170 + $0x418] sm:$0xff] %v433
                %v435 = vld [vmem:[%s169 + $0x840] sm:$0xff]
                %436 = vst [vmem:[%s170 + $0x420] sm:$0xff] %v435
                %v437 = vld [vmem:[%s169 + $0x850] sm:$0xff]
                %438 = vst [vmem:[%s170 + $0x428] sm:$0xff] %v437
                %v439 = vld [vmem:[%s169 + $0x860] sm:$0xff]
                %440 = vst [vmem:[%s170 + $0x430] sm:$0xff] %v439
                %v441 = vld [vmem:[%s169 + $0x870] sm:$0xff]
                %442 = vst [vmem:[%s170 + $0x438] sm:$0xff] %v441
                %v443 = vld [vmem:[%s169 + $0x880] sm:$0xff]
                %444 = vst [vmem:[%s170 + $0x440] sm:$0xff] %v443
                %v445 = vld [vmem:[%s169 + $0x890] sm:$0xff]
                %446 = vst [vmem:[%s170 + $0x448] sm:$0xff] %v445
                %v447 = vld [vmem:[%s169 + $0x8a0] sm:$0xff]
                %448 = vst [vmem:[%s170 + $0x450] sm:$0xff] %v447
                %v449 = vld [vmem:[%s169 + $0x8b0] sm:$0xff]
                %450 = vst [vmem:[%s170 + $0x458] sm:$0xff] %v449
                %v451 = vld [vmem:[%s169 + $0x8c0] sm:$0xff]
                %452 = vst [vmem:[%s170 + $0x460] sm:$0xff] %v451
                %v453 = vld [vmem:[%s169 + $0x8d0] sm:$0xff]
                %454 = vst [vmem:[%s170 + $0x468] sm:$0xff] %v453
                %v455 = vld [vmem:[%s169 + $0x8e0] sm:$0xff]
                %456 = vst [vmem:[%s170 + $0x470] sm:$0xff] %v455
                %v457 = vld [vmem:[%s169 + $0x8f0] sm:$0xff]
                %458 = vst [vmem:[%s170 + $0x478] sm:$0xff] %v457
                %v459 = vld [vmem:[%s169 + $0x900] sm:$0xff]
                %460 = vst [vmem:[%s170 + $0x480] sm:$0xff] %v459
                %v461 = vld [vmem:[%s169 + $0x910] sm:$0xff]
                %462 = vst [vmem:[%s170 + $0x488] sm:$0xff] %v461
                %v463 = vld [vmem:[%s169 + $0x920] sm:$0xff]
                %464 = vst [vmem:[%s170 + $0x490] sm:$0xff] %v463
                %v465 = vld [vmem:[%s169 + $0x930] sm:$0xff]
                %466 = vst [vmem:[%s170 + $0x498] sm:$0xff] %v465
                %v467 = vld [vmem:[%s169 + $0x940] sm:$0xff]
                %468 = vst [vmem:[%s170 + $0x4a0] sm:$0xff] %v467
                %v469 = vld [vmem:[%s169 + $0x950] sm:$0xff]
                %470 = vst [vmem:[%s170 + $0x4a8] sm:$0xff] %v469
                %v471 = vld [vmem:[%s169 + $0x960] sm:$0xff]
                %472 = vst [vmem:[%s170 + $0x4b0] sm:$0xff] %v471
                %v473 = vld [vmem:[%s169 + $0x970] sm:$0xff]
                %474 = vst [vmem:[%s170 + $0x4b8] sm:$0xff] %v473
                %v475 = vld [vmem:[%s169 + $0x980] sm:$0xff]
                %476 = vst [vmem:[%s170 + $0x4c0] sm:$0xff] %v475
                %v477 = vld [vmem:[%s169 + $0x990] sm:$0xff]
                %478 = vst [vmem:[%s170 + $0x4c8] sm:$0xff] %v477
                %v479 = vld [vmem:[%s169 + $0x9a0] sm:$0xff]
                %480 = vst [vmem:[%s170 + $0x4d0] sm:$0xff] %v479
                %v481 = vld [vmem:[%s169 + $0x9b0] sm:$0xff]
                %482 = vst [vmem:[%s170 + $0x4d8] sm:$0xff] %v481
                %v483 = vld [vmem:[%s169 + $0x9c0] sm:$0xff]
                %484 = vst [vmem:[%s170 + $0x4e0] sm:$0xff] %v483
                %v485 = vld [vmem:[%s169 + $0x9d0] sm:$0xff]
                %486 = vst [vmem:[%s170 + $0x4e8] sm:$0xff] %v485
                %v487 = vld [vmem:[%s169 + $0x9e0] sm:$0xff]
                %488 = vst [vmem:[%s170 + $0x4f0] sm:$0xff] %v487
                %v489 = vld [vmem:[%s169 + $0x9f0] sm:$0xff]
                %490 = vst [vmem:[%s170 + $0x4f8] sm:$0xff] %v489
                %v491 = vld [vmem:[%s169 + $0xa00] sm:$0xff]
                %492 = vst [vmem:[%s170 + $0x500] sm:$0xff] %v491
                %v493 = vld [vmem:[%s169 + $0xa10] sm:$0xff]
                %494 = vst [vmem:[%s170 + $0x508] sm:$0xff] %v493
                %v495 = vld [vmem:[%s169 + $0xa20] sm:$0xff]
                %496 = vst [vmem:[%s170 + $0x510] sm:$0xff] %v495
                %v497 = vld [vmem:[%s169 + $0xa30] sm:$0xff]
                %498 = vst [vmem:[%s170 + $0x518] sm:$0xff] %v497
                %v499 = vld [vmem:[%s169 + $0xa40] sm:$0xff]
                %500 = vst [vmem:[%s170 + $0x520] sm:$0xff] %v499
                %v501 = vld [vmem:[%s169 + $0xa50] sm:$0xff]
                %502 = vst [vmem:[%s170 + $0x528] sm:$0xff] %v501
                %v503 = vld [vmem:[%s169 + $0xa60] sm:$0xff]
                %504 = vst [vmem:[%s170 + $0x530] sm:$0xff] %v503
                %v505 = vld [vmem:[%s169 + $0xa70] sm:$0xff]
                %506 = vst [vmem:[%s170 + $0x538] sm:$0xff] %v505
                %v507 = vld [vmem:[%s169 + $0xa80] sm:$0xff]
                %508 = vst [vmem:[%s170 + $0x540] sm:$0xff] %v507
                %v509 = vld [vmem:[%s169 + $0xa90] sm:$0xff]
                %510 = vst [vmem:[%s170 + $0x548] sm:$0xff] %v509
                %v511 = vld [vmem:[%s169 + $0xaa0] sm:$0xff]
                %512 = vst [vmem:[%s170 + $0x550] sm:$0xff] %v511
                %v513 = vld [vmem:[%s169 + $0xab0] sm:$0xff]
                %514 = vst [vmem:[%s170 + $0x558] sm:$0xff] %v513
                %v515 = vld [vmem:[%s169 + $0xac0] sm:$0xff]
                %516 = vst [vmem:[%s170 + $0x560] sm:$0xff] %v515
                %v517 = vld [vmem:[%s169 + $0xad0] sm:$0xff]
                %518 = vst [vmem:[%s170 + $0x568] sm:$0xff] %v517
                %v519 = vld [vmem:[%s169 + $0xae0] sm:$0xff]
                %520 = vst [vmem:[%s170 + $0x570] sm:$0xff] %v519
                %v521 = vld [vmem:[%s169 + $0xaf0] sm:$0xff]
                %522 = vst [vmem:[%s170 + $0x578] sm:$0xff] %v521
                %v523 = vld [vmem:[%s169 + $0xb00] sm:$0xff]
                %524 = vst [vmem:[%s170 + $0x580] sm:$0xff] %v523
                %v525 = vld [vmem:[%s169 + $0xb10] sm:$0xff]
                %526 = vst [vmem:[%s170 + $0x588] sm:$0xff] %v525
                %v527 = vld [vmem:[%s169 + $0xb20] sm:$0xff]
                %528 = vst [vmem:[%s170 + $0x590] sm:$0xff] %v527
                %v529 = vld [vmem:[%s169 + $0xb30] sm:$0xff]
                %530 = vst [vmem:[%s170 + $0x598] sm:$0xff] %v529
                %v531 = vld [vmem:[%s169 + $0xb40] sm:$0xff]
                %532 = vst [vmem:[%s170 + $0x5a0] sm:$0xff] %v531
                %v533 = vld [vmem:[%s169 + $0xb50] sm:$0xff]
                %534 = vst [vmem:[%s170 + $0x5a8] sm:$0xff] %v533
                %v535 = vld [vmem:[%s169 + $0xb60] sm:$0xff]
                %536 = vst [vmem:[%s170 + $0x5b0] sm:$0xff] %v535
                %v537 = vld [vmem:[%s169 + $0xb70] sm:$0xff]
                %538 = vst [vmem:[%s170 + $0x5b8] sm:$0xff] %v537
                %v539 = vld [vmem:[%s169 + $0xb80] sm:$0xff]
                %540 = vst [vmem:[%s170 + $0x5c0] sm:$0xff] %v539
                %v541 = vld [vmem:[%s169 + $0xb90] sm:$0xff]
                %542 = vst [vmem:[%s170 + $0x5c8] sm:$0xff] %v541
                %v543 = vld [vmem:[%s169 + $0xba0] sm:$0xff]
                %544 = vst [vmem:[%s170 + $0x5d0] sm:$0xff] %v543
                %v545 = vld [vmem:[%s169 + $0xbb0] sm:$0xff]
                %546 = vst [vmem:[%s170 + $0x5d8] sm:$0xff] %v545
                %v547 = vld [vmem:[%s169 + $0xbc0] sm:$0xff]
                %548 = vst [vmem:[%s170 + $0x5e0] sm:$0xff] %v547
                %v549 = vld [vmem:[%s169 + $0xbd0] sm:$0xff]
                %550 = vst [vmem:[%s170 + $0x5e8] sm:$0xff] %v549
                %v551 = vld [vmem:[%s169 + $0xbe0] sm:$0xff]
                %552 = vst [vmem:[%s170 + $0x5f0] sm:$0xff] %v551
                %v553 = vld [vmem:[%s169 + $0xbf0] sm:$0xff]
                %554 = vst [vmem:[%s170 + $0x5f8] sm:$0xff] %v553
              $region41: #{relu_conv2d.1} parent=35 // loop_footer
                %s168 = sadd.s32 1, %s164
              $region42: #{relu_conv2d.1} parent=35 // loop_footer_branch
                %163 = sbr.rel target = $region38
              $region43: #{relu_conv2d.1} parent=35 // loop_exit
                _
            $region36: #{relu_conv2d.1} parent=27 // pred_fallthru
              _
          $region28: #{relu_conv2d.1} parent=23 // pred_fallthru
            _
          %951 = vnop
        $region24: #{relu_conv2d.1} parent=19 // pred_fallthru
          _
        // Predicated region
        $region59: #{relu_conv2d.1} parent=19 // pred_check
          %p952 = pneg %p90
        $region60: #{relu_conv2d.1} parent=19 // pred_check_branch
          %954 = sbr.rel (%p952) target = $region62
        $region61: #{relu_conv2d.1} parent=19 // pred_region
          %s955 = smul.u32 2, %s16
          %p956 = scmp.lt.s32.totalorder %s955, 3
          %s957 = scalar_select %p956, %s955, 3
          %s958 = scalar_lea.vmem %s2, %s957
          %s959 = smul.u32 2, %s16
        $region62: #{relu_conv2d.1} parent=19 // pred_fallthru
          _
      $region20: #{relu_conv2d.1} parent=5 // pred_fallthru
        _
      %p960 = scmp.le.s32.totalorder 1, %s9
      %p961 = scmp.lt.s32.totalorder %s9, 7
      %p962 = pnand %p960, %p961
      %p963 = pneg %p962
      // Predicated region
      $region63: #{relu_conv2d.1} parent=5 // pred_check
        _
      $region64: #{relu_conv2d.1} parent=5 // pred_check_branch
        %965 = sbr.rel (%p962) target = $region66
      $region65: #{relu_conv2d.1} parent=5 // pred_region
        %s966 = ssub.s32 %s9, 1
        %s967 = sand.u32 %s57, 1
        %s968 = sand.u32 %s57, 1
        %s969 = smul.addr %s968, 1536
        %s970 = scalar_lea.vmem [#allocation2], %s969
        // Predicated region
        $region67: #{relu_conv2d.1} parent=65 // pred_check
          %p971 = pneg %p70
        $region68: #{relu_conv2d.1} parent=65 // pred_check_branch
          %973 = sbr.rel (%p971) target = $region70
        $region69: #{relu_conv2d.1} parent=65 // pred_region
          _
        $region70: #{relu_conv2d.1} parent=65 // pred_fallthru
          _
        %p974 = pneg %p42
        %p975 = pneg %p39
        %s976 = sand.u32 %s57, 1
        %s977 = sand.u32 %s57, 1
        %s978 = smul.addr %s977, 1536
        %s979 = scalar_lea.vmem [#allocation2], %s978
        %p980 = pneg %p70
        %p981 = pneg %p67
        %s982 = smul.u32 2, %s18
        %p983 = scmp.lt.s32.totalorder %s982, 3
        %s984 = scalar_select %p983, %s982, 3
        %s985 = scalar_lea.vmem %s2, %s984
        %p986 = pneg %p96
        %p987 = pneg %p93
        %p988 = pneg %p122
        %p989 = pneg %p119
        %s990 = sand.u32 %s109, 1
        %s991 = sand.u32 %s109, 1
        %s992 = smul.addr %s991, 512
        %s993 = scalar_lea.vmem [#allocation3], %s992
        %s994 = smul.u32 2, %s18
        %s995 = smul.u32 2, %s18
        %p996 = scmp.lt.s32.totalorder %s995, 3
        %s997 = scalar_select %p996, %s995, 3
        %s998 = scalar_lea.vmem %s2, %s997
        %s999 = smul.u32 2, %s18
        %s1000 = smul.u32 2, %s18
        %p1001 = scmp.eq.s32.totalorder %s19, 0
        // Predicated region
        $region71: #{relu_conv2d.1} parent=65 // pred_check
          %p1002 = pneg %p1001
        $region72: #{relu_conv2d.1} parent=65 // pred_check_branch
          %1004 = sbr.rel (%p1002) target = $region74
        $region73: #{relu_conv2d.1} parent=65 // pred_region
          %v1005 = vld [vmem:[%s998] sm:$0x3]
          %v1007 = vlaneseq
          %v1008 = vshrl.u32 %v1007, 7
          %v1009 = vsub.s32 0, %v1008
          %v1010 = vrot.slane %v1005, %v1009
          %v1011 = vlaneseq
          %v1012 = vshrl.u32 %v1011, 7
          %v1013 = vsub.s32 1, %v1012
          %v1014 = vrot.slane %v1005, %v1013
          %1017 = vst [vmem:[%s993] sm:$0xff] %v1010
          %1018 = vst [vmem:[%s993 + $0x8] sm:$0xff] %v1014
          %1019 = vst [vmem:[%s993 + $0x10] sm:$0xff] %v1010
          %1020 = vst [vmem:[%s993 + $0x18] sm:$0xff] %v1014
          %1021 = vst [vmem:[%s993 + $0x20] sm:$0xff] %v1010
          %1022 = vst [vmem:[%s993 + $0x28] sm:$0xff] %v1014
          %1023 = vst [vmem:[%s993 + $0x30] sm:$0xff] %v1010
          %1024 = vst [vmem:[%s993 + $0x38] sm:$0xff] %v1014
          %1025 = vst [vmem:[%s993 + $0x40] sm:$0xff] %v1010
          %1026 = vst [vmem:[%s993 + $0x48] sm:$0xff] %v1014
          %1027 = vst [vmem:[%s993 + $0x50] sm:$0xff] %v1010
          %1028 = vst [vmem:[%s993 + $0x58] sm:$0xff] %v1014
          %1029 = vst [vmem:[%s993 + $0x60] sm:$0xff] %v1010
          %1030 = vst [vmem:[%s993 + $0x68] sm:$0xff] %v1014
          %1031 = vst [vmem:[%s993 + $0x70] sm:$0xff] %v1010
          %1032 = vst [vmem:[%s993 + $0x78] sm:$0xff] %v1014
          %1033 = vst [vmem:[%s993 + $0x80] sm:$0xff] %v1010
          %1034 = vst [vmem:[%s993 + $0x88] sm:$0xff] %v1014
          %1035 = vst [vmem:[%s993 + $0x90] sm:$0xff] %v1010
          %1036 = vst [vmem:[%s993 + $0x98] sm:$0xff] %v1014
          %1037 = vst [vmem:[%s993 + $0xa0] sm:$0xff] %v1010
          %1038 = vst [vmem:[%s993 + $0xa8] sm:$0xff] %v1014
          %1039 = vst [vmem:[%s993 + $0xb0] sm:$0xff] %v1010
          %1040 = vst [vmem:[%s993 + $0xb8] sm:$0xff] %v1014
          %1041 = vst [vmem:[%s993 + $0xc0] sm:$0xff] %v1010
          %1042 = vst [vmem:[%s993 + $0xc8] sm:$0xff] %v1014
          %1043 = vst [vmem:[%s993 + $0xd0] sm:$0xff] %v1010
          %1044 = vst [vmem:[%s993 + $0xd8] sm:$0xff] %v1014
          %1045 = vst [vmem:[%s993 + $0xe0] sm:$0xff] %v1010
          %1046 = vst [vmem:[%s993 + $0xe8] sm:$0xff] %v1014
          %1047 = vst [vmem:[%s993 + $0xf0] sm:$0xff] %v1010
          %1048 = vst [vmem:[%s993 + $0xf8] sm:$0xff] %v1014
          %1049 = vst [vmem:[%s993 + $0x100] sm:$0xff] %v1010
          %1050 = vst [vmem:[%s993 + $0x108] sm:$0xff] %v1014
          %1051 = vst [vmem:[%s993 + $0x110] sm:$0xff] %v1010
          %1052 = vst [vmem:[%s993 + $0x118] sm:$0xff] %v1014
          %1053 = vst [vmem:[%s993 + $0x120] sm:$0xff] %v1010
          %1054 = vst [vmem:[%s993 + $0x128] sm:$0xff] %v1014
          %1055 = vst [vmem:[%s993 + $0x130] sm:$0xff] %v1010
          %1056 = vst [vmem:[%s993 + $0x138] sm:$0xff] %v1014
          %1057 = vst [vmem:[%s993 + $0x140] sm:$0xff] %v1010
          %1058 = vst [vmem:[%s993 + $0x148] sm:$0xff] %v1014
          %1059 = vst [vmem:[%s993 + $0x150] sm:$0xff] %v1010
          %1060 = vst [vmem:[%s993 + $0x158] sm:$0xff] %v1014
          %1061 = vst [vmem:[%s993 + $0x160] sm:$0xff] %v1010
          %1062 = vst [vmem:[%s993 + $0x168] sm:$0xff] %v1014
          %1063 = vst [vmem:[%s993 + $0x170] sm:$0xff] %v1010
          %1064 = vst [vmem:[%s993 + $0x178] sm:$0xff] %v1014
          %1065 = vst [vmem:[%s993 + $0x180] sm:$0xff] %v1010
          %1066 = vst [vmem:[%s993 + $0x188] sm:$0xff] %v1014
          %1067 = vst [vmem:[%s993 + $0x190] sm:$0xff] %v1010
          %1068 = vst [vmem:[%s993 + $0x198] sm:$0xff] %v1014
          %1069 = vst [vmem:[%s993 + $0x1a0] sm:$0xff] %v1010
          %1070 = vst [vmem:[%s993 + $0x1a8] sm:$0xff] %v1014
          %1071 = vst [vmem:[%s993 + $0x1b0] sm:$0xff] %v1010
          %1072 = vst [vmem:[%s993 + $0x1b8] sm:$0xff] %v1014
          %1073 = vst [vmem:[%s993 + $0x1c0] sm:$0xff] %v1010
          %1074 = vst [vmem:[%s993 + $0x1c8] sm:$0xff] %v1014
          %1075 = vst [vmem:[%s993 + $0x1d0] sm:$0xff] %v1010
          %1076 = vst [vmem:[%s993 + $0x1d8] sm:$0xff] %v1014
          %1077 = vst [vmem:[%s993 + $0x1e0] sm:$0xff] %v1010
          %1078 = vst [vmem:[%s993 + $0x1e8] sm:$0xff] %v1014
          %1079 = vst [vmem:[%s993 + $0x1f0] sm:$0xff] %v1010
          %1080 = vst [vmem:[%s993 + $0x1f8] sm:$0xff] %v1014
        $region74: #{relu_conv2d.1} parent=65 // pred_fallthru
          _
        %s1081 = smul.u32 %s19, 16
        %s1082 = sshra.s32 %s1081, 3
        %s1083 = sand.u32 %s1081, 7
        %s1084 = smul.u32 %s1082, 12
        %s1085 = smul.addr %s1084, 4
        %s1086 = scalar_lea.vmem %s0, %s1085
        %v1087 = vld [vmem:[%s1086] sm:$0xff]
        %v1088 = vld [vmem:[%s1086 + $0x8] sm:$0xff]
        %v1089 = vld [vmem:[%s1086 + $0x10] sm:$0xff]
        %v1090 = vld [vmem:[%s1086 + $0x18] sm:$0xff]
        %v1091 = vld [vmem:[%s1086 + $0x20] sm:$0xff]
        %v1092 = vld [vmem:[%s1086 + $0x28] sm:$0xff]
        %v1093 = vld [vmem:[%s1086 + $0x30] sm:$0xff]
        %v1094 = vld [vmem:[%s1086 + $0x38] sm:$0xff]
        %v1095 = vld [vmem:[%s1086 + $0x40] sm:$0xff]
        %v1096 = vld [vmem:[%s1086 + $0x48] sm:$0xff]
        %v1097 = vld [vmem:[%s1086 + $0x50] sm:$0xff]
        %v1098 = vld [vmem:[%s1086 + $0x58] sm:$0xff]
        %v1099 = vld [vmem:[%s1086 + $0x60] sm:$0xff]
        %v1100 = vld [vmem:[%s1086 + $0x68] sm:$0xff]
        %v1101 = vld [vmem:[%s1086 + $0x70] sm:$0xff]
        %v1102 = vld [vmem:[%s1086 + $0x78] sm:$0xff]
        %v1103 = vld [vmem:[%s1086 + $0x80] sm:$0xff]
        %v1104 = vld [vmem:[%s1086 + $0x88] sm:$0xff]
        %v1105 = vld [vmem:[%s1086 + $0x90] sm:$0xff]
        %v1106 = vld [vmem:[%s1086 + $0x98] sm:$0xff]
        %v1107 = vld [vmem:[%s1086 + $0xa0] sm:$0xff]
        %v1108 = vld [vmem:[%s1086 + $0xa8] sm:$0xff]
        %v1109 = vld [vmem:[%s1086 + $0xb0] sm:$0xff]
        %v1110 = vld [vmem:[%s1086 + $0xb8] sm:$0xff]
        %v1111 = vld [vmem:[%s1086 + $0xc0] sm:$0xff]
        %v1112 = vld [vmem:[%s1086 + $0xc8] sm:$0xff]
        %v1113 = vld [vmem:[%s1086 + $0xd0] sm:$0xff]
        %v1114 = vld [vmem:[%s1086 + $0xd8] sm:$0xff]
        %v1115 = vld [vmem:[%s1086 + $0xe0] sm:$0xff]
        %v1116 = vld [vmem:[%s1086 + $0xe8] sm:$0xff]
        %v1117 = vld [vmem:[%s1086 + $0xf0] sm:$0xff]
        %v1118 = vld [vmem:[%s1086 + $0xf8] sm:$0xff]
        %v1119 = vld [vmem:[%s1086 + $0x100] sm:$0xff]
        %v1120 = vld [vmem:[%s1086 + $0x108] sm:$0xff]
        %v1121 = vld [vmem:[%s1086 + $0x110] sm:$0xff]
        %v1122 = vld [vmem:[%s1086 + $0x118] sm:$0xff]
        %v1123 = vld [vmem:[%s1086 + $0x120] sm:$0xff]
        %v1124 = vld [vmem:[%s1086 + $0x128] sm:$0xff]
        %v1125 = vld [vmem:[%s1086 + $0x130] sm:$0xff]
        %v1126 = vld [vmem:[%s1086 + $0x138] sm:$0xff]
        %v1127 = vld [vmem:[%s1086 + $0x140] sm:$0xff]
        %v1128 = vld [vmem:[%s1086 + $0x148] sm:$0xff]
        %v1129 = vld [vmem:[%s1086 + $0x150] sm:$0xff]
        %v1130 = vld [vmem:[%s1086 + $0x158] sm:$0xff]
        %v1131 = vld [vmem:[%s1086 + $0x160] sm:$0xff]
        %v1132 = vld [vmem:[%s1086 + $0x168] sm:$0xff]
        %v1133 = vld [vmem:[%s1086 + $0x170] sm:$0xff]
        %v1134 = vld [vmem:[%s1086 + $0x178] sm:$0xff]
        %v1135 = vld [vmem:[%s1086 + $0x180] sm:$0xff]
        %v1136 = vld [vmem:[%s1086 + $0x188] sm:$0xff]
        %v1137 = vld [vmem:[%s1086 + $0x190] sm:$0xff]
        %v1138 = vld [vmem:[%s1086 + $0x198] sm:$0xff]
        %v1139 = vld [vmem:[%s1086 + $0x1a0] sm:$0xff]
        %v1140 = vld [vmem:[%s1086 + $0x1a8] sm:$0xff]
        %v1141 = vld [vmem:[%s1086 + $0x1b0] sm:$0xff]
        %v1142 = vld [vmem:[%s1086 + $0x1b8] sm:$0xff]
        %v1143 = vld [vmem:[%s1086 + $0x1c0] sm:$0xff]
        %v1144 = vld [vmem:[%s1086 + $0x1c8] sm:$0xff]
        %v1145 = vld [vmem:[%s1086 + $0x1d0] sm:$0xff]
        %v1146 = vld [vmem:[%s1086 + $0x1d8] sm:$0xff]
        %v1147 = vld [vmem:[%s1086 + $0x1e0] sm:$0xff]
        %v1148 = vld [vmem:[%s1086 + $0x1e8] sm:$0xff]
        %v1149 = vld [vmem:[%s1086 + $0x1f0] sm:$0xff]
        %v1150 = vld [vmem:[%s1086 + $0x1f8] sm:$0xff]
        %v1151 = vld [vmem:[%s1086 + $0x200] sm:$0xff]
        %v1152 = vld [vmem:[%s1086 + $0x208] sm:$0xff]
        %v1153 = vld [vmem:[%s1086 + $0x210] sm:$0xff]
        %v1154 = vld [vmem:[%s1086 + $0x218] sm:$0xff]
        %v1155 = vld [vmem:[%s1086 + $0x220] sm:$0xff]
        %v1156 = vld [vmem:[%s1086 + $0x228] sm:$0xff]
        %v1157 = vld [vmem:[%s1086 + $0x230] sm:$0xff]
        %v1158 = vld [vmem:[%s1086 + $0x238] sm:$0xff]
        %v1159 = vld [vmem:[%s1086 + $0x240] sm:$0xff]
        %v1160 = vld [vmem:[%s1086 + $0x248] sm:$0xff]
        %v1161 = vld [vmem:[%s1086 + $0x250] sm:$0xff]
        %v1162 = vld [vmem:[%s1086 + $0x258] sm:$0xff]
        %v1163 = vld [vmem:[%s1086 + $0x260] sm:$0xff]
        %v1164 = vld [vmem:[%s1086 + $0x268] sm:$0xff]
        %v1165 = vld [vmem:[%s1086 + $0x270] sm:$0xff]
        %v1166 = vld [vmem:[%s1086 + $0x278] sm:$0xff]
        %v1167 = vld [vmem:[%s1086 + $0x280] sm:$0xff]
        %v1168 = vld [vmem:[%s1086 + $0x288] sm:$0xff]
        %v1169 = vld [vmem:[%s1086 + $0x290] sm:$0xff]
        %v1170 = vld [vmem:[%s1086 + $0x298] sm:$0xff]
        %v1171 = vld [vmem:[%s1086 + $0x2a0] sm:$0xff]
        %v1172 = vld [vmem:[%s1086 + $0x2a8] sm:$0xff]
        %v1173 = vld [vmem:[%s1086 + $0x2b0] sm:$0xff]
        %v1174 = vld [vmem:[%s1086 + $0x2b8] sm:$0xff]
        %v1175 = vld [vmem:[%s1086 + $0x2c0] sm:$0xff]
        %v1176 = vld [vmem:[%s1086 + $0x2c8] sm:$0xff]
        %v1177 = vld [vmem:[%s1086 + $0x2d0] sm:$0xff]
        %v1178 = vld [vmem:[%s1086 + $0x2d8] sm:$0xff]
        %v1179 = vld [vmem:[%s1086 + $0x2e0] sm:$0xff]
        %v1180 = vld [vmem:[%s1086 + $0x2e8] sm:$0xff]
        %v1181 = vld [vmem:[%s1086 + $0x2f0] sm:$0xff]
        %v1182 = vld [vmem:[%s1086 + $0x2f8] sm:$0xff]
        %v1183 = vld [vmem:[%s1086 + $0x300] sm:$0xff]
        %v1184 = vld [vmem:[%s1086 + $0x308] sm:$0xff]
        %v1185 = vld [vmem:[%s1086 + $0x310] sm:$0xff]
        %v1186 = vld [vmem:[%s1086 + $0x318] sm:$0xff]
        %v1187 = vld [vmem:[%s1086 + $0x320] sm:$0xff]
        %v1188 = vld [vmem:[%s1086 + $0x328] sm:$0xff]
        %v1189 = vld [vmem:[%s1086 + $0x330] sm:$0xff]
        %v1190 = vld [vmem:[%s1086 + $0x338] sm:$0xff]
        %v1191 = vld [vmem:[%s1086 + $0x340] sm:$0xff]
        %v1192 = vld [vmem:[%s1086 + $0x348] sm:$0xff]
        %v1193 = vld [vmem:[%s1086 + $0x350] sm:$0xff]
        %v1194 = vld [vmem:[%s1086 + $0x358] sm:$0xff]
        %v1195 = vld [vmem:[%s1086 + $0x360] sm:$0xff]
        %v1196 = vld [vmem:[%s1086 + $0x368] sm:$0xff]
        %v1197 = vld [vmem:[%s1086 + $0x370] sm:$0xff]
        %v1198 = vld [vmem:[%s1086 + $0x378] sm:$0xff]
        %v1199 = vld [vmem:[%s1086 + $0x380] sm:$0xff]
        %v1200 = vld [vmem:[%s1086 + $0x388] sm:$0xff]
        %v1201 = vld [vmem:[%s1086 + $0x390] sm:$0xff]
        %v1202 = vld [vmem:[%s1086 + $0x398] sm:$0xff]
        %v1203 = vld [vmem:[%s1086 + $0x3a0] sm:$0xff]
        %v1204 = vld [vmem:[%s1086 + $0x3a8] sm:$0xff]
        %v1205 = vld [vmem:[%s1086 + $0x3b0] sm:$0xff]
        %v1206 = vld [vmem:[%s1086 + $0x3b8] sm:$0xff]
        %v1207 = vld [vmem:[%s1086 + $0x3c0] sm:$0xff]
        %v1208 = vld [vmem:[%s1086 + $0x3c8] sm:$0xff]
        %v1209 = vld [vmem:[%s1086 + $0x3d0] sm:$0xff]
        %v1210 = vld [vmem:[%s1086 + $0x3d8] sm:$0xff]
        %v1211 = vld [vmem:[%s1086 + $0x3e0] sm:$0xff]
        %v1212 = vld [vmem:[%s1086 + $0x3e8] sm:$0xff]
        %v1213 = vld [vmem:[%s1086 + $0x3f0] sm:$0xff]
        %v1214 = vld [vmem:[%s1086 + $0x3f8] sm:$0xff]
        %v1215 = vld [vmem:[%s1086 + $0x400] sm:$0xff]
        %v1216 = vld [vmem:[%s1086 + $0x408] sm:$0xff]
        %v1217 = vld [vmem:[%s1086 + $0x410] sm:$0xff]
        %v1218 = vld [vmem:[%s1086 + $0x418] sm:$0xff]
        %v1219 = vld [vmem:[%s1086 + $0x420] sm:$0xff]
        %v1220 = vld [vmem:[%s1086 + $0x428] sm:$0xff]
        %v1221 = vld [vmem:[%s1086 + $0x430] sm:$0xff]
        %v1222 = vld [vmem:[%s1086 + $0x438] sm:$0xff]
        %v1223 = vld [vmem:[%s1086 + $0x440] sm:$0xff]
        %v1224 = vld [vmem:[%s1086 + $0x448] sm:$0xff]
        %v1225 = vld [vmem:[%s1086 + $0x450] sm:$0xff]
        %v1226 = vld [vmem:[%s1086 + $0x458] sm:$0xff]
        %v1227 = vld [vmem:[%s1086 + $0x460] sm:$0xff]
        %v1228 = vld [vmem:[%s1086 + $0x468] sm:$0xff]
        %v1229 = vld [vmem:[%s1086 + $0x470] sm:$0xff]
        %v1230 = vld [vmem:[%s1086 + $0x478] sm:$0xff]
        %v1231 = vld [vmem:[%s1086 + $0x480] sm:$0xff]
        %v1232 = vld [vmem:[%s1086 + $0x488] sm:$0xff]
        %v1233 = vld [vmem:[%s1086 + $0x490] sm:$0xff]
        %v1234 = vld [vmem:[%s1086 + $0x498] sm:$0xff]
        %v1235 = vld [vmem:[%s1086 + $0x4a0] sm:$0xff]
        %v1236 = vld [vmem:[%s1086 + $0x4a8] sm:$0xff]
        %v1237 = vld [vmem:[%s1086 + $0x4b0] sm:$0xff]
        %v1238 = vld [vmem:[%s1086 + $0x4b8] sm:$0xff]
        %v1239 = vld [vmem:[%s1086 + $0x4c0] sm:$0xff]
        %v1240 = vld [vmem:[%s1086 + $0x4c8] sm:$0xff]
        %v1241 = vld [vmem:[%s1086 + $0x4d0] sm:$0xff]
        %v1242 = vld [vmem:[%s1086 + $0x4d8] sm:$0xff]
        %v1243 = vld [vmem:[%s1086 + $0x4e0] sm:$0xff]
        %v1244 = vld [vmem:[%s1086 + $0x4e8] sm:$0xff]
        %v1245 = vld [vmem:[%s1086 + $0x4f0] sm:$0xff]
        %v1246 = vld [vmem:[%s1086 + $0x4f8] sm:$0xff]
        %v1247 = vld [vmem:[%s1086 + $0x500] sm:$0xff]
        %v1248 = vld [vmem:[%s1086 + $0x508] sm:$0xff]
        %v1249 = vld [vmem:[%s1086 + $0x510] sm:$0xff]
        %v1250 = vld [vmem:[%s1086 + $0x518] sm:$0xff]
        %v1251 = vld [vmem:[%s1086 + $0x520] sm:$0xff]
        %v1252 = vld [vmem:[%s1086 + $0x528] sm:$0xff]
        %v1253 = vld [vmem:[%s1086 + $0x530] sm:$0xff]
        %v1254 = vld [vmem:[%s1086 + $0x538] sm:$0xff]
        %v1255 = vld [vmem:[%s1086 + $0x540] sm:$0xff]
        %v1256 = vld [vmem:[%s1086 + $0x548] sm:$0xff]
        %v1257 = vld [vmem:[%s1086 + $0x550] sm:$0xff]
        %v1258 = vld [vmem:[%s1086 + $0x558] sm:$0xff]
        %v1259 = vld [vmem:[%s1086 + $0x560] sm:$0xff]
        %v1260 = vld [vmem:[%s1086 + $0x568] sm:$0xff]
        %v1261 = vld [vmem:[%s1086 + $0x570] sm:$0xff]
        %v1262 = vld [vmem:[%s1086 + $0x578] sm:$0xff]
        %v1263 = vld [vmem:[%s1086 + $0x580] sm:$0xff]
        %v1264 = vld [vmem:[%s1086 + $0x588] sm:$0xff]
        %v1265 = vld [vmem:[%s1086 + $0x590] sm:$0xff]
        %v1266 = vld [vmem:[%s1086 + $0x598] sm:$0xff]
        %v1267 = vld [vmem:[%s1086 + $0x5a0] sm:$0xff]
        %v1268 = vld [vmem:[%s1086 + $0x5a8] sm:$0xff]
        %v1269 = vld [vmem:[%s1086 + $0x5b0] sm:$0xff]
        %v1270 = vld [vmem:[%s1086 + $0x5b8] sm:$0xff]
        %v1271 = vld [vmem:[%s1086 + $0x5c0] sm:$0xff]
        %v1272 = vld [vmem:[%s1086 + $0x5c8] sm:$0xff]
        %v1273 = vld [vmem:[%s1086 + $0x5d0] sm:$0xff]
        %v1274 = vld [vmem:[%s1086 + $0x5d8] sm:$0xff]
        %v1275 = vld [vmem:[%s1086 + $0x5e0] sm:$0xff]
        %v1276 = vld [vmem:[%s1086 + $0x5e8] sm:$0xff]
        %v1277 = vld [vmem:[%s1086 + $0x5f0] sm:$0xff]
        %v1278 = vld [vmem:[%s1086 + $0x5f8] sm:$0xff]
        %v1279 = vld [vmem:[%s993] sm:$0xff]
        %v1280 = vld [vmem:[%s993 + $0x8] sm:$0xff]
        %v1281 = vld [vmem:[%s993 + $0x10] sm:$0xff]
        %v1282 = vld [vmem:[%s993 + $0x18] sm:$0xff]
        %v1283 = vld [vmem:[%s993 + $0x20] sm:$0xff]
        %v1284 = vld [vmem:[%s993 + $0x28] sm:$0xff]
        %v1285 = vld [vmem:[%s993 + $0x30] sm:$0xff]
        %v1286 = vld [vmem:[%s993 + $0x38] sm:$0xff]
        %v1287 = vld [vmem:[%s993 + $0x40] sm:$0xff]
        %v1288 = vld [vmem:[%s993 + $0x48] sm:$0xff]
        %v1289 = vld [vmem:[%s993 + $0x50] sm:$0xff]
        %v1290 = vld [vmem:[%s993 + $0x58] sm:$0xff]
        %v1291 = vld [vmem:[%s993 + $0x60] sm:$0xff]
        %v1292 = vld [vmem:[%s993 + $0x68] sm:$0xff]
        %v1293 = vld [vmem:[%s993 + $0x70] sm:$0xff]
        %v1294 = vld [vmem:[%s993 + $0x78] sm:$0xff]
        %v1295 = vld [vmem:[%s993 + $0x80] sm:$0xff]
        %v1296 = vld [vmem:[%s993 + $0x88] sm:$0xff]
        %v1297 = vld [vmem:[%s993 + $0x90] sm:$0xff]
        %v1298 = vld [vmem:[%s993 + $0x98] sm:$0xff]
        %v1299 = vld [vmem:[%s993 + $0xa0] sm:$0xff]
        %v1300 = vld [vmem:[%s993 + $0xa8] sm:$0xff]
        %v1301 = vld [vmem:[%s993 + $0xb0] sm:$0xff]
        %v1302 = vld [vmem:[%s993 + $0xb8] sm:$0xff]
        %v1303 = vld [vmem:[%s993 + $0xc0] sm:$0xff]
        %v1304 = vld [vmem:[%s993 + $0xc8] sm:$0xff]
        %v1305 = vld [vmem:[%s993 + $0xd0] sm:$0xff]
        %v1306 = vld [vmem:[%s993 + $0xd8] sm:$0xff]
        %v1307 = vld [vmem:[%s993 + $0xe0] sm:$0xff]
        %v1308 = vld [vmem:[%s993 + $0xe8] sm:$0xff]
        %v1309 = vld [vmem:[%s993 + $0xf0] sm:$0xff]
        %v1310 = vld [vmem:[%s993 + $0xf8] sm:$0xff]
        %v1311 = vld [vmem:[%s993 + $0x100] sm:$0xff]
        %v1312 = vld [vmem:[%s993 + $0x108] sm:$0xff]
        %v1313 = vld [vmem:[%s993 + $0x110] sm:$0xff]
        %v1314 = vld [vmem:[%s993 + $0x118] sm:$0xff]
        %v1315 = vld [vmem:[%s993 + $0x120] sm:$0xff]
        %v1316 = vld [vmem:[%s993 + $0x128] sm:$0xff]
        %v1317 = vld [vmem:[%s993 + $0x130] sm:$0xff]
        %v1318 = vld [vmem:[%s993 + $0x138] sm:$0xff]
        %v1319 = vld [vmem:[%s993 + $0x140] sm:$0xff]
        %v1320 = vld [vmem:[%s993 + $0x148] sm:$0xff]
        %v1321 = vld [vmem:[%s993 + $0x150] sm:$0xff]
        %v1322 = vld [vmem:[%s993 + $0x158] sm:$0xff]
        %v1323 = vld [vmem:[%s993 + $0x160] sm:$0xff]
        %v1324 = vld [vmem:[%s993 + $0x168] sm:$0xff]
        %v1325 = vld [vmem:[%s993 + $0x170] sm:$0xff]
        %v1326 = vld [vmem:[%s993 + $0x178] sm:$0xff]
        %v1327 = vld [vmem:[%s993 + $0x180] sm:$0xff]
        %v1328 = vld [vmem:[%s993 + $0x188] sm:$0xff]
        %v1329 = vld [vmem:[%s993 + $0x190] sm:$0xff]
        %v1330 = vld [vmem:[%s993 + $0x198] sm:$0xff]
        %v1331 = vld [vmem:[%s993 + $0x1a0] sm:$0xff]
        %v1332 = vld [vmem:[%s993 + $0x1a8] sm:$0xff]
        %v1333 = vld [vmem:[%s993 + $0x1b0] sm:$0xff]
        %v1334 = vld [vmem:[%s993 + $0x1b8] sm:$0xff]
        %v1335 = vld [vmem:[%s993 + $0x1c0] sm:$0xff]
        %v1336 = vld [vmem:[%s993 + $0x1c8] sm:$0xff]
        %v1337 = vld [vmem:[%s993 + $0x1d0] sm:$0xff]
        %v1338 = vld [vmem:[%s993 + $0x1d8] sm:$0xff]
        %v1339 = vld [vmem:[%s993 + $0x1e0] sm:$0xff]
        %v1340 = vld [vmem:[%s993 + $0x1e8] sm:$0xff]
        %v1341 = vld [vmem:[%s993 + $0x1f0] sm:$0xff]
        %v1342 = vld [vmem:[%s993 + $0x1f8] sm:$0xff]
        %v1343 = vld [vmem:[%s970] sm:$0xff]
        %v1344 = vld [vmem:[%s970 + $0x8] sm:$0xff]
        %v1345 = vld [vmem:[%s970 + $0x10] sm:$0xff]
        %v1346 = vld [vmem:[%s970 + $0x18] sm:$0xff]
        %v1347 = vld [vmem:[%s970 + $0x20] sm:$0xff]
        %v1348 = vld [vmem:[%s970 + $0x28] sm:$0xff]
        %v1349 = vld [vmem:[%s970 + $0x30] sm:$0xff]
        %v1350 = vld [vmem:[%s970 + $0x38] sm:$0xff]
        %v1351 = vld [vmem:[%s970 + $0x40] sm:$0xff]
        %v1352 = vld [vmem:[%s970 + $0x48] sm:$0xff]
        %v1353 = vld [vmem:[%s970 + $0x50] sm:$0xff]
        %v1354 = vld [vmem:[%s970 + $0x58] sm:$0xff]
        %v1355 = vld [vmem:[%s970 + $0x60] sm:$0xff]
        %v1356 = vld [vmem:[%s970 + $0x68] sm:$0xff]
        %v1357 = vld [vmem:[%s970 + $0x70] sm:$0xff]
        %v1358 = vld [vmem:[%s970 + $0x78] sm:$0xff]
        %v1359 = vld [vmem:[%s970 + $0x80] sm:$0xff]
        %v1360 = vld [vmem:[%s970 + $0x88] sm:$0xff]
        %v1361 = vld [vmem:[%s970 + $0x90] sm:$0xff]
        %v1362 = vld [vmem:[%s970 + $0x98] sm:$0xff]
        %v1363 = vld [vmem:[%s970 + $0xa0] sm:$0xff]
        %v1364 = vld [vmem:[%s970 + $0xa8] sm:$0xff]
        %v1365 = vld [vmem:[%s970 + $0xb0] sm:$0xff]
        %v1366 = vld [vmem:[%s970 + $0xb8] sm:$0xff]
        %v1367 = vld [vmem:[%s970 + $0xc0] sm:$0xff]
        %v1368 = vld [vmem:[%s970 + $0xc8] sm:$0xff]
        %v1369 = vld [vmem:[%s970 + $0xd0] sm:$0xff]
        %v1370 = vld [vmem:[%s970 + $0xd8] sm:$0xff]
        %v1371 = vld [vmem:[%s970 + $0xe0] sm:$0xff]
        %v1372 = vld [vmem:[%s970 + $0xe8] sm:$0xff]
        %v1373 = vld [vmem:[%s970 + $0xf0] sm:$0xff]
        %v1374 = vld [vmem:[%s970 + $0xf8] sm:$0xff]
        %v1375 = vld [vmem:[%s970 + $0x100] sm:$0xff]
        %v1376 = vld [vmem:[%s970 + $0x108] sm:$0xff]
        %v1377 = vld [vmem:[%s970 + $0x110] sm:$0xff]
        %v1378 = vld [vmem:[%s970 + $0x118] sm:$0xff]
        %v1379 = vld [vmem:[%s970 + $0x120] sm:$0xff]
        %v1380 = vld [vmem:[%s970 + $0x128] sm:$0xff]
        %v1381 = vld [vmem:[%s970 + $0x130] sm:$0xff]
        %v1382 = vld [vmem:[%s970 + $0x138] sm:$0xff]
        %v1383 = vld [vmem:[%s970 + $0x140] sm:$0xff]
        %v1384 = vld [vmem:[%s970 + $0x148] sm:$0xff]
        %v1385 = vld [vmem:[%s970 + $0x150] sm:$0xff]
        %v1386 = vld [vmem:[%s970 + $0x158] sm:$0xff]
        %v1387 = vld [vmem:[%s970 + $0x160] sm:$0xff]
        %v1388 = vld [vmem:[%s970 + $0x168] sm:$0xff]
        %v1389 = vld [vmem:[%s970 + $0x170] sm:$0xff]
        %v1390 = vld [vmem:[%s970 + $0x178] sm:$0xff]
        %v1391 = vld [vmem:[%s970 + $0x180] sm:$0xff]
        %v1392 = vld [vmem:[%s970 + $0x188] sm:$0xff]
        %v1393 = vld [vmem:[%s970 + $0x190] sm:$0xff]
        %v1394 = vld [vmem:[%s970 + $0x198] sm:$0xff]
        %v1395 = vld [vmem:[%s970 + $0x1a0] sm:$0xff]
        %v1396 = vld [vmem:[%s970 + $0x1a8] sm:$0xff]
        %v1397 = vld [vmem:[%s970 + $0x1b0] sm:$0xff]
        %v1398 = vld [vmem:[%s970 + $0x1b8] sm:$0xff]
        %v1399 = vld [vmem:[%s970 + $0x1c0] sm:$0xff]
        %v1400 = vld [vmem:[%s970 + $0x1c8] sm:$0xff]
        %v1401 = vld [vmem:[%s970 + $0x1d0] sm:$0xff]
        %v1402 = vld [vmem:[%s970 + $0x1d8] sm:$0xff]
        %v1403 = vld [vmem:[%s970 + $0x1e0] sm:$0xff]
        %v1404 = vld [vmem:[%s970 + $0x1e8] sm:$0xff]
        %v1405 = vld [vmem:[%s970 + $0x1f0] sm:$0xff]
        %v1406 = vld [vmem:[%s970 + $0x1f8] sm:$0xff]
        %v1407 = vld [vmem:[%s970 + $0x200] sm:$0xff]
        %v1408 = vld [vmem:[%s970 + $0x208] sm:$0xff]
        %v1409 = vld [vmem:[%s970 + $0x210] sm:$0xff]
        %v1410 = vld [vmem:[%s970 + $0x218] sm:$0xff]
        %v1411 = vld [vmem:[%s970 + $0x220] sm:$0xff]
        %v1412 = vld [vmem:[%s970 + $0x228] sm:$0xff]
        %v1413 = vld [vmem:[%s970 + $0x230] sm:$0xff]
        %v1414 = vld [vmem:[%s970 + $0x238] sm:$0xff]
        %v1415 = vld [vmem:[%s970 + $0x240] sm:$0xff]
        %v1416 = vld [vmem:[%s970 + $0x248] sm:$0xff]
        %v1417 = vld [vmem:[%s970 + $0x250] sm:$0xff]
        %v1418 = vld [vmem:[%s970 + $0x258] sm:$0xff]
        %v1419 = vld [vmem:[%s970 + $0x260] sm:$0xff]
        %v1420 = vld [vmem:[%s970 + $0x268] sm:$0xff]
        %v1421 = vld [vmem:[%s970 + $0x270] sm:$0xff]
        %v1422 = vld [vmem:[%s970 + $0x278] sm:$0xff]
        %v1423 = vld [vmem:[%s970 + $0x280] sm:$0xff]
        %v1424 = vld [vmem:[%s970 + $0x288] sm:$0xff]
        %v1425 = vld [vmem:[%s970 + $0x290] sm:$0xff]
        %v1426 = vld [vmem:[%s970 + $0x298] sm:$0xff]
        %v1427 = vld [vmem:[%s970 + $0x2a0] sm:$0xff]
        %v1428 = vld [vmem:[%s970 + $0x2a8] sm:$0xff]
        %v1429 = vld [vmem:[%s970 + $0x2b0] sm:$0xff]
        %v1430 = vld [vmem:[%s970 + $0x2b8] sm:$0xff]
        %v1431 = vld [vmem:[%s970 + $0x2c0] sm:$0xff]
        %v1432 = vld [vmem:[%s970 + $0x2c8] sm:$0xff]
        %v1433 = vld [vmem:[%s970 + $0x2d0] sm:$0xff]
        %v1434 = vld [vmem:[%s970 + $0x2d8] sm:$0xff]
        %v1435 = vld [vmem:[%s970 + $0x2e0] sm:$0xff]
        %v1436 = vld [vmem:[%s970 + $0x2e8] sm:$0xff]
        %v1437 = vld [vmem:[%s970 + $0x2f0] sm:$0xff]
        %v1438 = vld [vmem:[%s970 + $0x2f8] sm:$0xff]
        %v1439 = vld [vmem:[%s970 + $0x300] sm:$0xff]
        %v1440 = vld [vmem:[%s970 + $0x308] sm:$0xff]
        %v1441 = vld [vmem:[%s970 + $0x310] sm:$0xff]
        %v1442 = vld [vmem:[%s970 + $0x318] sm:$0xff]
        %v1443 = vld [vmem:[%s970 + $0x320] sm:$0xff]
        %v1444 = vld [vmem:[%s970 + $0x328] sm:$0xff]
        %v1445 = vld [vmem:[%s970 + $0x330] sm:$0xff]
        %v1446 = vld [vmem:[%s970 + $0x338] sm:$0xff]
        %v1447 = vld [vmem:[%s970 + $0x340] sm:$0xff]
        %v1448 = vld [vmem:[%s970 + $0x348] sm:$0xff]
        %v1449 = vld [vmem:[%s970 + $0x350] sm:$0xff]
        %v1450 = vld [vmem:[%s970 + $0x358] sm:$0xff]
        %v1451 = vld [vmem:[%s970 + $0x360] sm:$0xff]
        %v1452 = vld [vmem:[%s970 + $0x368] sm:$0xff]
        %v1453 = vld [vmem:[%s970 + $0x370] sm:$0xff]
        %v1454 = vld [vmem:[%s970 + $0x378] sm:$0xff]
        %v1455 = vld [vmem:[%s970 + $0x380] sm:$0xff]
        %v1456 = vld [vmem:[%s970 + $0x388] sm:$0xff]
        %v1457 = vld [vmem:[%s970 + $0x390] sm:$0xff]
        %v1458 = vld [vmem:[%s970 + $0x398] sm:$0xff]
        %v1459 = vld [vmem:[%s970 + $0x3a0] sm:$0xff]
        %v1460 = vld [vmem:[%s970 + $0x3a8] sm:$0xff]
        %v1461 = vld [vmem:[%s970 + $0x3b0] sm:$0xff]
        %v1462 = vld [vmem:[%s970 + $0x3b8] sm:$0xff]
        %v1463 = vld [vmem:[%s970 + $0x3c0] sm:$0xff]
        %v1464 = vld [vmem:[%s970 + $0x3c8] sm:$0xff]
        %v1465 = vld [vmem:[%s970 + $0x3d0] sm:$0xff]
        %v1466 = vld [vmem:[%s970 + $0x3d8] sm:$0xff]
        %v1467 = vld [vmem:[%s970 + $0x3e0] sm:$0xff]
        %v1468 = vld [vmem:[%s970 + $0x3e8] sm:$0xff]
        %v1469 = vld [vmem:[%s970 + $0x3f0] sm:$0xff]
        %v1470 = vld [vmem:[%s970 + $0x3f8] sm:$0xff]
        %v1471 = vld [vmem:[%s970 + $0x400] sm:$0xff]
        %v1472 = vld [vmem:[%s970 + $0x408] sm:$0xff]
        %v1473 = vld [vmem:[%s970 + $0x410] sm:$0xff]
        %v1474 = vld [vmem:[%s970 + $0x418] sm:$0xff]
        %v1475 = vld [vmem:[%s970 + $0x420] sm:$0xff]
        %v1476 = vld [vmem:[%s970 + $0x428] sm:$0xff]
        %v1477 = vld [vmem:[%s970 + $0x430] sm:$0xff]
        %v1478 = vld [vmem:[%s970 + $0x438] sm:$0xff]
        %v1479 = vld [vmem:[%s970 + $0x440] sm:$0xff]
        %v1480 = vld [vmem:[%s970 + $0x448] sm:$0xff]
        %v1481 = vld [vmem:[%s970 + $0x450] sm:$0xff]
        %v1482 = vld [vmem:[%s970 + $0x458] sm:$0xff]
        %v1483 = vld [vmem:[%s970 + $0x460] sm:$0xff]
        %v1484 = vld [vmem:[%s970 + $0x468] sm:$0xff]
        %v1485 = vld [vmem:[%s970 + $0x470] sm:$0xff]
        %v1486 = vld [vmem:[%s970 + $0x478] sm:$0xff]
        %v1487 = vld [vmem:[%s970 + $0x480] sm:$0xff]
        %v1488 = vld [vmem:[%s970 + $0x488] sm:$0xff]
        %v1489 = vld [vmem:[%s970 + $0x490] sm:$0xff]
        %v1490 = vld [vmem:[%s970 + $0x498] sm:$0xff]
        %v1491 = vld [vmem:[%s970 + $0x4a0] sm:$0xff]
        %v1492 = vld [vmem:[%s970 + $0x4a8] sm:$0xff]
        %v1493 = vld [vmem:[%s970 + $0x4b0] sm:$0xff]
        %v1494 = vld [vmem:[%s970 + $0x4b8] sm:$0xff]
        %v1495 = vld [vmem:[%s970 + $0x4c0] sm:$0xff]
        %v1496 = vld [vmem:[%s970 + $0x4c8] sm:$0xff]
        %v1497 = vld [vmem:[%s970 + $0x4d0] sm:$0xff]
        %v1498 = vld [vmem:[%s970 + $0x4d8] sm:$0xff]
        %v1499 = vld [vmem:[%s970 + $0x4e0] sm:$0xff]
        %v1500 = vld [vmem:[%s970 + $0x4e8] sm:$0xff]
        %v1501 = vld [vmem:[%s970 + $0x4f0] sm:$0xff]
        %v1502 = vld [vmem:[%s970 + $0x4f8] sm:$0xff]
        %v1503 = vld [vmem:[%s970 + $0x500] sm:$0xff]
        %v1504 = vld [vmem:[%s970 + $0x508] sm:$0xff]
        %v1505 = vld [vmem:[%s970 + $0x510] sm:$0xff]
        %v1506 = vld [vmem:[%s970 + $0x518] sm:$0xff]
        %v1507 = vld [vmem:[%s970 + $0x520] sm:$0xff]
        %v1508 = vld [vmem:[%s970 + $0x528] sm:$0xff]
        %v1509 = vld [vmem:[%s970 + $0x530] sm:$0xff]
        %v1510 = vld [vmem:[%s970 + $0x538] sm:$0xff]
        %v1511 = vld [vmem:[%s970 + $0x540] sm:$0xff]
        %v1512 = vld [vmem:[%s970 + $0x548] sm:$0xff]
        %v1513 = vld [vmem:[%s970 + $0x550] sm:$0xff]
        %v1514 = vld [vmem:[%s970 + $0x558] sm:$0xff]
        %v1515 = vld [vmem:[%s970 + $0x560] sm:$0xff]
        %v1516 = vld [vmem:[%s970 + $0x568] sm:$0xff]
        %v1517 = vld [vmem:[%s970 + $0x570] sm:$0xff]
        %v1518 = vld [vmem:[%s970 + $0x578] sm:$0xff]
        %v1519 = vld [vmem:[%s970 + $0x580] sm:$0xff]
        %v1520 = vld [vmem:[%s970 + $0x588] sm:$0xff]
        %v1521 = vld [vmem:[%s970 + $0x590] sm:$0xff]
        %v1522 = vld [vmem:[%s970 + $0x598] sm:$0xff]
        %v1523 = vld [vmem:[%s970 + $0x5a0] sm:$0xff]
        %v1524 = vld [vmem:[%s970 + $0x5a8] sm:$0xff]
        %v1525 = vld [vmem:[%s970 + $0x5b0] sm:$0xff]
        %v1526 = vld [vmem:[%s970 + $0x5b8] sm:$0xff]
        %v1527 = vld [vmem:[%s970 + $0x5c0] sm:$0xff]
        %v1528 = vld [vmem:[%s970 + $0x5c8] sm:$0xff]
        %v1529 = vld [vmem:[%s970 + $0x5d0] sm:$0xff]
        %v1530 = vld [vmem:[%s970 + $0x5d8] sm:$0xff]
        %v1531 = vld [vmem:[%s970 + $0x5e0] sm:$0xff]
        %v1532 = vld [vmem:[%s970 + $0x5e8] sm:$0xff]
        %v1533 = vld [vmem:[%s970 + $0x5f0] sm:$0xff]
        %v1534 = vld [vmem:[%s970 + $0x5f8] sm:$0xff]
        %v1727 = vunpack.c.l.b16 %v1087
        %v1728 = vunpack.c.h.b16 %v1087
        %v1729 = vunpack.c.l.b16 %v1088
        %v1730 = vunpack.c.h.b16 %v1088
        %v1731 = vunpack.c.l.b16 %v1089
        %v1732 = vunpack.c.h.b16 %v1089
        %v1733 = vunpack.c.l.b16 %v1090
        %v1734 = vunpack.c.h.b16 %v1090
        %v1735 = vunpack.c.l.b16 %v1091
        %v1736 = vunpack.c.h.b16 %v1091
        %v1737 = vunpack.c.l.b16 %v1092
        %v1738 = vunpack.c.h.b16 %v1092
        %v1739 = vunpack.c.l.b16 %v1093
        %v1740 = vunpack.c.h.b16 %v1093
        %v1741 = vunpack.c.l.b16 %v1094
        %v1742 = vunpack.c.h.b16 %v1094
        %v1743 = vunpack.c.l.b16 %v1095
        %v1744 = vunpack.c.h.b16 %v1095
        %v1745 = vunpack.c.l.b16 %v1096
        %v1746 = vunpack.c.h.b16 %v1096
        %v1747 = vunpack.c.l.b16 %v1097
        %v1748 = vunpack.c.h.b16 %v1097
        %v1749 = vunpack.c.l.b16 %v1098
        %v1750 = vunpack.c.h.b16 %v1098
        %v1751 = vunpack.c.l.b16 %v1099
        %v1752 = vunpack.c.h.b16 %v1099
        %v1753 = vunpack.c.l.b16 %v1100
        %v1754 = vunpack.c.h.b16 %v1100
        %v1755 = vunpack.c.l.b16 %v1101
        %v1756 = vunpack.c.h.b16 %v1101
        %v1757 = vunpack.c.l.b16 %v1102
        %v1758 = vunpack.c.h.b16 %v1102
        %v1759 = vunpack.c.l.b16 %v1103
        %v1760 = vunpack.c.h.b16 %v1103
        %v1761 = vunpack.c.l.b16 %v1104
        %v1762 = vunpack.c.h.b16 %v1104
        %v1763 = vunpack.c.l.b16 %v1105
        %v1764 = vunpack.c.h.b16 %v1105
        %v1765 = vunpack.c.l.b16 %v1106
        %v1766 = vunpack.c.h.b16 %v1106
        %v1767 = vunpack.c.l.b16 %v1107
        %v1768 = vunpack.c.h.b16 %v1107
        %v1769 = vunpack.c.l.b16 %v1108
        %v1770 = vunpack.c.h.b16 %v1108
        %v1771 = vunpack.c.l.b16 %v1109
        %v1772 = vunpack.c.h.b16 %v1109
        %v1773 = vunpack.c.l.b16 %v1110
        %v1774 = vunpack.c.h.b16 %v1110
        %v1775 = vunpack.c.l.b16 %v1111
        %v1776 = vunpack.c.h.b16 %v1111
        %v1777 = vunpack.c.l.b16 %v1112
        %v1778 = vunpack.c.h.b16 %v1112
        %v1779 = vunpack.c.l.b16 %v1113
        %v1780 = vunpack.c.h.b16 %v1113
        %v1781 = vunpack.c.l.b16 %v1114
        %v1782 = vunpack.c.h.b16 %v1114
        %v1783 = vunpack.c.l.b16 %v1115
        %v1784 = vunpack.c.h.b16 %v1115
        %v1785 = vunpack.c.l.b16 %v1116
        %v1786 = vunpack.c.h.b16 %v1116
        %v1787 = vunpack.c.l.b16 %v1117
        %v1788 = vunpack.c.h.b16 %v1117
        %v1789 = vunpack.c.l.b16 %v1118
        %v1790 = vunpack.c.h.b16 %v1118
        %v1791 = vunpack.c.l.b16 %v1119
        %v1792 = vunpack.c.h.b16 %v1119
        %v1793 = vunpack.c.l.b16 %v1120
        %v1794 = vunpack.c.h.b16 %v1120
        %v1795 = vunpack.c.l.b16 %v1121
        %v1796 = vunpack.c.h.b16 %v1121
        %v1797 = vunpack.c.l.b16 %v1122
        %v1798 = vunpack.c.h.b16 %v1122
        %v1799 = vunpack.c.l.b16 %v1123
        %v1800 = vunpack.c.h.b16 %v1123
        %v1801 = vunpack.c.l.b16 %v1124
        %v1802 = vunpack.c.h.b16 %v1124
        %v1803 = vunpack.c.l.b16 %v1125
        %v1804 = vunpack.c.h.b16 %v1125
        %v1805 = vunpack.c.l.b16 %v1126
        %v1806 = vunpack.c.h.b16 %v1126
        %v1807 = vunpack.c.l.b16 %v1127
        %v1808 = vunpack.c.h.b16 %v1127
        %v1809 = vunpack.c.l.b16 %v1128
        %v1810 = vunpack.c.h.b16 %v1128
        %v1811 = vunpack.c.l.b16 %v1129
        %v1812 = vunpack.c.h.b16 %v1129
        %v1813 = vunpack.c.l.b16 %v1130
        %v1814 = vunpack.c.h.b16 %v1130
        %v1815 = vunpack.c.l.b16 %v1131
        %v1816 = vunpack.c.h.b16 %v1131
        %v1817 = vunpack.c.l.b16 %v1132
        %v1818 = vunpack.c.h.b16 %v1132
        %v1819 = vunpack.c.l.b16 %v1133
        %v1820 = vunpack.c.h.b16 %v1133
        %v1821 = vunpack.c.l.b16 %v1134
        %v1822 = vunpack.c.h.b16 %v1134
        %v1823 = vunpack.c.l.b16 %v1135
        %v1824 = vunpack.c.h.b16 %v1135
        %v1825 = vunpack.c.l.b16 %v1136
        %v1826 = vunpack.c.h.b16 %v1136
        %v1827 = vunpack.c.l.b16 %v1137
        %v1828 = vunpack.c.h.b16 %v1137
        %v1829 = vunpack.c.l.b16 %v1138
        %v1830 = vunpack.c.h.b16 %v1138
        %v1831 = vunpack.c.l.b16 %v1139
        %v1832 = vunpack.c.h.b16 %v1139
        %v1833 = vunpack.c.l.b16 %v1140
        %v1834 = vunpack.c.h.b16 %v1140
        %v1835 = vunpack.c.l.b16 %v1141
        %v1836 = vunpack.c.h.b16 %v1141
        %v1837 = vunpack.c.l.b16 %v1142
        %v1838 = vunpack.c.h.b16 %v1142
        %v1839 = vunpack.c.l.b16 %v1143
        %v1840 = vunpack.c.h.b16 %v1143
        %v1841 = vunpack.c.l.b16 %v1144
        %v1842 = vunpack.c.h.b16 %v1144
        %v1843 = vunpack.c.l.b16 %v1145
        %v1844 = vunpack.c.h.b16 %v1145
        %v1845 = vunpack.c.l.b16 %v1146
        %v1846 = vunpack.c.h.b16 %v1146
        %v1847 = vunpack.c.l.b16 %v1147
        %v1848 = vunpack.c.h.b16 %v1147
        %v1849 = vunpack.c.l.b16 %v1148
        %v1850 = vunpack.c.h.b16 %v1148
        %v1851 = vunpack.c.l.b16 %v1149
        %v1852 = vunpack.c.h.b16 %v1149
        %v1853 = vunpack.c.l.b16 %v1150
        %v1854 = vunpack.c.h.b16 %v1150
        %v1855 = vunpack.c.l.b16 %v1151
        %v1856 = vunpack.c.h.b16 %v1151
        %v1857 = vunpack.c.l.b16 %v1152
        %v1858 = vunpack.c.h.b16 %v1152
        %v1859 = vunpack.c.l.b16 %v1153
        %v1860 = vunpack.c.h.b16 %v1153
        %v1861 = vunpack.c.l.b16 %v1154
        %v1862 = vunpack.c.h.b16 %v1154
        %v1863 = vunpack.c.l.b16 %v1155
        %v1864 = vunpack.c.h.b16 %v1155
        %v1865 = vunpack.c.l.b16 %v1156
        %v1866 = vunpack.c.h.b16 %v1156
        %v1867 = vunpack.c.l.b16 %v1157
        %v1868 = vunpack.c.h.b16 %v1157
        %v1869 = vunpack.c.l.b16 %v1158
        %v1870 = vunpack.c.h.b16 %v1158
        %v1871 = vunpack.c.l.b16 %v1159
        %v1872 = vunpack.c.h.b16 %v1159
        %v1873 = vunpack.c.l.b16 %v1160
        %v1874 = vunpack.c.h.b16 %v1160
        %v1875 = vunpack.c.l.b16 %v1161
        %v1876 = vunpack.c.h.b16 %v1161
        %v1877 = vunpack.c.l.b16 %v1162
        %v1878 = vunpack.c.h.b16 %v1162
        %v1879 = vunpack.c.l.b16 %v1163
        %v1880 = vunpack.c.h.b16 %v1163
        %v1881 = vunpack.c.l.b16 %v1164
        %v1882 = vunpack.c.h.b16 %v1164
        %v1883 = vunpack.c.l.b16 %v1165
        %v1884 = vunpack.c.h.b16 %v1165
        %v1885 = vunpack.c.l.b16 %v1166
        %v1886 = vunpack.c.h.b16 %v1166
        %v1887 = vunpack.c.l.b16 %v1167
        %v1888 = vunpack.c.h.b16 %v1167
        %v1889 = vunpack.c.l.b16 %v1168
        %v1890 = vunpack.c.h.b16 %v1168
        %v1891 = vunpack.c.l.b16 %v1169
        %v1892 = vunpack.c.h.b16 %v1169
        %v1893 = vunpack.c.l.b16 %v1170
        %v1894 = vunpack.c.h.b16 %v1170
        %v1895 = vunpack.c.l.b16 %v1171
        %v1896 = vunpack.c.h.b16 %v1171
        %v1897 = vunpack.c.l.b16 %v1172
        %v1898 = vunpack.c.h.b16 %v1172
        %v1899 = vunpack.c.l.b16 %v1173
        %v1900 = vunpack.c.h.b16 %v1173
        %v1901 = vunpack.c.l.b16 %v1174
        %v1902 = vunpack.c.h.b16 %v1174
        %v1903 = vunpack.c.l.b16 %v1175
        %v1904 = vunpack.c.h.b16 %v1175
        %v1905 = vunpack.c.l.b16 %v1176
        %v1906 = vunpack.c.h.b16 %v1176
        %v1907 = vunpack.c.l.b16 %v1177
        %v1908 = vunpack.c.h.b16 %v1177
        %v1909 = vunpack.c.l.b16 %v1178
        %v1910 = vunpack.c.h.b16 %v1178
        %v1911 = vunpack.c.l.b16 %v1179
        %v1912 = vunpack.c.h.b16 %v1179
        %v1913 = vunpack.c.l.b16 %v1180
        %v1914 = vunpack.c.h.b16 %v1180
        %v1915 = vunpack.c.l.b16 %v1181
        %v1916 = vunpack.c.h.b16 %v1181
        %v1917 = vunpack.c.l.b16 %v1182
        %v1918 = vunpack.c.h.b16 %v1182
        %v1919 = vunpack.c.l.b16 %v1183
        %v1920 = vunpack.c.h.b16 %v1183
        %v1921 = vunpack.c.l.b16 %v1184
        %v1922 = vunpack.c.h.b16 %v1184
        %v1923 = vunpack.c.l.b16 %v1185
        %v1924 = vunpack.c.h.b16 %v1185
        %v1925 = vunpack.c.l.b16 %v1186
        %v1926 = vunpack.c.h.b16 %v1186
        %v1927 = vunpack.c.l.b16 %v1187
        %v1928 = vunpack.c.h.b16 %v1187
        %v1929 = vunpack.c.l.b16 %v1188
        %v1930 = vunpack.c.h.b16 %v1188
        %v1931 = vunpack.c.l.b16 %v1189
        %v1932 = vunpack.c.h.b16 %v1189
        %v1933 = vunpack.c.l.b16 %v1190
        %v1934 = vunpack.c.h.b16 %v1190
        %v1935 = vunpack.c.l.b16 %v1191
        %v1936 = vunpack.c.h.b16 %v1191
        %v1937 = vunpack.c.l.b16 %v1192
        %v1938 = vunpack.c.h.b16 %v1192
        %v1939 = vunpack.c.l.b16 %v1193
        %v1940 = vunpack.c.h.b16 %v1193
        %v1941 = vunpack.c.l.b16 %v1194
        %v1942 = vunpack.c.h.b16 %v1194
        %v1943 = vunpack.c.l.b16 %v1195
        %v1944 = vunpack.c.h.b16 %v1195
        %v1945 = vunpack.c.l.b16 %v1196
        %v1946 = vunpack.c.h.b16 %v1196
        %v1947 = vunpack.c.l.b16 %v1197
        %v1948 = vunpack.c.h.b16 %v1197
        %v1949 = vunpack.c.l.b16 %v1198
        %v1950 = vunpack.c.h.b16 %v1198
        %v1951 = vunpack.c.l.b16 %v1199
        %v1952 = vunpack.c.h.b16 %v1199
        %v1953 = vunpack.c.l.b16 %v1200
        %v1954 = vunpack.c.h.b16 %v1200
        %v1955 = vunpack.c.l.b16 %v1201
        %v1956 = vunpack.c.h.b16 %v1201
        %v1957 = vunpack.c.l.b16 %v1202
        %v1958 = vunpack.c.h.b16 %v1202
        %v1959 = vunpack.c.l.b16 %v1203
        %v1960 = vunpack.c.h.b16 %v1203
        %v1961 = vunpack.c.l.b16 %v1204
        %v1962 = vunpack.c.h.b16 %v1204
        %v1963 = vunpack.c.l.b16 %v1205
        %v1964 = vunpack.c.h.b16 %v1205
        %v1965 = vunpack.c.l.b16 %v1206
        %v1966 = vunpack.c.h.b16 %v1206
        %v1967 = vunpack.c.l.b16 %v1207
        %v1968 = vunpack.c.h.b16 %v1207
        %v1969 = vunpack.c.l.b16 %v1208
        %v1970 = vunpack.c.h.b16 %v1208
        %v1971 = vunpack.c.l.b16 %v1209
        %v1972 = vunpack.c.h.b16 %v1209
        %v1973 = vunpack.c.l.b16 %v1210
        %v1974 = vunpack.c.h.b16 %v1210
        %v1975 = vunpack.c.l.b16 %v1211
        %v1976 = vunpack.c.h.b16 %v1211
        %v1977 = vunpack.c.l.b16 %v1212
        %v1978 = vunpack.c.h.b16 %v1212
        %v1979 = vunpack.c.l.b16 %v1213
        %v1980 = vunpack.c.h.b16 %v1213
        %v1981 = vunpack.c.l.b16 %v1214
        %v1982 = vunpack.c.h.b16 %v1214
        %v1983 = vunpack.c.l.b16 %v1215
        %v1984 = vunpack.c.h.b16 %v1215
        %v1985 = vunpack.c.l.b16 %v1216
        %v1986 = vunpack.c.h.b16 %v1216
        %v1987 = vunpack.c.l.b16 %v1217
        %v1988 = vunpack.c.h.b16 %v1217
        %v1989 = vunpack.c.l.b16 %v1218
        %v1990 = vunpack.c.h.b16 %v1218
        %v1991 = vunpack.c.l.b16 %v1219
        %v1992 = vunpack.c.h.b16 %v1219
        %v1993 = vunpack.c.l.b16 %v1220
        %v1994 = vunpack.c.h.b16 %v1220
        %v1995 = vunpack.c.l.b16 %v1221
        %v1996 = vunpack.c.h.b16 %v1221
        %v1997 = vunpack.c.l.b16 %v1222
        %v1998 = vunpack.c.h.b16 %v1222
        %v1999 = vunpack.c.l.b16 %v1223
        %v2000 = vunpack.c.h.b16 %v1223
        %v2001 = vunpack.c.l.b16 %v1224
        %v2002 = vunpack.c.h.b16 %v1224
        %v2003 = vunpack.c.l.b16 %v1225
        %v2004 = vunpack.c.h.b16 %v1225
        %v2005 = vunpack.c.l.b16 %v1226
        %v2006 = vunpack.c.h.b16 %v1226
        %v2007 = vunpack.c.l.b16 %v1227
        %v2008 = vunpack.c.h.b16 %v1227
        %v2009 = vunpack.c.l.b16 %v1228
        %v2010 = vunpack.c.h.b16 %v1228
        %v2011 = vunpack.c.l.b16 %v1229
        %v2012 = vunpack.c.h.b16 %v1229
        %v2013 = vunpack.c.l.b16 %v1230
        %v2014 = vunpack.c.h.b16 %v1230
        %v2015 = vunpack.c.l.b16 %v1231
        %v2016 = vunpack.c.h.b16 %v1231
        %v2017 = vunpack.c.l.b16 %v1232
        %v2018 = vunpack.c.h.b16 %v1232
        %v2019 = vunpack.c.l.b16 %v1233
        %v2020 = vunpack.c.h.b16 %v1233
        %v2021 = vunpack.c.l.b16 %v1234
        %v2022 = vunpack.c.h.b16 %v1234
        %v2023 = vunpack.c.l.b16 %v1235
        %v2024 = vunpack.c.h.b16 %v1235
        %v2025 = vunpack.c.l.b16 %v1236
        %v2026 = vunpack.c.h.b16 %v1236
        %v2027 = vunpack.c.l.b16 %v1237
        %v2028 = vunpack.c.h.b16 %v1237
        %v2029 = vunpack.c.l.b16 %v1238
        %v2030 = vunpack.c.h.b16 %v1238
        %v2031 = vunpack.c.l.b16 %v1239
        %v2032 = vunpack.c.h.b16 %v1239
        %v2033 = vunpack.c.l.b16 %v1240
        %v2034 = vunpack.c.h.b16 %v1240
        %v2035 = vunpack.c.l.b16 %v1241
        %v2036 = vunpack.c.h.b16 %v1241
        %v2037 = vunpack.c.l.b16 %v1242
        %v2038 = vunpack.c.h.b16 %v1242
        %v2039 = vunpack.c.l.b16 %v1243
        %v2040 = vunpack.c.h.b16 %v1243
        %v2041 = vunpack.c.l.b16 %v1244
        %v2042 = vunpack.c.h.b16 %v1244
        %v2043 = vunpack.c.l.b16 %v1245
        %v2044 = vunpack.c.h.b16 %v1245
        %v2045 = vunpack.c.l.b16 %v1246
        %v2046 = vunpack.c.h.b16 %v1246
        %v2047 = vunpack.c.l.b16 %v1247
        %v2048 = vunpack.c.h.b16 %v1247
        %v2049 = vunpack.c.l.b16 %v1248
        %v2050 = vunpack.c.h.b16 %v1248
        %v2051 = vunpack.c.l.b16 %v1249
        %v2052 = vunpack.c.h.b16 %v1249
        %v2053 = vunpack.c.l.b16 %v1250
        %v2054 = vunpack.c.h.b16 %v1250
        %v2055 = vunpack.c.l.b16 %v1251
        %v2056 = vunpack.c.h.b16 %v1251
        %v2057 = vunpack.c.l.b16 %v1252
        %v2058 = vunpack.c.h.b16 %v1252
        %v2059 = vunpack.c.l.b16 %v1253
        %v2060 = vunpack.c.h.b16 %v1253
        %v2061 = vunpack.c.l.b16 %v1254
        %v2062 = vunpack.c.h.b16 %v1254
        %v2063 = vunpack.c.l.b16 %v1255
        %v2064 = vunpack.c.h.b16 %v1255
        %v2065 = vunpack.c.l.b16 %v1256
        %v2066 = vunpack.c.h.b16 %v1256
        %v2067 = vunpack.c.l.b16 %v1257
        %v2068 = vunpack.c.h.b16 %v1257
        %v2069 = vunpack.c.l.b16 %v1258
        %v2070 = vunpack.c.h.b16 %v1258
        %v2071 = vunpack.c.l.b16 %v1259
        %v2072 = vunpack.c.h.b16 %v1259
        %v2073 = vunpack.c.l.b16 %v1260
        %v2074 = vunpack.c.h.b16 %v1260
        %v2075 = vunpack.c.l.b16 %v1261
        %v2076 = vunpack.c.h.b16 %v1261
        %v2077 = vunpack.c.l.b16 %v1262
        %v2078 = vunpack.c.h.b16 %v1262
        %v2079 = vunpack.c.l.b16 %v1263
        %v2080 = vunpack.c.h.b16 %v1263
        %v2081 = vunpack.c.l.b16 %v1264
        %v2082 = vunpack.c.h.b16 %v1264
        %v2083 = vunpack.c.l.b16 %v1265
        %v2084 = vunpack.c.h.b16 %v1265
        %v2085 = vunpack.c.l.b16 %v1266
        %v2086 = vunpack.c.h.b16 %v1266
        %v2087 = vunpack.c.l.b16 %v1267
        %v2088 = vunpack.c.h.b16 %v1267
        %v2089 = vunpack.c.l.b16 %v1268
        %v2090 = vunpack.c.h.b16 %v1268
        %v2091 = vunpack.c.l.b16 %v1269
        %v2092 = vunpack.c.h.b16 %v1269
        %v2093 = vunpack.c.l.b16 %v1270
        %v2094 = vunpack.c.h.b16 %v1270
        %v2095 = vunpack.c.l.b16 %v1271
        %v2096 = vunpack.c.h.b16 %v1271
        %v2097 = vunpack.c.l.b16 %v1272
        %v2098 = vunpack.c.h.b16 %v1272
        %v2099 = vunpack.c.l.b16 %v1273
        %v2100 = vunpack.c.h.b16 %v1273
        %v2101 = vunpack.c.l.b16 %v1274
        %v2102 = vunpack.c.h.b16 %v1274
        %v2103 = vunpack.c.l.b16 %v1275
        %v2104 = vunpack.c.h.b16 %v1275
        %v2105 = vunpack.c.l.b16 %v1276
        %v2106 = vunpack.c.h.b16 %v1276
        %v2107 = vunpack.c.l.b16 %v1277
        %v2108 = vunpack.c.h.b16 %v1277
        %v2109 = vunpack.c.l.b16 %v1278
        %v2110 = vunpack.c.h.b16 %v1278
        %v2111 = vpack.c.b16 %v1739, %v1727
        %v2112 = vpack.c.b16 %v1740, %v1728
        %v2113 = vpack.c.b16 %v1741, %v1729
        %v2114 = vpack.c.b16 %v1742, %v1730
        %v2115 = vpack.c.b16 %v1743, %v1731
        %v2116 = vpack.c.b16 %v1744, %v1732
        %v2117 = vpack.c.b16 %v1745, %v1733
        %v2118 = vpack.c.b16 %v1746, %v1734
        %v2119 = vpack.c.b16 %v1747, %v1735
        %v2120 = vpack.c.b16 %v1748, %v1736
        %v2121 = vpack.c.b16 %v1749, %v1737
        %v2122 = vpack.c.b16 %v1750, %v1738
        %v2123 = vpack.c.b16 %v1763, %v1751
        %v2124 = vpack.c.b16 %v1764, %v1752
        %v2125 = vpack.c.b16 %v1765, %v1753
        %v2126 = vpack.c.b16 %v1766, %v1754
        %v2127 = vpack.c.b16 %v1767, %v1755
        %v2128 = vpack.c.b16 %v1768, %v1756
        %v2129 = vpack.c.b16 %v1769, %v1757
        %v2130 = vpack.c.b16 %v1770, %v1758
        %v2131 = vpack.c.b16 %v1771, %v1759
        %v2132 = vpack.c.b16 %v1772, %v1760
        %v2133 = vpack.c.b16 %v1773, %v1761
        %v2134 = vpack.c.b16 %v1774, %v1762
        %v2135 = vpack.c.b16 %v1787, %v1775
        %v2136 = vpack.c.b16 %v1788, %v1776
        %v2137 = vpack.c.b16 %v1789, %v1777
        %v2138 = vpack.c.b16 %v1790, %v1778
        %v2139 = vpack.c.b16 %v1791, %v1779
        %v2140 = vpack.c.b16 %v1792, %v1780
        %v2141 = vpack.c.b16 %v1793, %v1781
        %v2142 = vpack.c.b16 %v1794, %v1782
        %v2143 = vpack.c.b16 %v1795, %v1783
        %v2144 = vpack.c.b16 %v1796, %v1784
        %v2145 = vpack.c.b16 %v1797, %v1785
        %v2146 = vpack.c.b16 %v1798, %v1786
        %v2147 = vpack.c.b16 %v1811, %v1799
        %v2148 = vpack.c.b16 %v1812, %v1800
        %v2149 = vpack.c.b16 %v1813, %v1801
        %v2150 = vpack.c.b16 %v1814, %v1802
        %v2151 = vpack.c.b16 %v1815, %v1803
        %v2152 = vpack.c.b16 %v1816, %v1804
        %v2153 = vpack.c.b16 %v1817, %v1805
        %v2154 = vpack.c.b16 %v1818, %v1806
        %v2155 = vpack.c.b16 %v1819, %v1807
        %v2156 = vpack.c.b16 %v1820, %v1808
        %v2157 = vpack.c.b16 %v1821, %v1809
        %v2158 = vpack.c.b16 %v1822, %v1810
        %v2159 = vpack.c.b16 %v1835, %v1823
        %v2160 = vpack.c.b16 %v1836, %v1824
        %v2161 = vpack.c.b16 %v1837, %v1825
        %v2162 = vpack.c.b16 %v1838, %v1826
        %v2163 = vpack.c.b16 %v1839, %v1827
        %v2164 = vpack.c.b16 %v1840, %v1828
        %v2165 = vpack.c.b16 %v1841, %v1829
        %v2166 = vpack.c.b16 %v1842, %v1830
        %v2167 = vpack.c.b16 %v1843, %v1831
        %v2168 = vpack.c.b16 %v1844, %v1832
        %v2169 = vpack.c.b16 %v1845, %v1833
        %v2170 = vpack.c.b16 %v1846, %v1834
        %v2171 = vpack.c.b16 %v1859, %v1847
        %v2172 = vpack.c.b16 %v1860, %v1848
        %v2173 = vpack.c.b16 %v1861, %v1849
        %v2174 = vpack.c.b16 %v1862, %v1850
        %v2175 = vpack.c.b16 %v1863, %v1851
        %v2176 = vpack.c.b16 %v1864, %v1852
        %v2177 = vpack.c.b16 %v1865, %v1853
        %v2178 = vpack.c.b16 %v1866, %v1854
        %v2179 = vpack.c.b16 %v1867, %v1855
        %v2180 = vpack.c.b16 %v1868, %v1856
        %v2181 = vpack.c.b16 %v1869, %v1857
        %v2182 = vpack.c.b16 %v1870, %v1858
        %v2183 = vpack.c.b16 %v1883, %v1871
        %v2184 = vpack.c.b16 %v1884, %v1872
        %v2185 = vpack.c.b16 %v1885, %v1873
        %v2186 = vpack.c.b16 %v1886, %v1874
        %v2187 = vpack.c.b16 %v1887, %v1875
        %v2188 = vpack.c.b16 %v1888, %v1876
        %v2189 = vpack.c.b16 %v1889, %v1877
        %v2190 = vpack.c.b16 %v1890, %v1878
        %v2191 = vpack.c.b16 %v1891, %v1879
        %v2192 = vpack.c.b16 %v1892, %v1880
        %v2193 = vpack.c.b16 %v1893, %v1881
        %v2194 = vpack.c.b16 %v1894, %v1882
        %v2195 = vpack.c.b16 %v1907, %v1895
        %v2196 = vpack.c.b16 %v1908, %v1896
        %v2197 = vpack.c.b16 %v1909, %v1897
        %v2198 = vpack.c.b16 %v1910, %v1898
        %v2199 = vpack.c.b16 %v1911, %v1899
        %v2200 = vpack.c.b16 %v1912, %v1900
        %v2201 = vpack.c.b16 %v1913, %v1901
        %v2202 = vpack.c.b16 %v1914, %v1902
        %v2203 = vpack.c.b16 %v1915, %v1903
        %v2204 = vpack.c.b16 %v1916, %v1904
        %v2205 = vpack.c.b16 %v1917, %v1905
        %v2206 = vpack.c.b16 %v1918, %v1906
        %v2207 = vpack.c.b16 %v1931, %v1919
        %v2208 = vpack.c.b16 %v1932, %v1920
        %v2209 = vpack.c.b16 %v1933, %v1921
        %v2210 = vpack.c.b16 %v1934, %v1922
        %v2211 = vpack.c.b16 %v1935, %v1923
        %v2212 = vpack.c.b16 %v1936, %v1924
        %v2213 = vpack.c.b16 %v1937, %v1925
        %v2214 = vpack.c.b16 %v1938, %v1926
        %v2215 = vpack.c.b16 %v1939, %v1927
        %v2216 = vpack.c.b16 %v1940, %v1928
        %v2217 = vpack.c.b16 %v1941, %v1929
        %v2218 = vpack.c.b16 %v1942, %v1930
        %v2219 = vpack.c.b16 %v1955, %v1943
        %v2220 = vpack.c.b16 %v1956, %v1944
        %v2221 = vpack.c.b16 %v1957, %v1945
        %v2222 = vpack.c.b16 %v1958, %v1946
        %v2223 = vpack.c.b16 %v1959, %v1947
        %v2224 = vpack.c.b16 %v1960, %v1948
        %v2225 = vpack.c.b16 %v1961, %v1949
        %v2226 = vpack.c.b16 %v1962, %v1950
        %v2227 = vpack.c.b16 %v1963, %v1951
        %v2228 = vpack.c.b16 %v1964, %v1952
        %v2229 = vpack.c.b16 %v1965, %v1953
        %v2230 = vpack.c.b16 %v1966, %v1954
        %v2231 = vpack.c.b16 %v1979, %v1967
        %v2232 = vpack.c.b16 %v1980, %v1968
        %v2233 = vpack.c.b16 %v1981, %v1969
        %v2234 = vpack.c.b16 %v1982, %v1970
        %v2235 = vpack.c.b16 %v1983, %v1971
        %v2236 = vpack.c.b16 %v1984, %v1972
        %v2237 = vpack.c.b16 %v1985, %v1973
        %v2238 = vpack.c.b16 %v1986, %v1974
        %v2239 = vpack.c.b16 %v1987, %v1975
        %v2240 = vpack.c.b16 %v1988, %v1976
        %v2241 = vpack.c.b16 %v1989, %v1977
        %v2242 = vpack.c.b16 %v1990, %v1978
        %v2243 = vpack.c.b16 %v2003, %v1991
        %v2244 = vpack.c.b16 %v2004, %v1992
        %v2245 = vpack.c.b16 %v2005, %v1993
        %v2246 = vpack.c.b16 %v2006, %v1994
        %v2247 = vpack.c.b16 %v2007, %v1995
        %v2248 = vpack.c.b16 %v2008, %v1996
        %v2249 = vpack.c.b16 %v2009, %v1997
        %v2250 = vpack.c.b16 %v2010, %v1998
        %v2251 = vpack.c.b16 %v2011, %v1999
        %v2252 = vpack.c.b16 %v2012, %v2000
        %v2253 = vpack.c.b16 %v2013, %v2001
        %v2254 = vpack.c.b16 %v2014, %v2002
        %v2255 = vpack.c.b16 %v2027, %v2015
        %v2256 = vpack.c.b16 %v2028, %v2016
        %v2257 = vpack.c.b16 %v2029, %v2017
        %v2258 = vpack.c.b16 %v2030, %v2018
        %v2259 = vpack.c.b16 %v2031, %v2019
        %v2260 = vpack.c.b16 %v2032, %v2020
        %v2261 = vpack.c.b16 %v2033, %v2021
        %v2262 = vpack.c.b16 %v2034, %v2022
        %v2263 = vpack.c.b16 %v2035, %v2023
        %v2264 = vpack.c.b16 %v2036, %v2024
        %v2265 = vpack.c.b16 %v2037, %v2025
        %v2266 = vpack.c.b16 %v2038, %v2026
        %v2267 = vpack.c.b16 %v2051, %v2039
        %v2268 = vpack.c.b16 %v2052, %v2040
        %v2269 = vpack.c.b16 %v2053, %v2041
        %v2270 = vpack.c.b16 %v2054, %v2042
        %v2271 = vpack.c.b16 %v2055, %v2043
        %v2272 = vpack.c.b16 %v2056, %v2044
        %v2273 = vpack.c.b16 %v2057, %v2045
        %v2274 = vpack.c.b16 %v2058, %v2046
        %v2275 = vpack.c.b16 %v2059, %v2047
        %v2276 = vpack.c.b16 %v2060, %v2048
        %v2277 = vpack.c.b16 %v2061, %v2049
        %v2278 = vpack.c.b16 %v2062, %v2050
        %v2279 = vpack.c.b16 %v2075, %v2063
        %v2280 = vpack.c.b16 %v2076, %v2064
        %v2281 = vpack.c.b16 %v2077, %v2065
        %v2282 = vpack.c.b16 %v2078, %v2066
        %v2283 = vpack.c.b16 %v2079, %v2067
        %v2284 = vpack.c.b16 %v2080, %v2068
        %v2285 = vpack.c.b16 %v2081, %v2069
        %v2286 = vpack.c.b16 %v2082, %v2070
        %v2287 = vpack.c.b16 %v2083, %v2071
        %v2288 = vpack.c.b16 %v2084, %v2072
        %v2289 = vpack.c.b16 %v2085, %v2073
        %v2290 = vpack.c.b16 %v2086, %v2074
        %v2291 = vpack.c.b16 %v2099, %v2087
        %v2292 = vpack.c.b16 %v2100, %v2088
        %v2293 = vpack.c.b16 %v2101, %v2089
        %v2294 = vpack.c.b16 %v2102, %v2090
        %v2295 = vpack.c.b16 %v2103, %v2091
        %v2296 = vpack.c.b16 %v2104, %v2092
        %v2297 = vpack.c.b16 %v2105, %v2093
        %v2298 = vpack.c.b16 %v2106, %v2094
        %v2299 = vpack.c.b16 %v2107, %v2095
        %v2300 = vpack.c.b16 %v2108, %v2096
        %v2301 = vpack.c.b16 %v2109, %v2097
        %v2302 = vpack.c.b16 %v2110, %v2098
        %v2687 = vunpack.c.l.b16 %v1343
        %v2688 = vunpack.c.h.b16 %v1343
        %v2689 = vunpack.c.l.b16 %v1344
        %v2690 = vunpack.c.h.b16 %v1344
        %v2691 = vunpack.c.l.b16 %v1345
        %v2692 = vunpack.c.h.b16 %v1345
        %v2693 = vunpack.c.l.b16 %v1346
        %v2694 = vunpack.c.h.b16 %v1346
        %v2695 = vunpack.c.l.b16 %v1347
        %v2696 = vunpack.c.h.b16 %v1347
        %v2697 = vunpack.c.l.b16 %v1348
        %v2698 = vunpack.c.h.b16 %v1348
        %v2699 = vunpack.c.l.b16 %v1349
        %v2700 = vunpack.c.h.b16 %v1349
        %v2701 = vunpack.c.l.b16 %v1350
        %v2702 = vunpack.c.h.b16 %v1350
        %v2703 = vunpack.c.l.b16 %v1351
        %v2704 = vunpack.c.h.b16 %v1351
        %v2705 = vunpack.c.l.b16 %v1352
        %v2706 = vunpack.c.h.b16 %v1352
        %v2707 = vunpack.c.l.b16 %v1353
        %v2708 = vunpack.c.h.b16 %v1353
        %v2709 = vunpack.c.l.b16 %v1354
        %v2710 = vunpack.c.h.b16 %v1354
        %v2711 = vunpack.c.l.b16 %v1355
        %v2712 = vunpack.c.h.b16 %v1355
        %v2713 = vunpack.c.l.b16 %v1356
        %v2714 = vunpack.c.h.b16 %v1356
        %v2715 = vunpack.c.l.b16 %v1357
        %v2716 = vunpack.c.h.b16 %v1357
        %v2717 = vunpack.c.l.b16 %v1358
        %v2718 = vunpack.c.h.b16 %v1358
        %v2719 = vunpack.c.l.b16 %v1359
        %v2720 = vunpack.c.h.b16 %v1359
        %v2721 = vunpack.c.l.b16 %v1360
        %v2722 = vunpack.c.h.b16 %v1360
        %v2723 = vunpack.c.l.b16 %v1361
        %v2724 = vunpack.c.h.b16 %v1361
        %v2725 = vunpack.c.l.b16 %v1362
        %v2726 = vunpack.c.h.b16 %v1362
        %v2727 = vunpack.c.l.b16 %v1363
        %v2728 = vunpack.c.h.b16 %v1363
        %v2729 = vunpack.c.l.b16 %v1364
        %v2730 = vunpack.c.h.b16 %v1364
        %v2731 = vunpack.c.l.b16 %v1365
        %v2732 = vunpack.c.h.b16 %v1365
        %v2733 = vunpack.c.l.b16 %v1366
        %v2734 = vunpack.c.h.b16 %v1366
        %v2735 = vunpack.c.l.b16 %v1367
        %v2736 = vunpack.c.h.b16 %v1367
        %v2737 = vunpack.c.l.b16 %v1368
        %v2738 = vunpack.c.h.b16 %v1368
        %v2739 = vunpack.c.l.b16 %v1369
        %v2740 = vunpack.c.h.b16 %v1369
        %v2741 = vunpack.c.l.b16 %v1370
        %v2742 = vunpack.c.h.b16 %v1370
        %v2743 = vunpack.c.l.b16 %v1371
        %v2744 = vunpack.c.h.b16 %v1371
        %v2745 = vunpack.c.l.b16 %v1372
        %v2746 = vunpack.c.h.b16 %v1372
        %v2747 = vunpack.c.l.b16 %v1373
        %v2748 = vunpack.c.h.b16 %v1373
        %v2749 = vunpack.c.l.b16 %v1374
        %v2750 = vunpack.c.h.b16 %v1374
        %v2751 = vunpack.c.l.b16 %v1375
        %v2752 = vunpack.c.h.b16 %v1375
        %v2753 = vunpack.c.l.b16 %v1376
        %v2754 = vunpack.c.h.b16 %v1376
        %v2755 = vunpack.c.l.b16 %v1377
        %v2756 = vunpack.c.h.b16 %v1377
        %v2757 = vunpack.c.l.b16 %v1378
        %v2758 = vunpack.c.h.b16 %v1378
        %v2759 = vunpack.c.l.b16 %v1379
        %v2760 = vunpack.c.h.b16 %v1379
        %v2761 = vunpack.c.l.b16 %v1380
        %v2762 = vunpack.c.h.b16 %v1380
        %v2763 = vunpack.c.l.b16 %v1381
        %v2764 = vunpack.c.h.b16 %v1381
        %v2765 = vunpack.c.l.b16 %v1382
        %v2766 = vunpack.c.h.b16 %v1382
        %v2767 = vunpack.c.l.b16 %v1383
        %v2768 = vunpack.c.h.b16 %v1383
        %v2769 = vunpack.c.l.b16 %v1384
        %v2770 = vunpack.c.h.b16 %v1384
        %v2771 = vunpack.c.l.b16 %v1385
        %v2772 = vunpack.c.h.b16 %v1385
        %v2773 = vunpack.c.l.b16 %v1386
        %v2774 = vunpack.c.h.b16 %v1386
        %v2775 = vunpack.c.l.b16 %v1387
        %v2776 = vunpack.c.h.b16 %v1387
        %v2777 = vunpack.c.l.b16 %v1388
        %v2778 = vunpack.c.h.b16 %v1388
        %v2779 = vunpack.c.l.b16 %v1389
        %v2780 = vunpack.c.h.b16 %v1389
        %v2781 = vunpack.c.l.b16 %v1390
        %v2782 = vunpack.c.h.b16 %v1390
        %v2783 = vunpack.c.l.b16 %v1391
        %v2784 = vunpack.c.h.b16 %v1391
        %v2785 = vunpack.c.l.b16 %v1392
        %v2786 = vunpack.c.h.b16 %v1392
        %v2787 = vunpack.c.l.b16 %v1393
        %v2788 = vunpack.c.h.b16 %v1393
        %v2789 = vunpack.c.l.b16 %v1394
        %v2790 = vunpack.c.h.b16 %v1394
        %v2791 = vunpack.c.l.b16 %v1395
        %v2792 = vunpack.c.h.b16 %v1395
        %v2793 = vunpack.c.l.b16 %v1396
        %v2794 = vunpack.c.h.b16 %v1396
        %v2795 = vunpack.c.l.b16 %v1397
        %v2796 = vunpack.c.h.b16 %v1397
        %v2797 = vunpack.c.l.b16 %v1398
        %v2798 = vunpack.c.h.b16 %v1398
        %v2799 = vunpack.c.l.b16 %v1399
        %v2800 = vunpack.c.h.b16 %v1399
        %v2801 = vunpack.c.l.b16 %v1400
        %v2802 = vunpack.c.h.b16 %v1400
        %v2803 = vunpack.c.l.b16 %v1401
        %v2804 = vunpack.c.h.b16 %v1401
        %v2805 = vunpack.c.l.b16 %v1402
        %v2806 = vunpack.c.h.b16 %v1402
        %v2807 = vunpack.c.l.b16 %v1403
        %v2808 = vunpack.c.h.b16 %v1403
        %v2809 = vunpack.c.l.b16 %v1404
        %v2810 = vunpack.c.h.b16 %v1404
        %v2811 = vunpack.c.l.b16 %v1405
        %v2812 = vunpack.c.h.b16 %v1405
        %v2813 = vunpack.c.l.b16 %v1406
        %v2814 = vunpack.c.h.b16 %v1406
        %v2815 = vunpack.c.l.b16 %v1407
        %v2816 = vunpack.c.h.b16 %v1407
        %v2817 = vunpack.c.l.b16 %v1408
        %v2818 = vunpack.c.h.b16 %v1408
        %v2819 = vunpack.c.l.b16 %v1409
        %v2820 = vunpack.c.h.b16 %v1409
        %v2821 = vunpack.c.l.b16 %v1410
        %v2822 = vunpack.c.h.b16 %v1410
        %v2823 = vunpack.c.l.b16 %v1411
        %v2824 = vunpack.c.h.b16 %v1411
        %v2825 = vunpack.c.l.b16 %v1412
        %v2826 = vunpack.c.h.b16 %v1412
        %v2827 = vunpack.c.l.b16 %v1413
        %v2828 = vunpack.c.h.b16 %v1413
        %v2829 = vunpack.c.l.b16 %v1414
        %v2830 = vunpack.c.h.b16 %v1414
        %v2831 = vunpack.c.l.b16 %v1415
        %v2832 = vunpack.c.h.b16 %v1415
        %v2833 = vunpack.c.l.b16 %v1416
        %v2834 = vunpack.c.h.b16 %v1416
        %v2835 = vunpack.c.l.b16 %v1417
        %v2836 = vunpack.c.h.b16 %v1417
        %v2837 = vunpack.c.l.b16 %v1418
        %v2838 = vunpack.c.h.b16 %v1418
        %v2839 = vunpack.c.l.b16 %v1419
        %v2840 = vunpack.c.h.b16 %v1419
        %v2841 = vunpack.c.l.b16 %v1420
        %v2842 = vunpack.c.h.b16 %v1420
        %v2843 = vunpack.c.l.b16 %v1421
        %v2844 = vunpack.c.h.b16 %v1421
        %v2845 = vunpack.c.l.b16 %v1422
        %v2846 = vunpack.c.h.b16 %v1422
        %v2847 = vunpack.c.l.b16 %v1423
        %v2848 = vunpack.c.h.b16 %v1423
        %v2849 = vunpack.c.l.b16 %v1424
        %v2850 = vunpack.c.h.b16 %v1424
        %v2851 = vunpack.c.l.b16 %v1425
        %v2852 = vunpack.c.h.b16 %v1425
        %v2853 = vunpack.c.l.b16 %v1426
        %v2854 = vunpack.c.h.b16 %v1426
        %v2855 = vunpack.c.l.b16 %v1427
        %v2856 = vunpack.c.h.b16 %v1427
        %v2857 = vunpack.c.l.b16 %v1428
        %v2858 = vunpack.c.h.b16 %v1428
        %v2859 = vunpack.c.l.b16 %v1429
        %v2860 = vunpack.c.h.b16 %v1429
        %v2861 = vunpack.c.l.b16 %v1430
        %v2862 = vunpack.c.h.b16 %v1430
        %v2863 = vunpack.c.l.b16 %v1431
        %v2864 = vunpack.c.h.b16 %v1431
        %v2865 = vunpack.c.l.b16 %v1432
        %v2866 = vunpack.c.h.b16 %v1432
        %v2867 = vunpack.c.l.b16 %v1433
        %v2868 = vunpack.c.h.b16 %v1433
        %v2869 = vunpack.c.l.b16 %v1434
        %v2870 = vunpack.c.h.b16 %v1434
        %v2871 = vunpack.c.l.b16 %v1435
        %v2872 = vunpack.c.h.b16 %v1435
        %v2873 = vunpack.c.l.b16 %v1436
        %v2874 = vunpack.c.h.b16 %v1436
        %v2875 = vunpack.c.l.b16 %v1437
        %v2876 = vunpack.c.h.b16 %v1437
        %v2877 = vunpack.c.l.b16 %v1438
        %v2878 = vunpack.c.h.b16 %v1438
        %v2879 = vunpack.c.l.b16 %v1439
        %v2880 = vunpack.c.h.b16 %v1439
        %v2881 = vunpack.c.l.b16 %v1440
        %v2882 = vunpack.c.h.b16 %v1440
        %v2883 = vunpack.c.l.b16 %v1441
        %v2884 = vunpack.c.h.b16 %v1441
        %v2885 = vunpack.c.l.b16 %v1442
        %v2886 = vunpack.c.h.b16 %v1442
        %v2887 = vunpack.c.l.b16 %v1443
        %v2888 = vunpack.c.h.b16 %v1443
        %v2889 = vunpack.c.l.b16 %v1444
        %v2890 = vunpack.c.h.b16 %v1444
        %v2891 = vunpack.c.l.b16 %v1445
        %v2892 = vunpack.c.h.b16 %v1445
        %v2893 = vunpack.c.l.b16 %v1446
        %v2894 = vunpack.c.h.b16 %v1446
        %v2895 = vunpack.c.l.b16 %v1447
        %v2896 = vunpack.c.h.b16 %v1447
        %v2897 = vunpack.c.l.b16 %v1448
        %v2898 = vunpack.c.h.b16 %v1448
        %v2899 = vunpack.c.l.b16 %v1449
        %v2900 = vunpack.c.h.b16 %v1449
        %v2901 = vunpack.c.l.b16 %v1450
        %v2902 = vunpack.c.h.b16 %v1450
        %v2903 = vunpack.c.l.b16 %v1451
        %v2904 = vunpack.c.h.b16 %v1451
        %v2905 = vunpack.c.l.b16 %v1452
        %v2906 = vunpack.c.h.b16 %v1452
        %v2907 = vunpack.c.l.b16 %v1453
        %v2908 = vunpack.c.h.b16 %v1453
        %v2909 = vunpack.c.l.b16 %v1454
        %v2910 = vunpack.c.h.b16 %v1454
        %v2911 = vunpack.c.l.b16 %v1455
        %v2912 = vunpack.c.h.b16 %v1455
        %v2913 = vunpack.c.l.b16 %v1456
        %v2914 = vunpack.c.h.b16 %v1456
        %v2915 = vunpack.c.l.b16 %v1457
        %v2916 = vunpack.c.h.b16 %v1457
        %v2917 = vunpack.c.l.b16 %v1458
        %v2918 = vunpack.c.h.b16 %v1458
        %v2919 = vunpack.c.l.b16 %v1459
        %v2920 = vunpack.c.h.b16 %v1459
        %v2921 = vunpack.c.l.b16 %v1460
        %v2922 = vunpack.c.h.b16 %v1460
        %v2923 = vunpack.c.l.b16 %v1461
        %v2924 = vunpack.c.h.b16 %v1461
        %v2925 = vunpack.c.l.b16 %v1462
        %v2926 = vunpack.c.h.b16 %v1462
        %v2927 = vunpack.c.l.b16 %v1463
        %v2928 = vunpack.c.h.b16 %v1463
        %v2929 = vunpack.c.l.b16 %v1464
        %v2930 = vunpack.c.h.b16 %v1464
        %v2931 = vunpack.c.l.b16 %v1465
        %v2932 = vunpack.c.h.b16 %v1465
        %v2933 = vunpack.c.l.b16 %v1466
        %v2934 = vunpack.c.h.b16 %v1466
        %v2935 = vunpack.c.l.b16 %v1467
        %v2936 = vunpack.c.h.b16 %v1467
        %v2937 = vunpack.c.l.b16 %v1468
        %v2938 = vunpack.c.h.b16 %v1468
        %v2939 = vunpack.c.l.b16 %v1469
        %v2940 = vunpack.c.h.b16 %v1469
        %v2941 = vunpack.c.l.b16 %v1470
        %v2942 = vunpack.c.h.b16 %v1470
        %v2943 = vunpack.c.l.b16 %v1471
        %v2944 = vunpack.c.h.b16 %v1471
        %v2945 = vunpack.c.l.b16 %v1472
        %v2946 = vunpack.c.h.b16 %v1472
        %v2947 = vunpack.c.l.b16 %v1473
        %v2948 = vunpack.c.h.b16 %v1473
        %v2949 = vunpack.c.l.b16 %v1474
        %v2950 = vunpack.c.h.b16 %v1474
        %v2951 = vunpack.c.l.b16 %v1475
        %v2952 = vunpack.c.h.b16 %v1475
        %v2953 = vunpack.c.l.b16 %v1476
        %v2954 = vunpack.c.h.b16 %v1476
        %v2955 = vunpack.c.l.b16 %v1477
        %v2956 = vunpack.c.h.b16 %v1477
        %v2957 = vunpack.c.l.b16 %v1478
        %v2958 = vunpack.c.h.b16 %v1478
        %v2959 = vunpack.c.l.b16 %v1479
        %v2960 = vunpack.c.h.b16 %v1479
        %v2961 = vunpack.c.l.b16 %v1480
        %v2962 = vunpack.c.h.b16 %v1480
        %v2963 = vunpack.c.l.b16 %v1481
        %v2964 = vunpack.c.h.b16 %v1481
        %v2965 = vunpack.c.l.b16 %v1482
        %v2966 = vunpack.c.h.b16 %v1482
        %v2967 = vunpack.c.l.b16 %v1483
        %v2968 = vunpack.c.h.b16 %v1483
        %v2969 = vunpack.c.l.b16 %v1484
        %v2970 = vunpack.c.h.b16 %v1484
        %v2971 = vunpack.c.l.b16 %v1485
        %v2972 = vunpack.c.h.b16 %v1485
        %v2973 = vunpack.c.l.b16 %v1486
        %v2974 = vunpack.c.h.b16 %v1486
        %v2975 = vunpack.c.l.b16 %v1487
        %v2976 = vunpack.c.h.b16 %v1487
        %v2977 = vunpack.c.l.b16 %v1488
        %v2978 = vunpack.c.h.b16 %v1488
        %v2979 = vunpack.c.l.b16 %v1489
        %v2980 = vunpack.c.h.b16 %v1489
        %v2981 = vunpack.c.l.b16 %v1490
        %v2982 = vunpack.c.h.b16 %v1490
        %v2983 = vunpack.c.l.b16 %v1491
        %v2984 = vunpack.c.h.b16 %v1491
        %v2985 = vunpack.c.l.b16 %v1492
        %v2986 = vunpack.c.h.b16 %v1492
        %v2987 = vunpack.c.l.b16 %v1493
        %v2988 = vunpack.c.h.b16 %v1493
        %v2989 = vunpack.c.l.b16 %v1494
        %v2990 = vunpack.c.h.b16 %v1494
        %v2991 = vunpack.c.l.b16 %v1495
        %v2992 = vunpack.c.h.b16 %v1495
        %v2993 = vunpack.c.l.b16 %v1496
        %v2994 = vunpack.c.h.b16 %v1496
        %v2995 = vunpack.c.l.b16 %v1497
        %v2996 = vunpack.c.h.b16 %v1497
        %v2997 = vunpack.c.l.b16 %v1498
        %v2998 = vunpack.c.h.b16 %v1498
        %v2999 = vunpack.c.l.b16 %v1499
        %v3000 = vunpack.c.h.b16 %v1499
        %v3001 = vunpack.c.l.b16 %v1500
        %v3002 = vunpack.c.h.b16 %v1500
        %v3003 = vunpack.c.l.b16 %v1501
        %v3004 = vunpack.c.h.b16 %v1501
        %v3005 = vunpack.c.l.b16 %v1502
        %v3006 = vunpack.c.h.b16 %v1502
        %v3007 = vunpack.c.l.b16 %v1503
        %v3008 = vunpack.c.h.b16 %v1503
        %v3009 = vunpack.c.l.b16 %v1504
        %v3010 = vunpack.c.h.b16 %v1504
        %v3011 = vunpack.c.l.b16 %v1505
        %v3012 = vunpack.c.h.b16 %v1505
        %v3013 = vunpack.c.l.b16 %v1506
        %v3014 = vunpack.c.h.b16 %v1506
        %v3015 = vunpack.c.l.b16 %v1507
        %v3016 = vunpack.c.h.b16 %v1507
        %v3017 = vunpack.c.l.b16 %v1508
        %v3018 = vunpack.c.h.b16 %v1508
        %v3019 = vunpack.c.l.b16 %v1509
        %v3020 = vunpack.c.h.b16 %v1509
        %v3021 = vunpack.c.l.b16 %v1510
        %v3022 = vunpack.c.h.b16 %v1510
        %v3023 = vunpack.c.l.b16 %v1511
        %v3024 = vunpack.c.h.b16 %v1511
        %v3025 = vunpack.c.l.b16 %v1512
        %v3026 = vunpack.c.h.b16 %v1512
        %v3027 = vunpack.c.l.b16 %v1513
        %v3028 = vunpack.c.h.b16 %v1513
        %v3029 = vunpack.c.l.b16 %v1514
        %v3030 = vunpack.c.h.b16 %v1514
        %v3031 = vunpack.c.l.b16 %v1515
        %v3032 = vunpack.c.h.b16 %v1515
        %v3033 = vunpack.c.l.b16 %v1516
        %v3034 = vunpack.c.h.b16 %v1516
        %v3035 = vunpack.c.l.b16 %v1517
        %v3036 = vunpack.c.h.b16 %v1517
        %v3037 = vunpack.c.l.b16 %v1518
        %v3038 = vunpack.c.h.b16 %v1518
        %v3039 = vunpack.c.l.b16 %v1519
        %v3040 = vunpack.c.h.b16 %v1519
        %v3041 = vunpack.c.l.b16 %v1520
        %v3042 = vunpack.c.h.b16 %v1520
        %v3043 = vunpack.c.l.b16 %v1521
        %v3044 = vunpack.c.h.b16 %v1521
        %v3045 = vunpack.c.l.b16 %v1522
        %v3046 = vunpack.c.h.b16 %v1522
        %v3047 = vunpack.c.l.b16 %v1523
        %v3048 = vunpack.c.h.b16 %v1523
        %v3049 = vunpack.c.l.b16 %v1524
        %v3050 = vunpack.c.h.b16 %v1524
        %v3051 = vunpack.c.l.b16 %v1525
        %v3052 = vunpack.c.h.b16 %v1525
        %v3053 = vunpack.c.l.b16 %v1526
        %v3054 = vunpack.c.h.b16 %v1526
        %v3055 = vunpack.c.l.b16 %v1527
        %v3056 = vunpack.c.h.b16 %v1527
        %v3057 = vunpack.c.l.b16 %v1528
        %v3058 = vunpack.c.h.b16 %v1528
        %v3059 = vunpack.c.l.b16 %v1529
        %v3060 = vunpack.c.h.b16 %v1529
        %v3061 = vunpack.c.l.b16 %v1530
        %v3062 = vunpack.c.h.b16 %v1530
        %v3063 = vunpack.c.l.b16 %v1531
        %v3064 = vunpack.c.h.b16 %v1531
        %v3065 = vunpack.c.l.b16 %v1532
        %v3066 = vunpack.c.h.b16 %v1532
        %v3067 = vunpack.c.l.b16 %v1533
        %v3068 = vunpack.c.h.b16 %v1533
        %v3069 = vunpack.c.l.b16 %v1534
        %v3070 = vunpack.c.h.b16 %v1534
        %v3071 = vpack.c.b16 %v2689, %v2687
        %v3072 = vpack.c.b16 %v2690, %v2688
        %v3073 = vpack.c.b16 %v2693, %v2691
        %v3074 = vpack.c.b16 %v2694, %v2692
        %v3075 = vpack.c.b16 %v2697, %v2695
        %v3076 = vpack.c.b16 %v2698, %v2696
        %v3077 = vpack.c.b16 %v2701, %v2699
        %v3078 = vpack.c.b16 %v2702, %v2700
        %v3079 = vpack.c.b16 %v2705, %v2703
        %v3080 = vpack.c.b16 %v2706, %v2704
        %v3081 = vpack.c.b16 %v2709, %v2707
        %v3082 = vpack.c.b16 %v2710, %v2708
        %v3083 = vpack.c.b16 %v2713, %v2711
        %v3084 = vpack.c.b16 %v2714, %v2712
        %v3085 = vpack.c.b16 %v2717, %v2715
        %v3086 = vpack.c.b16 %v2718, %v2716
        %v3087 = vpack.c.b16 %v2721, %v2719
        %v3088 = vpack.c.b16 %v2722, %v2720
        %v3089 = vpack.c.b16 %v2725, %v2723
        %v3090 = vpack.c.b16 %v2726, %v2724
        %v3091 = vpack.c.b16 %v2729, %v2727
        %v3092 = vpack.c.b16 %v2730, %v2728
        %v3093 = vpack.c.b16 %v2733, %v2731
        %v3094 = vpack.c.b16 %v2734, %v2732
        %v3095 = vpack.c.b16 %v2737, %v2735
        %v3096 = vpack.c.b16 %v2738, %v2736
        %v3097 = vpack.c.b16 %v2741, %v2739
        %v3098 = vpack.c.b16 %v2742, %v2740
        %v3099 = vpack.c.b16 %v2745, %v2743
        %v3100 = vpack.c.b16 %v2746, %v2744
        %v3101 = vpack.c.b16 %v2749, %v2747
        %v3102 = vpack.c.b16 %v2750, %v2748
        %v3103 = vpack.c.b16 %v2753, %v2751
        %v3104 = vpack.c.b16 %v2754, %v2752
        %v3105 = vpack.c.b16 %v2757, %v2755
        %v3106 = vpack.c.b16 %v2758, %v2756
        %v3107 = vpack.c.b16 %v2761, %v2759
        %v3108 = vpack.c.b16 %v2762, %v2760
        %v3109 = vpack.c.b16 %v2765, %v2763
        %v3110 = vpack.c.b16 %v2766, %v2764
        %v3111 = vpack.c.b16 %v2769, %v2767
        %v3112 = vpack.c.b16 %v2770, %v2768
        %v3113 = vpack.c.b16 %v2773, %v2771
        %v3114 = vpack.c.b16 %v2774, %v2772
        %v3115 = vpack.c.b16 %v2777, %v2775
        %v3116 = vpack.c.b16 %v2778, %v2776
        %v3117 = vpack.c.b16 %v2781, %v2779
        %v3118 = vpack.c.b16 %v2782, %v2780
        %v3119 = vpack.c.b16 %v2785, %v2783
        %v3120 = vpack.c.b16 %v2786, %v2784
        %v3121 = vpack.c.b16 %v2789, %v2787
        %v3122 = vpack.c.b16 %v2790, %v2788
        %v3123 = vpack.c.b16 %v2793, %v2791
        %v3124 = vpack.c.b16 %v2794, %v2792
        %v3125 = vpack.c.b16 %v2797, %v2795
        %v3126 = vpack.c.b16 %v2798, %v2796
        %v3127 = vpack.c.b16 %v2801, %v2799
        %v3128 = vpack.c.b16 %v2802, %v2800
        %v3129 = vpack.c.b16 %v2805, %v2803
        %v3130 = vpack.c.b16 %v2806, %v2804
        %v3131 = vpack.c.b16 %v2809, %v2807
        %v3132 = vpack.c.b16 %v2810, %v2808
        %v3133 = vpack.c.b16 %v2813, %v2811
        %v3134 = vpack.c.b16 %v2814, %v2812
        %v3135 = vpack.c.b16 %v2817, %v2815
        %v3136 = vpack.c.b16 %v2818, %v2816
        %v3137 = vpack.c.b16 %v2821, %v2819
        %v3138 = vpack.c.b16 %v2822, %v2820
        %v3139 = vpack.c.b16 %v2825, %v2823
        %v3140 = vpack.c.b16 %v2826, %v2824
        %v3141 = vpack.c.b16 %v2829, %v2827
        %v3142 = vpack.c.b16 %v2830, %v2828
        %v3143 = vpack.c.b16 %v2833, %v2831
        %v3144 = vpack.c.b16 %v2834, %v2832
        %v3145 = vpack.c.b16 %v2837, %v2835
        %v3146 = vpack.c.b16 %v2838, %v2836
        %v3147 = vpack.c.b16 %v2841, %v2839
        %v3148 = vpack.c.b16 %v2842, %v2840
        %v3149 = vpack.c.b16 %v2845, %v2843
        %v3150 = vpack.c.b16 %v2846, %v2844
        %v3151 = vpack.c.b16 %v2849, %v2847
        %v3152 = vpack.c.b16 %v2850, %v2848
        %v3153 = vpack.c.b16 %v2853, %v2851
        %v3154 = vpack.c.b16 %v2854, %v2852
        %v3155 = vpack.c.b16 %v2857, %v2855
        %v3156 = vpack.c.b16 %v2858, %v2856
        %v3157 = vpack.c.b16 %v2861, %v2859
        %v3158 = vpack.c.b16 %v2862, %v2860
        %v3159 = vpack.c.b16 %v2865, %v2863
        %v3160 = vpack.c.b16 %v2866, %v2864
        %v3161 = vpack.c.b16 %v2869, %v2867
        %v3162 = vpack.c.b16 %v2870, %v2868
        %v3163 = vpack.c.b16 %v2873, %v2871
        %v3164 = vpack.c.b16 %v2874, %v2872
        %v3165 = vpack.c.b16 %v2877, %v2875
        %v3166 = vpack.c.b16 %v2878, %v2876
        %v3167 = vpack.c.b16 %v2881, %v2879
        %v3168 = vpack.c.b16 %v2882, %v2880
        %v3169 = vpack.c.b16 %v2885, %v2883
        %v3170 = vpack.c.b16 %v2886, %v2884
        %v3171 = vpack.c.b16 %v2889, %v2887
        %v3172 = vpack.c.b16 %v2890, %v2888
        %v3173 = vpack.c.b16 %v2893, %v2891
        %v3174 = vpack.c.b16 %v2894, %v2892
        %v3175 = vpack.c.b16 %v2897, %v2895
        %v3176 = vpack.c.b16 %v2898, %v2896
        %v3177 = vpack.c.b16 %v2901, %v2899
        %v3178 = vpack.c.b16 %v2902, %v2900
        %v3179 = vpack.c.b16 %v2905, %v2903
        %v3180 = vpack.c.b16 %v2906, %v2904
        %v3181 = vpack.c.b16 %v2909, %v2907
        %v3182 = vpack.c.b16 %v2910, %v2908
        %v3183 = vpack.c.b16 %v2913, %v2911
        %v3184 = vpack.c.b16 %v2914, %v2912
        %v3185 = vpack.c.b16 %v2917, %v2915
        %v3186 = vpack.c.b16 %v2918, %v2916
        %v3187 = vpack.c.b16 %v2921, %v2919
        %v3188 = vpack.c.b16 %v2922, %v2920
        %v3189 = vpack.c.b16 %v2925, %v2923
        %v3190 = vpack.c.b16 %v2926, %v2924
        %v3191 = vpack.c.b16 %v2929, %v2927
        %v3192 = vpack.c.b16 %v2930, %v2928
        %v3193 = vpack.c.b16 %v2933, %v2931
        %v3194 = vpack.c.b16 %v2934, %v2932
        %v3195 = vpack.c.b16 %v2937, %v2935
        %v3196 = vpack.c.b16 %v2938, %v2936
        %v3197 = vpack.c.b16 %v2941, %v2939
        %v3198 = vpack.c.b16 %v2942, %v2940
        %v3199 = vpack.c.b16 %v2945, %v2943
        %v3200 = vpack.c.b16 %v2946, %v2944
        %v3201 = vpack.c.b16 %v2949, %v2947
        %v3202 = vpack.c.b16 %v2950, %v2948
        %v3203 = vpack.c.b16 %v2953, %v2951
        %v3204 = vpack.c.b16 %v2954, %v2952
        %v3205 = vpack.c.b16 %v2957, %v2955
        %v3206 = vpack.c.b16 %v2958, %v2956
        %v3207 = vpack.c.b16 %v2961, %v2959
        %v3208 = vpack.c.b16 %v2962, %v2960
        %v3209 = vpack.c.b16 %v2965, %v2963
        %v3210 = vpack.c.b16 %v2966, %v2964
        %v3211 = vpack.c.b16 %v2969, %v2967
        %v3212 = vpack.c.b16 %v2970, %v2968
        %v3213 = vpack.c.b16 %v2973, %v2971
        %v3214 = vpack.c.b16 %v2974, %v2972
        %v3215 = vpack.c.b16 %v2977, %v2975
        %v3216 = vpack.c.b16 %v2978, %v2976
        %v3217 = vpack.c.b16 %v2981, %v2979
        %v3218 = vpack.c.b16 %v2982, %v2980
        %v3219 = vpack.c.b16 %v2985, %v2983
        %v3220 = vpack.c.b16 %v2986, %v2984
        %v3221 = vpack.c.b16 %v2989, %v2987
        %v3222 = vpack.c.b16 %v2990, %v2988
        %v3223 = vpack.c.b16 %v2993, %v2991
        %v3224 = vpack.c.b16 %v2994, %v2992
        %v3225 = vpack.c.b16 %v2997, %v2995
        %v3226 = vpack.c.b16 %v2998, %v2996
        %v3227 = vpack.c.b16 %v3001, %v2999
        %v3228 = vpack.c.b16 %v3002, %v3000
        %v3229 = vpack.c.b16 %v3005, %v3003
        %v3230 = vpack.c.b16 %v3006, %v3004
        %v3231 = vpack.c.b16 %v3009, %v3007
        %v3232 = vpack.c.b16 %v3010, %v3008
        %v3233 = vpack.c.b16 %v3013, %v3011
        %v3234 = vpack.c.b16 %v3014, %v3012
        %v3235 = vpack.c.b16 %v3017, %v3015
        %v3236 = vpack.c.b16 %v3018, %v3016
        %v3237 = vpack.c.b16 %v3021, %v3019
        %v3238 = vpack.c.b16 %v3022, %v3020
        %v3239 = vpack.c.b16 %v3025, %v3023
        %v3240 = vpack.c.b16 %v3026, %v3024
        %v3241 = vpack.c.b16 %v3029, %v3027
        %v3242 = vpack.c.b16 %v3030, %v3028
        %v3243 = vpack.c.b16 %v3033, %v3031
        %v3244 = vpack.c.b16 %v3034, %v3032
        %v3245 = vpack.c.b16 %v3037, %v3035
        %v3246 = vpack.c.b16 %v3038, %v3036
        %v3247 = vpack.c.b16 %v3041, %v3039
        %v3248 = vpack.c.b16 %v3042, %v3040
        %v3249 = vpack.c.b16 %v3045, %v3043
        %v3250 = vpack.c.b16 %v3046, %v3044
        %v3251 = vpack.c.b16 %v3049, %v3047
        %v3252 = vpack.c.b16 %v3050, %v3048
        %v3253 = vpack.c.b16 %v3053, %v3051
        %v3254 = vpack.c.b16 %v3054, %v3052
        %v3255 = vpack.c.b16 %v3057, %v3055
        %v3256 = vpack.c.b16 %v3058, %v3056
        %v3257 = vpack.c.b16 %v3061, %v3059
        %v3258 = vpack.c.b16 %v3062, %v3060
        %v3259 = vpack.c.b16 %v3065, %v3063
        %v3260 = vpack.c.b16 %v3066, %v3064
        %v3261 = vpack.c.b16 %v3069, %v3067
        %v3262 = vpack.c.b16 %v3070, %v3068
        %3455 = vmatprep.subr.bf16.mxu0 %v3072
        %3456 = vmatpush1.bf16.msra.mxu0 %v3071
        %3457 = vmatprep.subr.bf16.mxu0 %v3074
        %3458 = vmatpush1.bf16.msra.mxu0 %v3073
        %3459 = vmatprep.subr.bf16.mxu0 %v3076
        %3460 = vmatpush1.bf16.msra.mxu0 %v3075
        %3461 = vmatprep.subr.bf16.mxu0 %v3078
        %3462 = vmatpush1.bf16.msra.mxu0 %v3077
        %3463 = vmatprep.subr.bf16.mxu0 %v3080
        %3464 = vmatpush1.bf16.msra.mxu0 %v3079
        %3465 = vmatprep.subr.bf16.mxu0 %v3082
        %3466 = vmatpush1.bf16.msra.mxu0 %v3081
        %3467 = vmatprep.subr.bf16.mxu0 %v3084
        %3468 = vmatpush1.bf16.msra.mxu0 %v3083
        %3469 = vmatprep.subr.bf16.mxu0 %v3086
        %3470 = vmatpush1.bf16.msra.mxu0 %v3085
        %3471 = vmatprep.subr.bf16.mxu0 %v3088
        %3472 = vmatpush1.bf16.msra.mxu0 %v3087
        %3473 = vmatprep.subr.bf16.mxu0 %v3090
        %3474 = vmatpush1.bf16.msra.mxu0 %v3089
        %3475 = vmatprep.subr.bf16.mxu0 %v3092
        %3476 = vmatpush1.bf16.msra.mxu0 %v3091
        %3477 = vmatprep.subr.bf16.mxu0 %v3094
        %3478 = vmatpush1.bf16.msra.mxu0 %v3093
        %3479 = vmatprep.subr.bf16.mxu0 %v3096
        %3480 = vmatpush1.bf16.msra.mxu0 %v3095
        %3481 = vmatprep.subr.bf16.mxu0 %v3098
        %3482 = vmatpush1.bf16.msra.mxu0 %v3097
        %3483 = vmatprep.subr.bf16.mxu0 %v3100
        %3484 = vmatpush1.bf16.msra.mxu0 %v3099
        %3485 = vmatprep.subr.bf16.mxu0 %v3102
        %3486 = vmatpush1.bf16.msra.mxu0 %v3101
        %3487 = vmatprep.mubr.bf16.mxu0 %v2112
        %3488 = vmatmul.mubr.bf16.gmra.mrb[0].mxu0 %v2111
        %v3489 = vpop.f32.mrb[0].mxu0
        %v3490 = vadd.f32 0.0, %v3489
        %v3491 = vpop.f32.mrb[0].mxu0
        %v3492 = vadd.f32 0.0, %v3491
        %v3493 = vpop.f32.mrb[0].mxu0
        %v3494 = vadd.f32 0.0, %v3493
        %v3495 = vpop.f32.mrb[0].mxu0
        %v3496 = vadd.f32 0.0, %v3495
        %3497 = vmatprep.mubr.bf16.mxu0 %v2124
        %3498 = vmatmul.mubr.bf16.gmra.mrb[0].mxu0 %v2123
        %v3499 = vpop.f32.mrb[0].mxu0
        %v3500 = vadd.f32 0.0, %v3499
        %v3501 = vpop.f32.mrb[0].mxu0
        %v3502 = vadd.f32 0.0, %v3501
        %v3503 = vpop.f32.mrb[0].mxu0
        %v3504 = vadd.f32 0.0, %v3503
        %v3505 = vpop.f32.mrb[0].mxu0
        %v3506 = vadd.f32 0.0, %v3505
        %3507 = vmatprep.mubr.bf16.mxu0 %v2136
        %3508 = vmatmul.mubr.bf16.gmra.mrb[0].mxu0 %v2135
        %v3509 = vpop.f32.mrb[0].mxu0
        %v3510 = vadd.f32 0.0, %v3509
        %v3511 = vpop.f32.mrb[0].mxu0
        %v3512 = vadd.f32 0.0, %v3511
        %v3513 = vpop.f32.mrb[0].mxu0
        %v3514 = vadd.f32 0.0, %v3513
        %v3515 = vpop.f32.mrb[0].mxu0
        %v3516 = vadd.f32 0.0, %v3515
        %3517 = vmatprep.mubr.bf16.mxu0 %v2148
        %3518 = vmatmul.mubr.bf16.gmra.mrb[0].mxu0 %v2147
        %v3519 = vpop.f32.mrb[0].mxu0
        %v3520 = vadd.f32 0.0, %v3519
        %v3521 = vpop.f32.mrb[0].mxu0
        %v3522 = vadd.f32 0.0, %v3521
        %v3523 = vpop.f32.mrb[0].mxu0
        %v3524 = vadd.f32 0.0, %v3523
        %v3525 = vpop.f32.mrb[0].mxu0
        %v3526 = vadd.f32 0.0, %v3525
        %3527 = vmatprep.mubr.bf16.mxu0 %v2160
        %3528 = vmatmul.mubr.bf16.gmra.mrb[0].mxu0 %v2159
        %v3529 = vpop.f32.mrb[0].mxu0
        %v3530 = vadd.f32 0.0, %v3529
        %v3531 = vpop.f32.mrb[0].mxu0
        %v3532 = vadd.f32 0.0, %v3531
        %v3533 = vpop.f32.mrb[0].mxu0
        %v3534 = vadd.f32 0.0, %v3533
        %v3535 = vpop.f32.mrb[0].mxu0
        %v3536 = vadd.f32 0.0, %v3535
        %3537 = vmatprep.mubr.bf16.mxu0 %v2172
        %3538 = vmatmul.mubr.bf16.gmra.mrb[0].mxu0 %v2171
        %v3539 = vpop.f32.mrb[0].mxu0
        %v3540 = vadd.f32 0.0, %v3539
        %v3541 = vpop.f32.mrb[0].mxu0
        %v3542 = vadd.f32 0.0, %v3541
        %v3543 = vpop.f32.mrb[0].mxu0
        %v3544 = vadd.f32 0.0, %v3543
        %v3545 = vpop.f32.mrb[0].mxu0
        %v3546 = vadd.f32 0.0, %v3545
        %3547 = vmatprep.mubr.bf16.mxu0 %v2184
        %3548 = vmatmul.mubr.bf16.gmra.mrb[0].mxu0 %v2183
        %v3549 = vpop.f32.mrb[0].mxu0
        %v3550 = vadd.f32 0.0, %v3549
        %v3551 = vpop.f32.mrb[0].mxu0
        %v3552 = vadd.f32 0.0, %v3551
        %v3553 = vpop.f32.mrb[0].mxu0
        %v3554 = vadd.f32 0.0, %v3553
        %v3555 = vpop.f32.mrb[0].mxu0
        %v3556 = vadd.f32 0.0, %v3555
        %3557 = vmatprep.mubr.bf16.mxu0 %v2196
        %3558 = vmatmul.mubr.bf16.gmra.mrb[0].mxu0 %v2195
        %v3559 = vpop.f32.mrb[0].mxu0
        %v3560 = vadd.f32 0.0, %v3559
        %v3561 = vpop.f32.mrb[0].mxu0
        %v3562 = vadd.f32 0.0, %v3561
        %v3563 = vpop.f32.mrb[0].mxu0
        %v3564 = vadd.f32 0.0, %v3563
        %v3565 = vpop.f32.mrb[0].mxu0
        %v3566 = vadd.f32 0.0, %v3565
        %3567 = vmatprep.mubr.bf16.mxu0 %v2208
        %3568 = vmatmul.mubr.bf16.gmra.mrb[0].mxu0 %v2207
        %v3569 = vpop.f32.mrb[0].mxu0
        %v3570 = vadd.f32 0.0, %v3569
        %v3571 = vpop.f32.mrb[0].mxu0
        %v3572 = vadd.f32 0.0, %v3571
        %v3573 = vpop.f32.mrb[0].mxu0
        %v3574 = vadd.f32 0.0, %v3573
        %v3575 = vpop.f32.mrb[0].mxu0
        %v3576 = vadd.f32 0.0, %v3575
        %3577 = vmatprep.mubr.bf16.mxu0 %v2220
        %3578 = vmatmul.mubr.bf16.gmra.mrb[0].mxu0 %v2219
        %v3579 = vpop.f32.mrb[0].mxu0
        %v3580 = vadd.f32 0.0, %v3579
        %v3581 = vpop.f32.mrb[0].mxu0
        %v3582 = vadd.f32 0.0, %v3581
        %v3583 = vpop.f32.mrb[0].mxu0
        %v3584 = vadd.f32 0.0, %v3583
        %v3585 = vpop.f32.mrb[0].mxu0
        %v3586 = vadd.f32 0.0, %v3585
        %3587 = vmatprep.mubr.bf16.mxu0 %v2232
        %3588 = vmatmul.mubr.bf16.gmra.mrb[0].mxu0 %v2231
        %v3589 = vpop.f32.mrb[0].mxu0
        %v3590 = vadd.f32 0.0, %v3589
        %v3591 = vpop.f32.mrb[0].mxu0
        %v3592 = vadd.f32 0.0, %v3591
        %v3593 = vpop.f32.mrb[0].mxu0
        %v3594 = vadd.f32 0.0, %v3593
        %v3595 = vpop.f32.mrb[0].mxu0
        %v3596 = vadd.f32 0.0, %v3595
        %3597 = vmatprep.mubr.bf16.mxu0 %v2244
        %3598 = vmatmul.mubr.bf16.gmra.mrb[0].mxu0 %v2243
        %v3599 = vpop.f32.mrb[0].mxu0
        %v3600 = vadd.f32 0.0, %v3599
        %v3601 = vpop.f32.mrb[0].mxu0
        %v3602 = vadd.f32 0.0, %v3601
        %v3603 = vpop.f32.mrb[0].mxu0
        %v3604 = vadd.f32 0.0, %v3603
        %v3605 = vpop.f32.mrb[0].mxu0
        %v3606 = vadd.f32 0.0, %v3605
        %3607 = vmatprep.mubr.bf16.mxu0 %v2256
        %3608 = vmatmul.mubr.bf16.gmra.mrb[0].mxu0 %v2255
        %v3609 = vpop.f32.mrb[0].mxu0
        %v3610 = vadd.f32 0.0, %v3609
        %v3611 = vpop.f32.mrb[0].mxu0
        %v3612 = vadd.f32 0.0, %v3611
        %v3613 = vpop.f32.mrb[0].mxu0
        %v3614 = vadd.f32 0.0, %v3613
        %v3615 = vpop.f32.mrb[0].mxu0
        %v3616 = vadd.f32 0.0, %v3615
        %3617 = vmatprep.mubr.bf16.mxu0 %v2268
        %3618 = vmatmul.mubr.bf16.gmra.mrb[0].mxu0 %v2267
        %v3619 = vpop.f32.mrb[0].mxu0
        %v3620 = vadd.f32 0.0, %v3619
        %v3621 = vpop.f32.mrb[0].mxu0
        %v3622 = vadd.f32 0.0, %v3621
        %v3623 = vpop.f32.mrb[0].mxu0
        %v3624 = vadd.f32 0.0, %v3623
        %v3625 = vpop.f32.mrb[0].mxu0
        %v3626 = vadd.f32 0.0, %v3625
        %3627 = vmatprep.mubr.bf16.mxu0 %v2280
        %3628 = vmatmul.mubr.bf16.gmra.mrb[0].mxu0 %v2279
        %v3629 = vpop.f32.mrb[0].mxu0
        %v3630 = vadd.f32 0.0, %v3629
        %v3631 = vpop.f32.mrb[0].mxu0
        %v3632 = vadd.f32 0.0, %v3631
        %v3633 = vpop.f32.mrb[0].mxu0
        %v3634 = vadd.f32 0.0, %v3633
        %v3635 = vpop.f32.mrb[0].mxu0
        %v3636 = vadd.f32 0.0, %v3635
        %3637 = vmatprep.mubr.bf16.mxu0 %v2292
        %3638 = vmatmul.mubr.bf16.gmra.mrb[0].mxu0 %v2291
        %v3639 = vpop.f32.mrb[0].mxu0
        %v3640 = vadd.f32 0.0, %v3639
        %v3641 = vpop.f32.mrb[0].mxu0
        %v3642 = vadd.f32 0.0, %v3641
        %v3643 = vpop.f32.mrb[0].mxu0
        %v3644 = vadd.f32 0.0, %v3643
        %v3645 = vpop.f32.mrb[0].mxu0
        %v3646 = vadd.f32 0.0, %v3645
        %3647 = vdwg.mxu0
        %3648 = vmatprep.subr.bf16.mxu0 %v3104
        %3649 = vmatpush1.bf16.msra.mxu0 %v3103
        %3650 = vmatprep.subr.bf16.mxu0 %v3106
        %3651 = vmatpush1.bf16.msra.mxu0 %v3105
        %3652 = vmatprep.subr.bf16.mxu0 %v3108
        %3653 = vmatpush1.bf16.msra.mxu0 %v3107
        %3654 = vmatprep.subr.bf16.mxu0 %v3110
        %3655 = vmatpush1.bf16.msra.mxu0 %v3109
        %3656 = vmatprep.subr.bf16.mxu0 %v3112
        %3657 = vmatpush1.bf16.msra.mxu0 %v3111
        %3658 = vmatprep.subr.bf16.mxu0 %v3114
        %3659 = vmatpush1.bf16.msra.mxu0 %v3113
        %3660 = vmatprep.subr.bf16.mxu0 %v3116
        %3661 = vmatpush1.bf16.msra.mxu0 %v3115
        %3662 = vmatprep.subr.bf16.mxu0 %v3118
        %3663 = vmatpush1.bf16.msra.mxu0 %v3117
        %3664 = vmatprep.subr.bf16.mxu0 %v3120
        %3665 = vmatpush1.bf16.msra.mxu0 %v3119
        %3666 = vmatprep.subr.bf16.mxu0 %v3122
        %3667 = vmatpush1.bf16.msra.mxu0 %v3121
        %3668 = vmatprep.subr.bf16.mxu0 %v3124
        %3669 = vmatpush1.bf16.msra.mxu0 %v3123
        %3670 = vmatprep.subr.bf16.mxu0 %v3126
        %3671 = vmatpush1.bf16.msra.mxu0 %v3125
        %3672 = vmatprep.subr.bf16.mxu0 %v3128
        %3673 = vmatpush1.bf16.msra.mxu0 %v3127
        %3674 = vmatprep.subr.bf16.mxu0 %v3130
        %3675 = vmatpush1.bf16.msra.mxu0 %v3129
        %3676 = vmatprep.subr.bf16.mxu0 %v3132
        %3677 = vmatpush1.bf16.msra.mxu0 %v3131
        %3678 = vmatprep.subr.bf16.mxu0 %v3134
        %3679 = vmatpush1.bf16.msra.mxu0 %v3133
        %3680 = vmatprep.mubr.bf16.mxu0 %v2114
        %3681 = vmatmul.mubr.bf16.gmra.mrb[0].mxu0 %v2113
        %v3682 = vpop.f32.mrb[0].mxu0
        %v3683 = vadd.f32 %v3490, %v3682
        %v3684 = vpop.f32.mrb[0].mxu0
        %v3685 = vadd.f32 %v3492, %v3684
        %v3686 = vpop.f32.mrb[0].mxu0
        %v3687 = vadd.f32 %v3494, %v3686
        %v3688 = vpop.f32.mrb[0].mxu0
        %v3689 = vadd.f32 %v3496, %v3688
        %3690 = vmatprep.mubr.bf16.mxu0 %v2126
        %3691 = vmatmul.mubr.bf16.gmra.mrb[0].mxu0 %v2125
        %v3692 = vpop.f32.mrb[0].mxu0
        %v3693 = vadd.f32 %v3500, %v3692
        %v3694 = vpop.f32.mrb[0].mxu0
        %v3695 = vadd.f32 %v3502, %v3694
        %v3696 = vpop.f32.mrb[0].mxu0
        %v3697 = vadd.f32 %v3504, %v3696
        %v3698 = vpop.f32.mrb[0].mxu0
        %v3699 = vadd.f32 %v3506, %v3698
        %3700 = vmatprep.mubr.bf16.mxu0 %v2138
        %3701 = vmatmul.mubr.bf16.gmra.mrb[0].mxu0 %v2137
        %v3702 = vpop.f32.mrb[0].mxu0
        %v3703 = vadd.f32 %v3510, %v3702
        %v3704 = vpop.f32.mrb[0].mxu0
        %v3705 = vadd.f32 %v3512, %v3704
        %v3706 = vpop.f32.mrb[0].mxu0
        %v3707 = vadd.f32 %v3514, %v3706
        %v3708 = vpop.f32.mrb[0].mxu0
        %v3709 = vadd.f32 %v3516, %v3708
        %3710 = vmatprep.mubr.bf16.mxu0 %v2150
        %3711 = vmatmul.mubr.bf16.gmra.mrb[0].mxu0 %v2149
        %v3712 = vpop.f32.mrb[0].mxu0
        %v3713 = vadd.f32 %v3520, %v3712
        %v3714 = vpop.f32.mrb[0].mxu0
        %v3715 = vadd.f32 %v3522, %v3714
        %v3716 = vpop.f32.mrb[0].mxu0
        %v3717 = vadd.f32 %v3524, %v3716
        %v3718 = vpop.f32.mrb[0].mxu0
        %v3719 = vadd.f32 %v3526, %v3718
        %3720 = vmatprep.mubr.bf16.mxu0 %v2162
        %3721 = vmatmul.mubr.bf16.gmra.mrb[0].mxu0 %v2161
        %v3722 = vpop.f32.mrb[0].mxu0
        %v3723 = vadd.f32 %v3530, %v3722
        %v3724 = vpop.f32.mrb[0].mxu0
        %v3725 = vadd.f32 %v3532, %v3724
        %v3726 = vpop.f32.mrb[0].mxu0
        %v3727 = vadd.f32 %v3534, %v3726
        %v3728 = vpop.f32.mrb[0].mxu0
        %v3729 = vadd.f32 %v3536, %v3728
        %3730 = vmatprep.mubr.bf16.mxu0 %v2174
        %3731 = vmatmul.mubr.bf16.gmra.mrb[0].mxu0 %v2173
        %v3732 = vpop.f32.mrb[0].mxu0
        %v3733 = vadd.f32 %v3540, %v3732
        %v3734 = vpop.f32.mrb[0].mxu0
        %v3735 = vadd.f32 %v3542, %v3734
        %v3736 = vpop.f32.mrb[0].mxu0
        %v3737 = vadd.f32 %v3544, %v3736
        %v3738 = vpop.f32.mrb[0].mxu0
        %v3739 = vadd.f32 %v3546, %v3738
        %3740 = vmatprep.mubr.bf16.mxu0 %v2186
        %3741 = vmatmul.mubr.bf16.gmra.mrb[0].mxu0 %v2185
        %v3742 = vpop.f32.mrb[0].mxu0
        %v3743 = vadd.f32 %v3550, %v3742
        %v3744 = vpop.f32.mrb[0].mxu0
        %v3745 = vadd.f32 %v3552, %v3744
        %v3746 = vpop.f32.mrb[0].mxu0
        %v3747 = vadd.f32 %v3554, %v3746
        %v3748 = vpop.f32.mrb[0].mxu0
        %v3749 = vadd.f32 %v3556, %v3748
        %3750 = vmatprep.mubr.bf16.mxu0 %v2198
        %3751 = vmatmul.mubr.bf16.gmra.mrb[0].mxu0 %v2197
        %v3752 = vpop.f32.mrb[0].mxu0
        %v3753 = vadd.f32 %v3560, %v3752
        %v3754 = vpop.f32.mrb[0].mxu0
        %v3755 = vadd.f32 %v3562, %v3754
        %v3756 = vpop.f32.mrb[0].mxu0
        %v3757 = vadd.f32 %v3564, %v3756
        %v3758 = vpop.f32.mrb[0].mxu0
        %v3759 = vadd.f32 %v3566, %v3758
        %3760 = vmatprep.mubr.bf16.mxu0 %v2210
        %3761 = vmatmul.mubr.bf16.gmra.mrb[0].mxu0 %v2209
        %v3762 = vpop.f32.mrb[0].mxu0
        %v3763 = vadd.f32 %v3570, %v3762
        %v3764 = vpop.f32.mrb[0].mxu0
        %v3765 = vadd.f32 %v3572, %v3764
        %v3766 = vpop.f32.mrb[0].mxu0
        %v3767 = vadd.f32 %v3574, %v3766
        %v3768 = vpop.f32.mrb[0].mxu0
        %v3769 = vadd.f32 %v3576, %v3768
        %3770 = vmatprep.mubr.bf16.mxu0 %v2222
        %3771 = vmatmul.mubr.bf16.gmra.mrb[0].mxu0 %v2221
        %v3772 = vpop.f32.mrb[0].mxu0
        %v3773 = vadd.f32 %v3580, %v3772
        %v3774 = vpop.f32.mrb[0].mxu0
        %v3775 = vadd.f32 %v3582, %v3774
        %v3776 = vpop.f32.mrb[0].mxu0
        %v3777 = vadd.f32 %v3584, %v3776
        %v3778 = vpop.f32.mrb[0].mxu0
        %v3779 = vadd.f32 %v3586, %v3778
        %3780 = vmatprep.mubr.bf16.mxu0 %v2234
        %3781 = vmatmul.mubr.bf16.gmra.mrb[0].mxu0 %v2233
        %v3782 = vpop.f32.mrb[0].mxu0
        %v3783 = vadd.f32 %v3590, %v3782
        %v3784 = vpop.f32.mrb[0].mxu0
        %v3785 = vadd.f32 %v3592, %v3784
        %v3786 = vpop.f32.mrb[0].mxu0
        %v3787 = vadd.f32 %v3594, %v3786
        %v3788 = vpop.f32.mrb[0].mxu0
        %v3789 = vadd.f32 %v3596, %v3788
        %3790 = vmatprep.mubr.bf16.mxu0 %v2246
        %3791 = vmatmul.mubr.bf16.gmra.mrb[0].mxu0 %v2245
        %v3792 = vpop.f32.mrb[0].mxu0
        %v3793 = vadd.f32 %v3600, %v3792
        %v3794 = vpop.f32.mrb[0].mxu0
        %v3795 = vadd.f32 %v3602, %v3794
        %v3796 = vpop.f32.mrb[0].mxu0
        %v3797 = vadd.f32 %v3604, %v3796
        %v3798 = vpop.f32.mrb[0].mxu0
        %v3799 = vadd.f32 %v3606, %v3798
        %3800 = vmatprep.mubr.bf16.mxu0 %v2258
        %3801 = vmatmul.mubr.bf16.gmra.mrb[0].mxu0 %v2257
        %v3802 = vpop.f32.mrb[0].mxu0
        %v3803 = vadd.f32 %v3610, %v3802
        %v3804 = vpop.f32.mrb[0].mxu0
        %v3805 = vadd.f32 %v3612, %v3804
        %v3806 = vpop.f32.mrb[0].mxu0
        %v3807 = vadd.f32 %v3614, %v3806
        %v3808 = vpop.f32.mrb[0].mxu0
        %v3809 = vadd.f32 %v3616, %v3808
        %3810 = vmatprep.mubr.bf16.mxu0 %v2270
        %3811 = vmatmul.mubr.bf16.gmra.mrb[0].mxu0 %v2269
        %v3812 = vpop.f32.mrb[0].mxu0
        %v3813 = vadd.f32 %v3620, %v3812
        %v3814 = vpop.f32.mrb[0].mxu0
        %v3815 = vadd.f32 %v3622, %v3814
        %v3816 = vpop.f32.mrb[0].mxu0
        %v3817 = vadd.f32 %v3624, %v3816
        %v3818 = vpop.f32.mrb[0].mxu0
        %v3819 = vadd.f32 %v3626, %v3818
        %3820 = vmatprep.mubr.bf16.mxu0 %v2282
        %3821 = vmatmul.mubr.bf16.gmra.mrb[0].mxu0 %v2281
        %v3822 = vpop.f32.mrb[0].mxu0
        %v3823 = vadd.f32 %v3630, %v3822
        %v3824 = vpop.f32.mrb[0].mxu0
        %v3825 = vadd.f32 %v3632, %v3824
        %v3826 = vpop.f32.mrb[0].mxu0
        %v3827 = vadd.f32 %v3634, %v3826
        %v3828 = vpop.f32.mrb[0].mxu0
        %v3829 = vadd.f32 %v3636, %v3828
        %3830 = vmatprep.mubr.bf16.mxu0 %v2294
        %3831 = vmatmul.mubr.bf16.gmra.mrb[0].mxu0 %v2293
        %v3832 = vpop.f32.mrb[0].mxu0
        %v3833 = vadd.f32 %v3640, %v3832
        %v3834 = vpop.f32.mrb[0].mxu0
        %v3835 = vadd.f32 %v3642, %v3834
        %v3836 = vpop.f32.mrb[0].mxu0
        %v3837 = vadd.f32 %v3644, %v3836
        %v3838 = vpop.f32.mrb[0].mxu0
        %v3839 = vadd.f32 %v3646, %v3838
        %3840 = vdwg.mxu0
        %3841 = vmatprep.subr.bf16.mxu0 %v3136
        %3842 = vmatpush1.bf16.msra.mxu0 %v3135
        %3843 = vmatprep.subr.bf16.mxu0 %v3138
        %3844 = vmatpush1.bf16.msra.mxu0 %v3137
        %3845 = vmatprep.subr.bf16.mxu0 %v3140
        %3846 = vmatpush1.bf16.msra.mxu0 %v3139
        %3847 = vmatprep.subr.bf16.mxu0 %v3142
        %3848 = vmatpush1.bf16.msra.mxu0 %v3141
        %3849 = vmatprep.subr.bf16.mxu0 %v3144
        %3850 = vmatpush1.bf16.msra.mxu0 %v3143
        %3851 = vmatprep.subr.bf16.mxu0 %v3146
        %3852 = vmatpush1.bf16.msra.mxu0 %v3145
        %3853 = vmatprep.subr.bf16.mxu0 %v3148
        %3854 = vmatpush1.bf16.msra.mxu0 %v3147
        %3855 = vmatprep.subr.bf16.mxu0 %v3150
        %3856 = vmatpush1.bf16.msra.mxu0 %v3149
        %3857 = vmatprep.subr.bf16.mxu0 %v3152
        %3858 = vmatpush1.bf16.msra.mxu0 %v3151
        %3859 = vmatprep.subr.bf16.mxu0 %v3154
        %3860 = vmatpush1.bf16.msra.mxu0 %v3153
        %3861 = vmatprep.subr.bf16.mxu0 %v3156
        %3862 = vmatpush1.bf16.msra.mxu0 %v3155
        %3863 = vmatprep.subr.bf16.mxu0 %v3158
        %3864 = vmatpush1.bf16.msra.mxu0 %v3157
        %3865 = vmatprep.subr.bf16.mxu0 %v3160
        %3866 = vmatpush1.bf16.msra.mxu0 %v3159
        %3867 = vmatprep.subr.bf16.mxu0 %v3162
        %3868 = vmatpush1.bf16.msra.mxu0 %v3161
        %3869 = vmatprep.subr.bf16.mxu0 %v3164
        %3870 = vmatpush1.bf16.msra.mxu0 %v3163
        %3871 = vmatprep.subr.bf16.mxu0 %v3166
        %3872 = vmatpush1.bf16.msra.mxu0 %v3165
        %3873 = vmatprep.mubr.bf16.mxu0 %v2116
        %3874 = vmatmul.mubr.bf16.gmra.mrb[0].mxu0 %v2115
        %v3875 = vpop.f32.mrb[0].mxu0
        %v3876 = vadd.f32 %v3683, %v3875
        %v3877 = vpop.f32.mrb[0].mxu0
        %v3878 = vadd.f32 %v3685, %v3877
        %v3879 = vpop.f32.mrb[0].mxu0
        %v3880 = vadd.f32 %v3687, %v3879
        %v3881 = vpop.f32.mrb[0].mxu0
        %v3882 = vadd.f32 %v3689, %v3881
        %3883 = vmatprep.mubr.bf16.mxu0 %v2128
        %3884 = vmatmul.mubr.bf16.gmra.mrb[0].mxu0 %v2127
        %v3885 = vpop.f32.mrb[0].mxu0
        %v3886 = vadd.f32 %v3693, %v3885
        %v3887 = vpop.f32.mrb[0].mxu0
        %v3888 = vadd.f32 %v3695, %v3887
        %v3889 = vpop.f32.mrb[0].mxu0
        %v3890 = vadd.f32 %v3697, %v3889
        %v3891 = vpop.f32.mrb[0].mxu0
        %v3892 = vadd.f32 %v3699, %v3891
        %3893 = vmatprep.mubr.bf16.mxu0 %v2140
        %3894 = vmatmul.mubr.bf16.gmra.mrb[0].mxu0 %v2139
        %v3895 = vpop.f32.mrb[0].mxu0
        %v3896 = vadd.f32 %v3703, %v3895
        %v3897 = vpop.f32.mrb[0].mxu0
        %v3898 = vadd.f32 %v3705, %v3897
        %v3899 = vpop.f32.mrb[0].mxu0
        %v3900 = vadd.f32 %v3707, %v3899
        %v3901 = vpop.f32.mrb[0].mxu0
        %v3902 = vadd.f32 %v3709, %v3901
        %3903 = vmatprep.mubr.bf16.mxu0 %v2152
        %3904 = vmatmul.mubr.bf16.gmra.mrb[0].mxu0 %v2151
        %v3905 = vpop.f32.mrb[0].mxu0
        %v3906 = vadd.f32 %v3713, %v3905
        %v3907 = vpop.f32.mrb[0].mxu0
        %v3908 = vadd.f32 %v3715, %v3907
        %v3909 = vpop.f32.mrb[0].mxu0
        %v3910 = vadd.f32 %v3717, %v3909
        %v3911 = vpop.f32.mrb[0].mxu0
        %v3912 = vadd.f32 %v3719, %v3911
        %3913 = vmatprep.mubr.bf16.mxu0 %v2164
        %3914 = vmatmul.mubr.bf16.gmra.mrb[0].mxu0 %v2163
        %v3915 = vpop.f32.mrb[0].mxu0
        %v3916 = vadd.f32 %v3723, %v3915
        %v3917 = vpop.f32.mrb[0].mxu0
        %v3918 = vadd.f32 %v3725, %v3917
        %v3919 = vpop.f32.mrb[0].mxu0
        %v3920 = vadd.f32 %v3727, %v3919
        %v3921 = vpop.f32.mrb[0].mxu0
        %v3922 = vadd.f32 %v3729, %v3921
        %3923 = vmatprep.mubr.bf16.mxu0 %v2176
        %3924 = vmatmul.mubr.bf16.gmra.mrb[0].mxu0 %v2175
        %v3925 = vpop.f32.mrb[0].mxu0
        %v3926 = vadd.f32 %v3733, %v3925
        %v3927 = vpop.f32.mrb[0].mxu0
        %v3928 = vadd.f32 %v3735, %v3927
        %v3929 = vpop.f32.mrb[0].mxu0
        %v3930 = vadd.f32 %v3737, %v3929
        %v3931 = vpop.f32.mrb[0].mxu0
        %v3932 = vadd.f32 %v3739, %v3931
        %3933 = vmatprep.mubr.bf16.mxu0 %v2188
        %3934 = vmatmul.mubr.bf16.gmra.mrb[0].mxu0 %v2187
        %v3935 = vpop.f32.mrb[0].mxu0
        %v3936 = vadd.f32 %v3743, %v3935
        %v3937 = vpop.f32.mrb[0].mxu0
        %v3938 = vadd.f32 %v3745, %v3937
        %v3939 = vpop.f32.mrb[0].mxu0
        %v3940 = vadd.f32 %v3747, %v3939
        %v3941 = vpop.f32.mrb[0].mxu0
        %v3942 = vadd.f32 %v3749, %v3941
        %3943 = vmatprep.mubr.bf16.mxu0 %v2200
        %3944 = vmatmul.mubr.bf16.gmra.mrb[0].mxu0 %v2199
        %v3945 = vpop.f32.mrb[0].mxu0
        %v3946 = vadd.f32 %v3753, %v3945
        %v3947 = vpop.f32.mrb[0].mxu0
        %v3948 = vadd.f32 %v3755, %v3947
        %v3949 = vpop.f32.mrb[0].mxu0
        %v3950 = vadd.f32 %v3757, %v3949
        %v3951 = vpop.f32.mrb[0].mxu0
        %v3952 = vadd.f32 %v3759, %v3951
        %3953 = vmatprep.mubr.bf16.mxu0 %v2212
        %3954 = vmatmul.mubr.bf16.gmra.mrb[0].mxu0 %v2211
        %v3955 = vpop.f32.mrb[0].mxu0
        %v3956 = vadd.f32 %v3763, %v3955
        %v3957 = vpop.f32.mrb[0].mxu0
        %v3958 = vadd.f32 %v3765, %v3957
        %v3959 = vpop.f32.mrb[0].mxu0
        %v3960 = vadd.f32 %v3767, %v3959
        %v3961 = vpop.f32.mrb[0].mxu0
        %v3962 = vadd.f32 %v3769, %v3961
        %3963 = vmatprep.mubr.bf16.mxu0 %v2224
        %3964 = vmatmul.mubr.bf16.gmra.mrb[0].mxu0 %v2223
        %v3965 = vpop.f32.mrb[0].mxu0
        %v3966 = vadd.f32 %v3773, %v3965
        %v3967 = vpop.f32.mrb[0].mxu0
        %v3968 = vadd.f32 %v3775, %v3967
        %v3969 = vpop.f32.mrb[0].mxu0
        %v3970 = vadd.f32 %v3777, %v3969
        %v3971 = vpop.f32.mrb[0].mxu0
        %v3972 = vadd.f32 %v3779, %v3971
        %3973 = vmatprep.mubr.bf16.mxu0 %v2236
        %3974 = vmatmul.mubr.bf16.gmra.mrb[0].mxu0 %v2235
        %v3975 = vpop.f32.mrb[0].mxu0
        %v3976 = vadd.f32 %v3783, %v3975
        %v3977 = vpop.f32.mrb[0].mxu0
        %v3978 = vadd.f32 %v3785, %v3977
        %v3979 = vpop.f32.mrb[0].mxu0
        %v3980 = vadd.f32 %v3787, %v3979
        %v3981 = vpop.f32.mrb[0].mxu0
        %v3982 = vadd.f32 %v3789, %v3981
        %3983 = vmatprep.mubr.bf16.mxu0 %v2248
        %3984 = vmatmul.mubr.bf16.gmra.mrb[0].mxu0 %v2247
        %v3985 = vpop.f32.mrb[0].mxu0
        %v3986 = vadd.f32 %v3793, %v3985
        %v3987 = vpop.f32.mrb[0].mxu0
        %v3988 = vadd.f32 %v3795, %v3987
        %v3989 = vpop.f32.mrb[0].mxu0
        %v3990 = vadd.f32 %v3797, %v3989
        %v3991 = vpop.f32.mrb[0].mxu0
        %v3992 = vadd.f32 %v3799, %v3991
        %3993 = vmatprep.mubr.bf16.mxu0 %v2260
        %3994 = vmatmul.mubr.bf16.gmra.mrb[0].mxu0 %v2259
        %v3995 = vpop.f32.mrb[0].mxu0
        %v3996 = vadd.f32 %v3803, %v3995
        %v3997 = vpop.f32.mrb[0].mxu0
        %v3998 = vadd.f32 %v3805, %v3997
        %v3999 = vpop.f32.mrb[0].mxu0
        %v4000 = vadd.f32 %v3807, %v3999
        %v4001 = vpop.f32.mrb[0].mxu0
        %v4002 = vadd.f32 %v3809, %v4001
        %4003 = vmatprep.mubr.bf16.mxu0 %v2272
        %4004 = vmatmul.mubr.bf16.gmra.mrb[0].mxu0 %v2271
        %v4005 = vpop.f32.mrb[0].mxu0
        %v4006 = vadd.f32 %v3813, %v4005
        %v4007 = vpop.f32.mrb[0].mxu0
        %v4008 = vadd.f32 %v3815, %v4007
        %v4009 = vpop.f32.mrb[0].mxu0
        %v4010 = vadd.f32 %v3817, %v4009
        %v4011 = vpop.f32.mrb[0].mxu0
        %v4012 = vadd.f32 %v3819, %v4011
        %4013 = vmatprep.mubr.bf16.mxu0 %v2284
        %4014 = vmatmul.mubr.bf16.gmra.mrb[0].mxu0 %v2283
        %v4015 = vpop.f32.mrb[0].mxu0
        %v4016 = vadd.f32 %v3823, %v4015
        %v4017 = vpop.f32.mrb[0].mxu0
        %v4018 = vadd.f32 %v3825, %v4017
        %v4019 = vpop.f32.mrb[0].mxu0
        %v4020 = vadd.f32 %v3827, %v4019
        %v4021 = vpop.f32.mrb[0].mxu0
        %v4022 = vadd.f32 %v3829, %v4021
        %4023 = vmatprep.mubr.bf16.mxu0 %v2296
        %4024 = vmatmul.mubr.bf16.gmra.mrb[0].mxu0 %v2295
        %v4025 = vpop.f32.mrb[0].mxu0
        %v4026 = vadd.f32 %v3833, %v4025
        %v4027 = vpop.f32.mrb[0].mxu0
        %v4028 = vadd.f32 %v3835, %v4027
        %v4029 = vpop.f32.mrb[0].mxu0
        %v4030 = vadd.f32 %v3837, %v4029
        %v4031 = vpop.f32.mrb[0].mxu0
        %v4032 = vadd.f32 %v3839, %v4031
        %4033 = vdwg.mxu0
        %4034 = vmatprep.subr.bf16.mxu0 %v3168
        %4035 = vmatpush1.bf16.msra.mxu0 %v3167
        %4036 = vmatprep.subr.bf16.mxu0 %v3170
        %4037 = vmatpush1.bf16.msra.mxu0 %v3169
        %4038 = vmatprep.subr.bf16.mxu0 %v3172
        %4039 = vmatpush1.bf16.msra.mxu0 %v3171
        %4040 = vmatprep.subr.bf16.mxu0 %v3174
        %4041 = vmatpush1.bf16.msra.mxu0 %v3173
        %4042 = vmatprep.subr.bf16.mxu0 %v3176
        %4043 = vmatpush1.bf16.msra.mxu0 %v3175
        %4044 = vmatprep.subr.bf16.mxu0 %v3178
        %4045 = vmatpush1.bf16.msra.mxu0 %v3177
        %4046 = vmatprep.subr.bf16.mxu0 %v3180
        %4047 = vmatpush1.bf16.msra.mxu0 %v3179
        %4048 = vmatprep.subr.bf16.mxu0 %v3182
        %4049 = vmatpush1.bf16.msra.mxu0 %v3181
        %4050 = vmatprep.subr.bf16.mxu0 %v3184
        %4051 = vmatpush1.bf16.msra.mxu0 %v3183
        %4052 = vmatprep.subr.bf16.mxu0 %v3186
        %4053 = vmatpush1.bf16.msra.mxu0 %v3185
        %4054 = vmatprep.subr.bf16.mxu0 %v3188
        %4055 = vmatpush1.bf16.msra.mxu0 %v3187
        %4056 = vmatprep.subr.bf16.mxu0 %v3190
        %4057 = vmatpush1.bf16.msra.mxu0 %v3189
        %4058 = vmatprep.subr.bf16.mxu0 %v3192
        %4059 = vmatpush1.bf16.msra.mxu0 %v3191
        %4060 = vmatprep.subr.bf16.mxu0 %v3194
        %4061 = vmatpush1.bf16.msra.mxu0 %v3193
        %4062 = vmatprep.subr.bf16.mxu0 %v3196
        %4063 = vmatpush1.bf16.msra.mxu0 %v3195
        %4064 = vmatprep.subr.bf16.mxu0 %v3198
        %4065 = vmatpush1.bf16.msra.mxu0 %v3197
        %4066 = vmatprep.mubr.bf16.mxu0 %v2118
        %4067 = vmatmul.mubr.bf16.gmra.mrb[0].mxu0 %v2117
        %v4068 = vpop.f32.mrb[0].mxu0
        %v4069 = vadd.f32 %v3876, %v4068
        %v4070 = vpop.f32.mrb[0].mxu0
        %v4071 = vadd.f32 %v3878, %v4070
        %v4072 = vpop.f32.mrb[0].mxu0
        %v4073 = vadd.f32 %v3880, %v4072
        %v4074 = vpop.f32.mrb[0].mxu0
        %v4075 = vadd.f32 %v3882, %v4074
        %4076 = vmatprep.mubr.bf16.mxu0 %v2130
        %4077 = vmatmul.mubr.bf16.gmra.mrb[0].mxu0 %v2129
        %v4078 = vpop.f32.mrb[0].mxu0
        %v4079 = vadd.f32 %v3886, %v4078
        %v4080 = vpop.f32.mrb[0].mxu0
        %v4081 = vadd.f32 %v3888, %v4080
        %v4082 = vpop.f32.mrb[0].mxu0
        %v4083 = vadd.f32 %v3890, %v4082
        %v4084 = vpop.f32.mrb[0].mxu0
        %v4085 = vadd.f32 %v3892, %v4084
        %4086 = vmatprep.mubr.bf16.mxu0 %v2142
        %4087 = vmatmul.mubr.bf16.gmra.mrb[0].mxu0 %v2141
        %v4088 = vpop.f32.mrb[0].mxu0
        %v4089 = vadd.f32 %v3896, %v4088
        %v4090 = vpop.f32.mrb[0].mxu0
        %v4091 = vadd.f32 %v3898, %v4090
        %v4092 = vpop.f32.mrb[0].mxu0
        %v4093 = vadd.f32 %v3900, %v4092
        %v4094 = vpop.f32.mrb[0].mxu0
        %v4095 = vadd.f32 %v3902, %v4094
        %4096 = vmatprep.mubr.bf16.mxu0 %v2154
        %4097 = vmatmul.mubr.bf16.gmra.mrb[0].mxu0 %v2153
        %v4098 = vpop.f32.mrb[0].mxu0
        %v4099 = vadd.f32 %v3906, %v4098
        %v4100 = vpop.f32.mrb[0].mxu0
        %v4101 = vadd.f32 %v3908, %v4100
        %v4102 = vpop.f32.mrb[0].mxu0
        %v4103 = vadd.f32 %v3910, %v4102
        %v4104 = vpop.f32.mrb[0].mxu0
        %v4105 = vadd.f32 %v3912, %v4104
        %4106 = vmatprep.mubr.bf16.mxu0 %v2166
        %4107 = vmatmul.mubr.bf16.gmra.mrb[0].mxu0 %v2165
        %v4108 = vpop.f32.mrb[0].mxu0
        %v4109 = vadd.f32 %v3916, %v4108
        %v4110 = vpop.f32.mrb[0].mxu0
        %v4111 = vadd.f32 %v3918, %v4110
        %v4112 = vpop.f32.mrb[0].mxu0
        %v4113 = vadd.f32 %v3920, %v4112
        %v4114 = vpop.f32.mrb[0].mxu0
        %v4115 = vadd.f32 %v3922, %v4114
        %4116 = vmatprep.mubr.bf16.mxu0 %v2178
        %4117 = vmatmul.mubr.bf16.gmra.mrb[0].mxu0 %v2177
        %v4118 = vpop.f32.mrb[0].mxu0
        %v4119 = vadd.f32 %v3926, %v4118
        %v4120 = vpop.f32.mrb[0].mxu0
        %v4121 = vadd.f32 %v3928, %v4120
        %v4122 = vpop.f32.mrb[0].mxu0
        %v4123 = vadd.f32 %v3930, %v4122
        %v4124 = vpop.f32.mrb[0].mxu0
        %v4125 = vadd.f32 %v3932, %v4124
        %4126 = vmatprep.mubr.bf16.mxu0 %v2190
        %4127 = vmatmul.mubr.bf16.gmra.mrb[0].mxu0 %v2189
        %v4128 = vpop.f32.mrb[0].mxu0
        %v4129 = vadd.f32 %v3936, %v4128
        %v4130 = vpop.f32.mrb[0].mxu0
        %v4131 = vadd.f32 %v3938, %v4130
        %v4132 = vpop.f32.mrb[0].mxu0
        %v4133 = vadd.f32 %v3940, %v4132
        %v4134 = vpop.f32.mrb[0].mxu0
        %v4135 = vadd.f32 %v3942, %v4134
        %4136 = vmatprep.mubr.bf16.mxu0 %v2202
        %4137 = vmatmul.mubr.bf16.gmra.mrb[0].mxu0 %v2201
        %v4138 = vpop.f32.mrb[0].mxu0
        %v4139 = vadd.f32 %v3946, %v4138
        %v4140 = vpop.f32.mrb[0].mxu0
        %v4141 = vadd.f32 %v3948, %v4140
        %v4142 = vpop.f32.mrb[0].mxu0
        %v4143 = vadd.f32 %v3950, %v4142
        %v4144 = vpop.f32.mrb[0].mxu0
        %v4145 = vadd.f32 %v3952, %v4144
        %4146 = vmatprep.mubr.bf16.mxu0 %v2214
        %4147 = vmatmul.mubr.bf16.gmra.mrb[0].mxu0 %v2213
        %v4148 = vpop.f32.mrb[0].mxu0
        %v4149 = vadd.f32 %v3956, %v4148
        %v4150 = vpop.f32.mrb[0].mxu0
        %v4151 = vadd.f32 %v3958, %v4150
        %v4152 = vpop.f32.mrb[0].mxu0
        %v4153 = vadd.f32 %v3960, %v4152
        %v4154 = vpop.f32.mrb[0].mxu0
        %v4155 = vadd.f32 %v3962, %v4154
        %4156 = vmatprep.mubr.bf16.mxu0 %v2226
        %4157 = vmatmul.mubr.bf16.gmra.mrb[0].mxu0 %v2225
        %v4158 = vpop.f32.mrb[0].mxu0
        %v4159 = vadd.f32 %v3966, %v4158
        %v4160 = vpop.f32.mrb[0].mxu0
        %v4161 = vadd.f32 %v3968, %v4160
        %v4162 = vpop.f32.mrb[0].mxu0
        %v4163 = vadd.f32 %v3970, %v4162
        %v4164 = vpop.f32.mrb[0].mxu0
        %v4165 = vadd.f32 %v3972, %v4164
        %4166 = vmatprep.mubr.bf16.mxu0 %v2238
        %4167 = vmatmul.mubr.bf16.gmra.mrb[0].mxu0 %v2237
        %v4168 = vpop.f32.mrb[0].mxu0
        %v4169 = vadd.f32 %v3976, %v4168
        %v4170 = vpop.f32.mrb[0].mxu0
        %v4171 = vadd.f32 %v3978, %v4170
        %v4172 = vpop.f32.mrb[0].mxu0
        %v4173 = vadd.f32 %v3980, %v4172
        %v4174 = vpop.f32.mrb[0].mxu0
        %v4175 = vadd.f32 %v3982, %v4174
        %4176 = vmatprep.mubr.bf16.mxu0 %v2250
        %4177 = vmatmul.mubr.bf16.gmra.mrb[0].mxu0 %v2249
        %v4178 = vpop.f32.mrb[0].mxu0
        %v4179 = vadd.f32 %v3986, %v4178
        %v4180 = vpop.f32.mrb[0].mxu0
        %v4181 = vadd.f32 %v3988, %v4180
        %v4182 = vpop.f32.mrb[0].mxu0
        %v4183 = vadd.f32 %v3990, %v4182
        %v4184 = vpop.f32.mrb[0].mxu0
        %v4185 = vadd.f32 %v3992, %v4184
        %4186 = vmatprep.mubr.bf16.mxu0 %v2262
        %4187 = vmatmul.mubr.bf16.gmra.mrb[0].mxu0 %v2261
        %v4188 = vpop.f32.mrb[0].mxu0
        %v4189 = vadd.f32 %v3996, %v4188
        %v4190 = vpop.f32.mrb[0].mxu0
        %v4191 = vadd.f32 %v3998, %v4190
        %v4192 = vpop.f32.mrb[0].mxu0
        %v4193 = vadd.f32 %v4000, %v4192
        %v4194 = vpop.f32.mrb[0].mxu0
        %v4195 = vadd.f32 %v4002, %v4194
        %4196 = vmatprep.mubr.bf16.mxu0 %v2274
        %4197 = vmatmul.mubr.bf16.gmra.mrb[0].mxu0 %v2273
        %v4198 = vpop.f32.mrb[0].mxu0
        %v4199 = vadd.f32 %v4006, %v4198
        %v4200 = vpop.f32.mrb[0].mxu0
        %v4201 = vadd.f32 %v4008, %v4200
        %v4202 = vpop.f32.mrb[0].mxu0
        %v4203 = vadd.f32 %v4010, %v4202
        %v4204 = vpop.f32.mrb[0].mxu0
        %v4205 = vadd.f32 %v4012, %v4204
        %4206 = vmatprep.mubr.bf16.mxu0 %v2286
        %4207 = vmatmul.mubr.bf16.gmra.mrb[0].mxu0 %v2285
        %v4208 = vpop.f32.mrb[0].mxu0
        %v4209 = vadd.f32 %v4016, %v4208
        %v4210 = vpop.f32.mrb[0].mxu0
        %v4211 = vadd.f32 %v4018, %v4210
        %v4212 = vpop.f32.mrb[0].mxu0
        %v4213 = vadd.f32 %v4020, %v4212
        %v4214 = vpop.f32.mrb[0].mxu0
        %v4215 = vadd.f32 %v4022, %v4214
        %4216 = vmatprep.mubr.bf16.mxu0 %v2298
        %4217 = vmatmul.mubr.bf16.gmra.mrb[0].mxu0 %v2297
        %v4218 = vpop.f32.mrb[0].mxu0
        %v4219 = vadd.f32 %v4026, %v4218
        %v4220 = vpop.f32.mrb[0].mxu0
        %v4221 = vadd.f32 %v4028, %v4220
        %v4222 = vpop.f32.mrb[0].mxu0
        %v4223 = vadd.f32 %v4030, %v4222
        %v4224 = vpop.f32.mrb[0].mxu0
        %v4225 = vadd.f32 %v4032, %v4224
        %4226 = vdwg.mxu0
        %4227 = vmatprep.subr.bf16.mxu0 %v3200
        %4228 = vmatpush1.bf16.msra.mxu0 %v3199
        %4229 = vmatprep.subr.bf16.mxu0 %v3202
        %4230 = vmatpush1.bf16.msra.mxu0 %v3201
        %4231 = vmatprep.subr.bf16.mxu0 %v3204
        %4232 = vmatpush1.bf16.msra.mxu0 %v3203
        %4233 = vmatprep.subr.bf16.mxu0 %v3206
        %4234 = vmatpush1.bf16.msra.mxu0 %v3205
        %4235 = vmatprep.subr.bf16.mxu0 %v3208
        %4236 = vmatpush1.bf16.msra.mxu0 %v3207
        %4237 = vmatprep.subr.bf16.mxu0 %v3210
        %4238 = vmatpush1.bf16.msra.mxu0 %v3209
        %4239 = vmatprep.subr.bf16.mxu0 %v3212
        %4240 = vmatpush1.bf16.msra.mxu0 %v3211
        %4241 = vmatprep.subr.bf16.mxu0 %v3214
        %4242 = vmatpush1.bf16.msra.mxu0 %v3213
        %4243 = vmatprep.subr.bf16.mxu0 %v3216
        %4244 = vmatpush1.bf16.msra.mxu0 %v3215
        %4245 = vmatprep.subr.bf16.mxu0 %v3218
        %4246 = vmatpush1.bf16.msra.mxu0 %v3217
        %4247 = vmatprep.subr.bf16.mxu0 %v3220
        %4248 = vmatpush1.bf16.msra.mxu0 %v3219
        %4249 = vmatprep.subr.bf16.mxu0 %v3222
        %4250 = vmatpush1.bf16.msra.mxu0 %v3221
        %4251 = vmatprep.subr.bf16.mxu0 %v3224
        %4252 = vmatpush1.bf16.msra.mxu0 %v3223
        %4253 = vmatprep.subr.bf16.mxu0 %v3226
        %4254 = vmatpush1.bf16.msra.mxu0 %v3225
        %4255 = vmatprep.subr.bf16.mxu0 %v3228
        %4256 = vmatpush1.bf16.msra.mxu0 %v3227
        %4257 = vmatprep.subr.bf16.mxu0 %v3230
        %4258 = vmatpush1.bf16.msra.mxu0 %v3229
        %4259 = vmatprep.mubr.bf16.mxu0 %v2120
        %4260 = vmatmul.mubr.bf16.gmra.mrb[0].mxu0 %v2119
        %v4261 = vpop.f32.mrb[0].mxu0
        %v4262 = vadd.f32 %v4069, %v4261
        %v4263 = vpop.f32.mrb[0].mxu0
        %v4264 = vadd.f32 %v4071, %v4263
        %v4265 = vpop.f32.mrb[0].mxu0
        %v4266 = vadd.f32 %v4073, %v4265
        %v4267 = vpop.f32.mrb[0].mxu0
        %v4268 = vadd.f32 %v4075, %v4267
        %4269 = vmatprep.mubr.bf16.mxu0 %v2132
        %4270 = vmatmul.mubr.bf16.gmra.mrb[0].mxu0 %v2131
        %v4271 = vpop.f32.mrb[0].mxu0
        %v4272 = vadd.f32 %v4079, %v4271
        %v4273 = vpop.f32.mrb[0].mxu0
        %v4274 = vadd.f32 %v4081, %v4273
        %v4275 = vpop.f32.mrb[0].mxu0
        %v4276 = vadd.f32 %v4083, %v4275
        %v4277 = vpop.f32.mrb[0].mxu0
        %v4278 = vadd.f32 %v4085, %v4277
        %4279 = vmatprep.mubr.bf16.mxu0 %v2144
        %4280 = vmatmul.mubr.bf16.gmra.mrb[0].mxu0 %v2143
        %v4281 = vpop.f32.mrb[0].mxu0
        %v4282 = vadd.f32 %v4089, %v4281
        %v4283 = vpop.f32.mrb[0].mxu0
        %v4284 = vadd.f32 %v4091, %v4283
        %v4285 = vpop.f32.mrb[0].mxu0
        %v4286 = vadd.f32 %v4093, %v4285
        %v4287 = vpop.f32.mrb[0].mxu0
        %v4288 = vadd.f32 %v4095, %v4287
        %4289 = vmatprep.mubr.bf16.mxu0 %v2156
        %4290 = vmatmul.mubr.bf16.gmra.mrb[0].mxu0 %v2155
        %v4291 = vpop.f32.mrb[0].mxu0
        %v4292 = vadd.f32 %v4099, %v4291
        %v4293 = vpop.f32.mrb[0].mxu0
        %v4294 = vadd.f32 %v4101, %v4293
        %v4295 = vpop.f32.mrb[0].mxu0
        %v4296 = vadd.f32 %v4103, %v4295
        %v4297 = vpop.f32.mrb[0].mxu0
        %v4298 = vadd.f32 %v4105, %v4297
        %4299 = vmatprep.mubr.bf16.mxu0 %v2168
        %4300 = vmatmul.mubr.bf16.gmra.mrb[0].mxu0 %v2167
        %v4301 = vpop.f32.mrb[0].mxu0
        %v4302 = vadd.f32 %v4109, %v4301
        %v4303 = vpop.f32.mrb[0].mxu0
        %v4304 = vadd.f32 %v4111, %v4303
        %v4305 = vpop.f32.mrb[0].mxu0
        %v4306 = vadd.f32 %v4113, %v4305
        %v4307 = vpop.f32.mrb[0].mxu0
        %v4308 = vadd.f32 %v4115, %v4307
        %4309 = vmatprep.mubr.bf16.mxu0 %v2180
        %4310 = vmatmul.mubr.bf16.gmra.mrb[0].mxu0 %v2179
        %v4311 = vpop.f32.mrb[0].mxu0
        %v4312 = vadd.f32 %v4119, %v4311
        %v4313 = vpop.f32.mrb[0].mxu0
        %v4314 = vadd.f32 %v4121, %v4313
        %v4315 = vpop.f32.mrb[0].mxu0
        %v4316 = vadd.f32 %v4123, %v4315
        %v4317 = vpop.f32.mrb[0].mxu0
        %v4318 = vadd.f32 %v4125, %v4317
        %4319 = vmatprep.mubr.bf16.mxu0 %v2192
        %4320 = vmatmul.mubr.bf16.gmra.mrb[0].mxu0 %v2191
        %v4321 = vpop.f32.mrb[0].mxu0
        %v4322 = vadd.f32 %v4129, %v4321
        %v4323 = vpop.f32.mrb[0].mxu0
        %v4324 = vadd.f32 %v4131, %v4323
        %v4325 = vpop.f32.mrb[0].mxu0
        %v4326 = vadd.f32 %v4133, %v4325
        %v4327 = vpop.f32.mrb[0].mxu0
        %v4328 = vadd.f32 %v4135, %v4327
        %4329 = vmatprep.mubr.bf16.mxu0 %v2204
        %4330 = vmatmul.mubr.bf16.gmra.mrb[0].mxu0 %v2203
        %v4331 = vpop.f32.mrb[0].mxu0
        %v4332 = vadd.f32 %v4139, %v4331
        %v4333 = vpop.f32.mrb[0].mxu0
        %v4334 = vadd.f32 %v4141, %v4333
        %v4335 = vpop.f32.mrb[0].mxu0
        %v4336 = vadd.f32 %v4143, %v4335
        %v4337 = vpop.f32.mrb[0].mxu0
        %v4338 = vadd.f32 %v4145, %v4337
        %4339 = vmatprep.mubr.bf16.mxu0 %v2216
        %4340 = vmatmul.mubr.bf16.gmra.mrb[0].mxu0 %v2215
        %v4341 = vpop.f32.mrb[0].mxu0
        %v4342 = vadd.f32 %v4149, %v4341
        %v4343 = vpop.f32.mrb[0].mxu0
        %v4344 = vadd.f32 %v4151, %v4343
        %v4345 = vpop.f32.mrb[0].mxu0
        %v4346 = vadd.f32 %v4153, %v4345
        %v4347 = vpop.f32.mrb[0].mxu0
        %v4348 = vadd.f32 %v4155, %v4347
        %4349 = vmatprep.mubr.bf16.mxu0 %v2228
        %4350 = vmatmul.mubr.bf16.gmra.mrb[0].mxu0 %v2227
        %v4351 = vpop.f32.mrb[0].mxu0
        %v4352 = vadd.f32 %v4159, %v4351
        %v4353 = vpop.f32.mrb[0].mxu0
        %v4354 = vadd.f32 %v4161, %v4353
        %v4355 = vpop.f32.mrb[0].mxu0
        %v4356 = vadd.f32 %v4163, %v4355
        %v4357 = vpop.f32.mrb[0].mxu0
        %v4358 = vadd.f32 %v4165, %v4357
        %4359 = vmatprep.mubr.bf16.mxu0 %v2240
        %4360 = vmatmul.mubr.bf16.gmra.mrb[0].mxu0 %v2239
        %v4361 = vpop.f32.mrb[0].mxu0
        %v4362 = vadd.f32 %v4169, %v4361
        %v4363 = vpop.f32.mrb[0].mxu0
        %v4364 = vadd.f32 %v4171, %v4363
        %v4365 = vpop.f32.mrb[0].mxu0
        %v4366 = vadd.f32 %v4173, %v4365
        %v4367 = vpop.f32.mrb[0].mxu0
        %v4368 = vadd.f32 %v4175, %v4367
        %4369 = vmatprep.mubr.bf16.mxu0 %v2252
        %4370 = vmatmul.mubr.bf16.gmra.mrb[0].mxu0 %v2251
        %v4371 = vpop.f32.mrb[0].mxu0
        %v4372 = vadd.f32 %v4179, %v4371
        %v4373 = vpop.f32.mrb[0].mxu0
        %v4374 = vadd.f32 %v4181, %v4373
        %v4375 = vpop.f32.mrb[0].mxu0
        %v4376 = vadd.f32 %v4183, %v4375
        %v4377 = vpop.f32.mrb[0].mxu0
        %v4378 = vadd.f32 %v4185, %v4377
        %4379 = vmatprep.mubr.bf16.mxu0 %v2264
        %4380 = vmatmul.mubr.bf16.gmra.mrb[0].mxu0 %v2263
        %v4381 = vpop.f32.mrb[0].mxu0
        %v4382 = vadd.f32 %v4189, %v4381
        %v4383 = vpop.f32.mrb[0].mxu0
        %v4384 = vadd.f32 %v4191, %v4383
        %v4385 = vpop.f32.mrb[0].mxu0
        %v4386 = vadd.f32 %v4193, %v4385
        %v4387 = vpop.f32.mrb[0].mxu0
        %v4388 = vadd.f32 %v4195, %v4387
        %4389 = vmatprep.mubr.bf16.mxu0 %v2276
        %4390 = vmatmul.mubr.bf16.gmra.mrb[0].mxu0 %v2275
        %v4391 = vpop.f32.mrb[0].mxu0
        %v4392 = vadd.f32 %v4199, %v4391
        %v4393 = vpop.f32.mrb[0].mxu0
        %v4394 = vadd.f32 %v4201, %v4393
        %v4395 = vpop.f32.mrb[0].mxu0
        %v4396 = vadd.f32 %v4203, %v4395
        %v4397 = vpop.f32.mrb[0].mxu0
        %v4398 = vadd.f32 %v4205, %v4397
        %4399 = vmatprep.mubr.bf16.mxu0 %v2288
        %4400 = vmatmul.mubr.bf16.gmra.mrb[0].mxu0 %v2287
        %v4401 = vpop.f32.mrb[0].mxu0
        %v4402 = vadd.f32 %v4209, %v4401
        %v4403 = vpop.f32.mrb[0].mxu0
        %v4404 = vadd.f32 %v4211, %v4403
        %v4405 = vpop.f32.mrb[0].mxu0
        %v4406 = vadd.f32 %v4213, %v4405
        %v4407 = vpop.f32.mrb[0].mxu0
        %v4408 = vadd.f32 %v4215, %v4407
        %4409 = vmatprep.mubr.bf16.mxu0 %v2300
        %4410 = vmatmul.mubr.bf16.gmra.mrb[0].mxu0 %v2299
        %v4411 = vpop.f32.mrb[0].mxu0
        %v4412 = vadd.f32 %v4219, %v4411
        %v4413 = vpop.f32.mrb[0].mxu0
        %v4414 = vadd.f32 %v4221, %v4413
        %v4415 = vpop.f32.mrb[0].mxu0
        %v4416 = vadd.f32 %v4223, %v4415
        %v4417 = vpop.f32.mrb[0].mxu0
        %v4418 = vadd.f32 %v4225, %v4417
        %4419 = vdwg.mxu0
        %4420 = vmatprep.subr.bf16.mxu0 %v3232
        %4421 = vmatpush1.bf16.msra.mxu0 %v3231
        %4422 = vmatprep.subr.bf16.mxu0 %v3234
        %4423 = vmatpush1.bf16.msra.mxu0 %v3233
        %4424 = vmatprep.subr.bf16.mxu0 %v3236
        %4425 = vmatpush1.bf16.msra.mxu0 %v3235
        %4426 = vmatprep.subr.bf16.mxu0 %v3238
        %4427 = vmatpush1.bf16.msra.mxu0 %v3237
        %4428 = vmatprep.subr.bf16.mxu0 %v3240
        %4429 = vmatpush1.bf16.msra.mxu0 %v3239
        %4430 = vmatprep.subr.bf16.mxu0 %v3242
        %4431 = vmatpush1.bf16.msra.mxu0 %v3241
        %4432 = vmatprep.subr.bf16.mxu0 %v3244
        %4433 = vmatpush1.bf16.msra.mxu0 %v3243
        %4434 = vmatprep.subr.bf16.mxu0 %v3246
        %4435 = vmatpush1.bf16.msra.mxu0 %v3245
        %4436 = vmatprep.subr.bf16.mxu0 %v3248
        %4437 = vmatpush1.bf16.msra.mxu0 %v3247
        %4438 = vmatprep.subr.bf16.mxu0 %v3250
        %4439 = vmatpush1.bf16.msra.mxu0 %v3249
        %4440 = vmatprep.subr.bf16.mxu0 %v3252
        %4441 = vmatpush1.bf16.msra.mxu0 %v3251
        %4442 = vmatprep.subr.bf16.mxu0 %v3254
        %4443 = vmatpush1.bf16.msra.mxu0 %v3253
        %4444 = vmatprep.subr.bf16.mxu0 %v3256
        %4445 = vmatpush1.bf16.msra.mxu0 %v3255
        %4446 = vmatprep.subr.bf16.mxu0 %v3258
        %4447 = vmatpush1.bf16.msra.mxu0 %v3257
        %4448 = vmatprep.subr.bf16.mxu0 %v3260
        %4449 = vmatpush1.bf16.msra.mxu0 %v3259
        %4450 = vmatprep.subr.bf16.mxu0 %v3262
        %4451 = vmatpush1.bf16.msra.mxu0 %v3261
        %4452 = vmatprep.mubr.bf16.mxu0 %v2122
        %4453 = vmatmul.mubr.bf16.gmra.mrb[0].mxu0 %v2121
        %v4454 = vpop.f32.mrb[0].mxu0
        %v4455 = vadd.f32 %v4262, %v4454
        %v4456 = vpop.f32.mrb[0].mxu0
        %v4457 = vadd.f32 %v4264, %v4456
        %v4458 = vpop.f32.mrb[0].mxu0
        %v4459 = vadd.f32 %v4266, %v4458
        %v4460 = vpop.f32.mrb[0].mxu0
        %v4461 = vadd.f32 %v4268, %v4460
        %4462 = vmatprep.mubr.bf16.mxu0 %v2134
        %4463 = vmatmul.mubr.bf16.gmra.mrb[0].mxu0 %v2133
        %v4464 = vpop.f32.mrb[0].mxu0
        %v4465 = vadd.f32 %v4272, %v4464
        %v4466 = vpop.f32.mrb[0].mxu0
        %v4467 = vadd.f32 %v4274, %v4466
        %v4468 = vpop.f32.mrb[0].mxu0
        %v4469 = vadd.f32 %v4276, %v4468
        %v4470 = vpop.f32.mrb[0].mxu0
        %v4471 = vadd.f32 %v4278, %v4470
        %4472 = vmatprep.mubr.bf16.mxu0 %v2146
        %4473 = vmatmul.mubr.bf16.gmra.mrb[0].mxu0 %v2145
        %v4474 = vpop.f32.mrb[0].mxu0
        %v4475 = vadd.f32 %v4282, %v4474
        %v4476 = vpop.f32.mrb[0].mxu0
        %v4477 = vadd.f32 %v4284, %v4476
        %v4478 = vpop.f32.mrb[0].mxu0
        %v4479 = vadd.f32 %v4286, %v4478
        %v4480 = vpop.f32.mrb[0].mxu0
        %v4481 = vadd.f32 %v4288, %v4480
        %4482 = vmatprep.mubr.bf16.mxu0 %v2158
        %4483 = vmatmul.mubr.bf16.gmra.mrb[0].mxu0 %v2157
        %v4484 = vpop.f32.mrb[0].mxu0
        %v4485 = vadd.f32 %v4292, %v4484
        %v4486 = vpop.f32.mrb[0].mxu0
        %v4487 = vadd.f32 %v4294, %v4486
        %v4488 = vpop.f32.mrb[0].mxu0
        %v4489 = vadd.f32 %v4296, %v4488
        %v4490 = vpop.f32.mrb[0].mxu0
        %v4491 = vadd.f32 %v4298, %v4490
        %4492 = vmatprep.mubr.bf16.mxu0 %v2170
        %4493 = vmatmul.mubr.bf16.gmra.mrb[0].mxu0 %v2169
        %v4494 = vpop.f32.mrb[0].mxu0
        %v4495 = vadd.f32 %v4302, %v4494
        %v4496 = vpop.f32.mrb[0].mxu0
        %v4497 = vadd.f32 %v4304, %v4496
        %v4498 = vpop.f32.mrb[0].mxu0
        %v4499 = vadd.f32 %v4306, %v4498
        %v4500 = vpop.f32.mrb[0].mxu0
        %v4501 = vadd.f32 %v4308, %v4500
        %4502 = vmatprep.mubr.bf16.mxu0 %v2182
        %4503 = vmatmul.mubr.bf16.gmra.mrb[0].mxu0 %v2181
        %v4504 = vpop.f32.mrb[0].mxu0
        %v4505 = vadd.f32 %v4312, %v4504
        %v4506 = vpop.f32.mrb[0].mxu0
        %v4507 = vadd.f32 %v4314, %v4506
        %v4508 = vpop.f32.mrb[0].mxu0
        %v4509 = vadd.f32 %v4316, %v4508
        %v4510 = vpop.f32.mrb[0].mxu0
        %v4511 = vadd.f32 %v4318, %v4510
        %4512 = vmatprep.mubr.bf16.mxu0 %v2194
        %4513 = vmatmul.mubr.bf16.gmra.mrb[0].mxu0 %v2193
        %v4514 = vpop.f32.mrb[0].mxu0
        %v4515 = vadd.f32 %v4322, %v4514
        %v4516 = vpop.f32.mrb[0].mxu0
        %v4517 = vadd.f32 %v4324, %v4516
        %v4518 = vpop.f32.mrb[0].mxu0
        %v4519 = vadd.f32 %v4326, %v4518
        %v4520 = vpop.f32.mrb[0].mxu0
        %v4521 = vadd.f32 %v4328, %v4520
        %4522 = vmatprep.mubr.bf16.mxu0 %v2206
        %4523 = vmatmul.mubr.bf16.gmra.mrb[0].mxu0 %v2205
        %v4524 = vpop.f32.mrb[0].mxu0
        %v4525 = vadd.f32 %v4332, %v4524
        %v4526 = vpop.f32.mrb[0].mxu0
        %v4527 = vadd.f32 %v4334, %v4526
        %v4528 = vpop.f32.mrb[0].mxu0
        %v4529 = vadd.f32 %v4336, %v4528
        %v4530 = vpop.f32.mrb[0].mxu0
        %v4531 = vadd.f32 %v4338, %v4530
        %4532 = vmatprep.mubr.bf16.mxu0 %v2218
        %4533 = vmatmul.mubr.bf16.gmra.mrb[0].mxu0 %v2217
        %v4534 = vpop.f32.mrb[0].mxu0
        %v4535 = vadd.f32 %v4342, %v4534
        %v4536 = vpop.f32.mrb[0].mxu0
        %v4537 = vadd.f32 %v4344, %v4536
        %v4538 = vpop.f32.mrb[0].mxu0
        %v4539 = vadd.f32 %v4346, %v4538
        %v4540 = vpop.f32.mrb[0].mxu0
        %v4541 = vadd.f32 %v4348, %v4540
        %4542 = vmatprep.mubr.bf16.mxu0 %v2230
        %4543 = vmatmul.mubr.bf16.gmra.mrb[0].mxu0 %v2229
        %v4544 = vpop.f32.mrb[0].mxu0
        %v4545 = vadd.f32 %v4352, %v4544
        %v4546 = vpop.f32.mrb[0].mxu0
        %v4547 = vadd.f32 %v4354, %v4546
        %v4548 = vpop.f32.mrb[0].mxu0
        %v4549 = vadd.f32 %v4356, %v4548
        %v4550 = vpop.f32.mrb[0].mxu0
        %v4551 = vadd.f32 %v4358, %v4550
        %4552 = vmatprep.mubr.bf16.mxu0 %v2242
        %4553 = vmatmul.mubr.bf16.gmra.mrb[0].mxu0 %v2241
        %v4554 = vpop.f32.mrb[0].mxu0
        %v4555 = vadd.f32 %v4362, %v4554
        %v4556 = vpop.f32.mrb[0].mxu0
        %v4557 = vadd.f32 %v4364, %v4556
        %v4558 = vpop.f32.mrb[0].mxu0
        %v4559 = vadd.f32 %v4366, %v4558
        %v4560 = vpop.f32.mrb[0].mxu0
        %v4561 = vadd.f32 %v4368, %v4560
        %4562 = vmatprep.mubr.bf16.mxu0 %v2254
        %4563 = vmatmul.mubr.bf16.gmra.mrb[0].mxu0 %v2253
        %v4564 = vpop.f32.mrb[0].mxu0
        %v4565 = vadd.f32 %v4372, %v4564
        %v4566 = vpop.f32.mrb[0].mxu0
        %v4567 = vadd.f32 %v4374, %v4566
        %v4568 = vpop.f32.mrb[0].mxu0
        %v4569 = vadd.f32 %v4376, %v4568
        %v4570 = vpop.f32.mrb[0].mxu0
        %v4571 = vadd.f32 %v4378, %v4570
        %4572 = vmatprep.mubr.bf16.mxu0 %v2266
        %4573 = vmatmul.mubr.bf16.gmra.mrb[0].mxu0 %v2265
        %v4574 = vpop.f32.mrb[0].mxu0
        %v4575 = vadd.f32 %v4382, %v4574
        %v4576 = vpop.f32.mrb[0].mxu0
        %v4577 = vadd.f32 %v4384, %v4576
        %v4578 = vpop.f32.mrb[0].mxu0
        %v4579 = vadd.f32 %v4386, %v4578
        %v4580 = vpop.f32.mrb[0].mxu0
        %v4581 = vadd.f32 %v4388, %v4580
        %4582 = vmatprep.mubr.bf16.mxu0 %v2278
        %4583 = vmatmul.mubr.bf16.gmra.mrb[0].mxu0 %v2277
        %v4584 = vpop.f32.mrb[0].mxu0
        %v4585 = vadd.f32 %v4392, %v4584
        %v4586 = vpop.f32.mrb[0].mxu0
        %v4587 = vadd.f32 %v4394, %v4586
        %v4588 = vpop.f32.mrb[0].mxu0
        %v4589 = vadd.f32 %v4396, %v4588
        %v4590 = vpop.f32.mrb[0].mxu0
        %v4591 = vadd.f32 %v4398, %v4590
        %4592 = vmatprep.mubr.bf16.mxu0 %v2290
        %4593 = vmatmul.mubr.bf16.gmra.mrb[0].mxu0 %v2289
        %v4594 = vpop.f32.mrb[0].mxu0
        %v4595 = vadd.f32 %v4402, %v4594
        %v4596 = vpop.f32.mrb[0].mxu0
        %v4597 = vadd.f32 %v4404, %v4596
        %v4598 = vpop.f32.mrb[0].mxu0
        %v4599 = vadd.f32 %v4406, %v4598
        %v4600 = vpop.f32.mrb[0].mxu0
        %v4601 = vadd.f32 %v4408, %v4600
        %4602 = vmatprep.mubr.bf16.mxu0 %v2302
        %4603 = vmatmul.mubr.bf16.gmra.mrb[0].mxu0 %v2301
        %v4604 = vpop.f32.mrb[0].mxu0
        %v4605 = vadd.f32 %v4412, %v4604
        %v4606 = vpop.f32.mrb[0].mxu0
        %v4607 = vadd.f32 %v4414, %v4606
        %v4608 = vpop.f32.mrb[0].mxu0
        %v4609 = vadd.f32 %v4416, %v4608
        %v4610 = vpop.f32.mrb[0].mxu0
        %v4611 = vadd.f32 %v4418, %v4610
        %4612 = vdwg.mxu0
        %v4613 = vadd.f32 %v1279, %v4455
        %v4614 = vadd.f32 %v1280, %v4457
        %v4615 = vadd.f32 %v1281, %v4459
        %v4616 = vadd.f32 %v1282, %v4461
        %v4617 = vadd.f32 %v1283, %v4465
        %v4618 = vadd.f32 %v1284, %v4467
        %v4619 = vadd.f32 %v1285, %v4469
        %v4620 = vadd.f32 %v1286, %v4471
        %v4621 = vadd.f32 %v1287, %v4475
        %v4622 = vadd.f32 %v1288, %v4477
        %v4623 = vadd.f32 %v1289, %v4479
        %v4624 = vadd.f32 %v1290, %v4481
        %v4625 = vadd.f32 %v1291, %v4485
        %v4626 = vadd.f32 %v1292, %v4487
        %v4627 = vadd.f32 %v1293, %v4489
        %v4628 = vadd.f32 %v1294, %v4491
        %v4629 = vadd.f32 %v1295, %v4495
        %v4630 = vadd.f32 %v1296, %v4497
        %v4631 = vadd.f32 %v1297, %v4499
        %v4632 = vadd.f32 %v1298, %v4501
        %v4633 = vadd.f32 %v1299, %v4505
        %v4634 = vadd.f32 %v1300, %v4507
        %v4635 = vadd.f32 %v1301, %v4509
        %v4636 = vadd.f32 %v1302, %v4511
        %v4637 = vadd.f32 %v1303, %v4515
        %v4638 = vadd.f32 %v1304, %v4517
        %v4639 = vadd.f32 %v1305, %v4519
        %v4640 = vadd.f32 %v1306, %v4521
        %v4641 = vadd.f32 %v1307, %v4525
        %v4642 = vadd.f32 %v1308, %v4527
        %v4643 = vadd.f32 %v1309, %v4529
        %v4644 = vadd.f32 %v1310, %v4531
        %v4645 = vadd.f32 %v1311, %v4535
        %v4646 = vadd.f32 %v1312, %v4537
        %v4647 = vadd.f32 %v1313, %v4539
        %v4648 = vadd.f32 %v1314, %v4541
        %v4649 = vadd.f32 %v1315, %v4545
        %v4650 = vadd.f32 %v1316, %v4547
        %v4651 = vadd.f32 %v1317, %v4549
        %v4652 = vadd.f32 %v1318, %v4551
        %v4653 = vadd.f32 %v1319, %v4555
        %v4654 = vadd.f32 %v1320, %v4557
        %v4655 = vadd.f32 %v1321, %v4559
        %v4656 = vadd.f32 %v1322, %v4561
        %v4657 = vadd.f32 %v1323, %v4565
        %v4658 = vadd.f32 %v1324, %v4567
        %v4659 = vadd.f32 %v1325, %v4569
        %v4660 = vadd.f32 %v1326, %v4571
        %v4661 = vadd.f32 %v1327, %v4575
        %v4662 = vadd.f32 %v1328, %v4577
        %v4663 = vadd.f32 %v1329, %v4579
        %v4664 = vadd.f32 %v1330, %v4581
        %v4665 = vadd.f32 %v1331, %v4585
        %v4666 = vadd.f32 %v1332, %v4587
        %v4667 = vadd.f32 %v1333, %v4589
        %v4668 = vadd.f32 %v1334, %v4591
        %v4669 = vadd.f32 %v1335, %v4595
        %v4670 = vadd.f32 %v1336, %v4597
        %v4671 = vadd.f32 %v1337, %v4599
        %v4672 = vadd.f32 %v1338, %v4601
        %v4673 = vadd.f32 %v1339, %v4605
        %v4674 = vadd.f32 %v1340, %v4607
        %v4675 = vadd.f32 %v1341, %v4609
        %v4676 = vadd.f32 %v1342, %v4611
        %4677 = vst [vmem:[%s993] sm:$0xff] %v4613
        %4678 = vst [vmem:[%s993 + $0x8] sm:$0xff] %v4614
        %4679 = vst [vmem:[%s993 + $0x10] sm:$0xff] %v4615
        %4680 = vst [vmem:[%s993 + $0x18] sm:$0xff] %v4616
        %4681 = vst [vmem:[%s993 + $0x20] sm:$0xff] %v4617
        %4682 = vst [vmem:[%s993 + $0x28] sm:$0xff] %v4618
        %4683 = vst [vmem:[%s993 + $0x30] sm:$0xff] %v4619
        %4684 = vst [vmem:[%s993 + $0x38] sm:$0xff] %v4620
        %4685 = vst [vmem:[%s993 + $0x40] sm:$0xff] %v4621
        %4686 = vst [vmem:[%s993 + $0x48] sm:$0xff] %v4622
        %4687 = vst [vmem:[%s993 + $0x50] sm:$0xff] %v4623
        %4688 = vst [vmem:[%s993 + $0x58] sm:$0xff] %v4624
        %4689 = vst [vmem:[%s993 + $0x60] sm:$0xff] %v4625
        %4690 = vst [vmem:[%s993 + $0x68] sm:$0xff] %v4626
        %4691 = vst [vmem:[%s993 + $0x70] sm:$0xff] %v4627
        %4692 = vst [vmem:[%s993 + $0x78] sm:$0xff] %v4628
        %4693 = vst [vmem:[%s993 + $0x80] sm:$0xff] %v4629
        %4694 = vst [vmem:[%s993 + $0x88] sm:$0xff] %v4630
        %4695 = vst [vmem:[%s993 + $0x90] sm:$0xff] %v4631
        %4696 = vst [vmem:[%s993 + $0x98] sm:$0xff] %v4632
        %4697 = vst [vmem:[%s993 + $0xa0] sm:$0xff] %v4633
        %4698 = vst [vmem:[%s993 + $0xa8] sm:$0xff] %v4634
        %4699 = vst [vmem:[%s993 + $0xb0] sm:$0xff] %v4635
        %4700 = vst [vmem:[%s993 + $0xb8] sm:$0xff] %v4636
        %4701 = vst [vmem:[%s993 + $0xc0] sm:$0xff] %v4637
        %4702 = vst [vmem:[%s993 + $0xc8] sm:$0xff] %v4638
        %4703 = vst [vmem:[%s993 + $0xd0] sm:$0xff] %v4639
        %4704 = vst [vmem:[%s993 + $0xd8] sm:$0xff] %v4640
        %4705 = vst [vmem:[%s993 + $0xe0] sm:$0xff] %v4641
        %4706 = vst [vmem:[%s993 + $0xe8] sm:$0xff] %v4642
        %4707 = vst [vmem:[%s993 + $0xf0] sm:$0xff] %v4643
        %4708 = vst [vmem:[%s993 + $0xf8] sm:$0xff] %v4644
        %4709 = vst [vmem:[%s993 + $0x100] sm:$0xff] %v4645
        %4710 = vst [vmem:[%s993 + $0x108] sm:$0xff] %v4646
        %4711 = vst [vmem:[%s993 + $0x110] sm:$0xff] %v4647
        %4712 = vst [vmem:[%s993 + $0x118] sm:$0xff] %v4648
        %4713 = vst [vmem:[%s993 + $0x120] sm:$0xff] %v4649
        %4714 = vst [vmem:[%s993 + $0x128] sm:$0xff] %v4650
        %4715 = vst [vmem:[%s993 + $0x130] sm:$0xff] %v4651
        %4716 = vst [vmem:[%s993 + $0x138] sm:$0xff] %v4652
        %4717 = vst [vmem:[%s993 + $0x140] sm:$0xff] %v4653
        %4718 = vst [vmem:[%s993 + $0x148] sm:$0xff] %v4654
        %4719 = vst [vmem:[%s993 + $0x150] sm:$0xff] %v4655
        %4720 = vst [vmem:[%s993 + $0x158] sm:$0xff] %v4656
        %4721 = vst [vmem:[%s993 + $0x160] sm:$0xff] %v4657
        %4722 = vst [vmem:[%s993 + $0x168] sm:$0xff] %v4658
        %4723 = vst [vmem:[%s993 + $0x170] sm:$0xff] %v4659
        %4724 = vst [vmem:[%s993 + $0x178] sm:$0xff] %v4660
        %4725 = vst [vmem:[%s993 + $0x180] sm:$0xff] %v4661
        %4726 = vst [vmem:[%s993 + $0x188] sm:$0xff] %v4662
        %4727 = vst [vmem:[%s993 + $0x190] sm:$0xff] %v4663
        %4728 = vst [vmem:[%s993 + $0x198] sm:$0xff] %v4664
        %4729 = vst [vmem:[%s993 + $0x1a0] sm:$0xff] %v4665
        %4730 = vst [vmem:[%s993 + $0x1a8] sm:$0xff] %v4666
        %4731 = vst [vmem:[%s993 + $0x1b0] sm:$0xff] %v4667
        %4732 = vst [vmem:[%s993 + $0x1b8] sm:$0xff] %v4668
        %4733 = vst [vmem:[%s993 + $0x1c0] sm:$0xff] %v4669
        %4734 = vst [vmem:[%s993 + $0x1c8] sm:$0xff] %v4670
        %4735 = vst [vmem:[%s993 + $0x1d0] sm:$0xff] %v4671
        %4736 = vst [vmem:[%s993 + $0x1d8] sm:$0xff] %v4672
        %4737 = vst [vmem:[%s993 + $0x1e0] sm:$0xff] %v4673
        %4738 = vst [vmem:[%s993 + $0x1e8] sm:$0xff] %v4674
        %4739 = vst [vmem:[%s993 + $0x1f0] sm:$0xff] %v4675
        %4740 = vst [vmem:[%s993 + $0x1f8] sm:$0xff] %v4676
        %s4741 = sand.u32 %s109, 1
        %s4742 = sand.u32 %s109, 1
        %s4743 = smul.addr %s4742, 512
        %s4744 = scalar_lea.vmem [#allocation3], %s4743
        // Predicated region
        $region75: #{relu_conv2d.1} parent=65 // pred_check
          %p4745 = pneg %p119
        $region76: #{relu_conv2d.1} parent=65 // pred_check_branch
          %4747 = sbr.rel (%p4745) target = $region78
        $region77: #{relu_conv2d.1} parent=65 // pred_region
          %s4748 = smul.u32 2, %s18
          %s4749 = smul.addr %s4748, 8
          %s4750 = scalar_lea.vmem %s3, %s4749
          // Predicated region
          $region79: #{relu_conv2d.1} parent=77 // pred_check
            _
          $region80: #{relu_conv2d.1} parent=77 // pred_check_branch
            %4752 = sbr.rel (0) target = $region82
          $region81: #{relu_conv2d.1} parent=77 // pred_region
            // Predicated region
            $region83: #{relu_conv2d.1} parent=81 // pred_check
              _
            $region84: #{relu_conv2d.1} parent=81 // pred_check_branch
              %4754 = sbr.rel (0) target = $region86
            $region85: #{relu_conv2d.1} parent=81 // pred_region
              loop: start=0, step=1, limit=1
              $region87: #{relu_conv2d.1} parent=85 // loop_pre_header
                _
              $region88: #{relu_conv2d.1} parent=85 // loop_header
                %s4756 = sphi 0, %s4760
                %p4757 = scmp.ge.s32.totalorder %s4756, 1
                %s4761 = sphi %s4744, %s4744
                %s4762 = sphi %s4750, %s4750
              $region89: #{relu_conv2d.1} parent=85 // loop_header_branch
                %4759 = sbr.rel (%p4757) target = $region93
              $region90: #{relu_conv2d.1} parent=85 // loop_body
                %v4763 = vld [vmem:[%s4761] sm:$0xff]
                %4764 = vst [vmem:[%s4762] sm:$0xff] %v4763
                %v4765 = vld [vmem:[%s4761 + $0x8] sm:$0xff]
                %4766 = vst [vmem:[%s4762 + $0x8] sm:$0xff] %v4765
                %v4767 = vld [vmem:[%s4761 + $0x10] sm:$0xff]
                %4768 = vst [vmem:[%s4762 + $0x20] sm:$0xff] %v4767
                %v4769 = vld [vmem:[%s4761 + $0x18] sm:$0xff]
                %4770 = vst [vmem:[%s4762 + $0x28] sm:$0xff] %v4769
                %v4771 = vld [vmem:[%s4761 + $0x20] sm:$0xff]
                %4772 = vst [vmem:[%s4762 + $0x40] sm:$0xff] %v4771
                %v4773 = vld [vmem:[%s4761 + $0x28] sm:$0xff]
                %4774 = vst [vmem:[%s4762 + $0x48] sm:$0xff] %v4773
                %v4775 = vld [vmem:[%s4761 + $0x30] sm:$0xff]
                %4776 = vst [vmem:[%s4762 + $0x60] sm:$0xff] %v4775
                %v4777 = vld [vmem:[%s4761 + $0x38] sm:$0xff]
                %4778 = vst [vmem:[%s4762 + $0x68] sm:$0xff] %v4777
                %v4779 = vld [vmem:[%s4761 + $0x40] sm:$0xff]
                %4780 = vst [vmem:[%s4762 + $0x80] sm:$0xff] %v4779
                %v4781 = vld [vmem:[%s4761 + $0x48] sm:$0xff]
                %4782 = vst [vmem:[%s4762 + $0x88] sm:$0xff] %v4781
                %v4783 = vld [vmem:[%s4761 + $0x50] sm:$0xff]
                %4784 = vst [vmem:[%s4762 + $0xa0] sm:$0xff] %v4783
                %v4785 = vld [vmem:[%s4761 + $0x58] sm:$0xff]
                %4786 = vst [vmem:[%s4762 + $0xa8] sm:$0xff] %v4785
                %v4787 = vld [vmem:[%s4761 + $0x60] sm:$0xff]
                %4788 = vst [vmem:[%s4762 + $0xc0] sm:$0xff] %v4787
                %v4789 = vld [vmem:[%s4761 + $0x68] sm:$0xff]
                %4790 = vst [vmem:[%s4762 + $0xc8] sm:$0xff] %v4789
                %v4791 = vld [vmem:[%s4761 + $0x70] sm:$0xff]
                %4792 = vst [vmem:[%s4762 + $0xe0] sm:$0xff] %v4791
                %v4793 = vld [vmem:[%s4761 + $0x78] sm:$0xff]
                %4794 = vst [vmem:[%s4762 + $0xe8] sm:$0xff] %v4793
                %v4795 = vld [vmem:[%s4761 + $0x80] sm:$0xff]
                %4796 = vst [vmem:[%s4762 + $0x100] sm:$0xff] %v4795
                %v4797 = vld [vmem:[%s4761 + $0x88] sm:$0xff]
                %4798 = vst [vmem:[%s4762 + $0x108] sm:$0xff] %v4797
                %v4799 = vld [vmem:[%s4761 + $0x90] sm:$0xff]
                %4800 = vst [vmem:[%s4762 + $0x120] sm:$0xff] %v4799
                %v4801 = vld [vmem:[%s4761 + $0x98] sm:$0xff]
                %4802 = vst [vmem:[%s4762 + $0x128] sm:$0xff] %v4801
                %v4803 = vld [vmem:[%s4761 + $0xa0] sm:$0xff]
                %4804 = vst [vmem:[%s4762 + $0x140] sm:$0xff] %v4803
                %v4805 = vld [vmem:[%s4761 + $0xa8] sm:$0xff]
                %4806 = vst [vmem:[%s4762 + $0x148] sm:$0xff] %v4805
                %v4807 = vld [vmem:[%s4761 + $0xb0] sm:$0xff]
                %4808 = vst [vmem:[%s4762 + $0x160] sm:$0xff] %v4807
                %v4809 = vld [vmem:[%s4761 + $0xb8] sm:$0xff]
                %4810 = vst [vmem:[%s4762 + $0x168] sm:$0xff] %v4809
                %v4811 = vld [vmem:[%s4761 + $0xc0] sm:$0xff]
                %4812 = vst [vmem:[%s4762 + $0x180] sm:$0xff] %v4811
                %v4813 = vld [vmem:[%s4761 + $0xc8] sm:$0xff]
                %4814 = vst [vmem:[%s4762 + $0x188] sm:$0xff] %v4813
                %v4815 = vld [vmem:[%s4761 + $0xd0] sm:$0xff]
                %4816 = vst [vmem:[%s4762 + $0x1a0] sm:$0xff] %v4815
                %v4817 = vld [vmem:[%s4761 + $0xd8] sm:$0xff]
                %4818 = vst [vmem:[%s4762 + $0x1a8] sm:$0xff] %v4817
                %v4819 = vld [vmem:[%s4761 + $0xe0] sm:$0xff]
                %4820 = vst [vmem:[%s4762 + $0x1c0] sm:$0xff] %v4819
                %v4821 = vld [vmem:[%s4761 + $0xe8] sm:$0xff]
                %4822 = vst [vmem:[%s4762 + $0x1c8] sm:$0xff] %v4821
                %v4823 = vld [vmem:[%s4761 + $0xf0] sm:$0xff]
                %4824 = vst [vmem:[%s4762 + $0x1e0] sm:$0xff] %v4823
                %v4825 = vld [vmem:[%s4761 + $0xf8] sm:$0xff]
                %4826 = vst [vmem:[%s4762 + $0x1e8] sm:$0xff] %v4825
                %v4827 = vld [vmem:[%s4761 + $0x100] sm:$0xff]
                %4828 = vst [vmem:[%s4762 + $0x200] sm:$0xff] %v4827
                %v4829 = vld [vmem:[%s4761 + $0x108] sm:$0xff]
                %4830 = vst [vmem:[%s4762 + $0x208] sm:$0xff] %v4829
                %v4831 = vld [vmem:[%s4761 + $0x110] sm:$0xff]
                %4832 = vst [vmem:[%s4762 + $0x220] sm:$0xff] %v4831
                %v4833 = vld [vmem:[%s4761 + $0x118] sm:$0xff]
                %4834 = vst [vmem:[%s4762 + $0x228] sm:$0xff] %v4833
                %v4835 = vld [vmem:[%s4761 + $0x120] sm:$0xff]
                %4836 = vst [vmem:[%s4762 + $0x240] sm:$0xff] %v4835
                %v4837 = vld [vmem:[%s4761 + $0x128] sm:$0xff]
                %4838 = vst [vmem:[%s4762 + $0x248] sm:$0xff] %v4837
                %v4839 = vld [vmem:[%s4761 + $0x130] sm:$0xff]
                %4840 = vst [vmem:[%s4762 + $0x260] sm:$0xff] %v4839
                %v4841 = vld [vmem:[%s4761 + $0x138] sm:$0xff]
                %4842 = vst [vmem:[%s4762 + $0x268] sm:$0xff] %v4841
                %v4843 = vld [vmem:[%s4761 + $0x140] sm:$0xff]
                %4844 = vst [vmem:[%s4762 + $0x280] sm:$0xff] %v4843
                %v4845 = vld [vmem:[%s4761 + $0x148] sm:$0xff]
                %4846 = vst [vmem:[%s4762 + $0x288] sm:$0xff] %v4845
                %v4847 = vld [vmem:[%s4761 + $0x150] sm:$0xff]
                %4848 = vst [vmem:[%s4762 + $0x2a0] sm:$0xff] %v4847
                %v4849 = vld [vmem:[%s4761 + $0x158] sm:$0xff]
                %4850 = vst [vmem:[%s4762 + $0x2a8] sm:$0xff] %v4849
                %v4851 = vld [vmem:[%s4761 + $0x160] sm:$0xff]
                %4852 = vst [vmem:[%s4762 + $0x2c0] sm:$0xff] %v4851
                %v4853 = vld [vmem:[%s4761 + $0x168] sm:$0xff]
                %4854 = vst [vmem:[%s4762 + $0x2c8] sm:$0xff] %v4853
                %v4855 = vld [vmem:[%s4761 + $0x170] sm:$0xff]
                %4856 = vst [vmem:[%s4762 + $0x2e0] sm:$0xff] %v4855
                %v4857 = vld [vmem:[%s4761 + $0x178] sm:$0xff]
                %4858 = vst [vmem:[%s4762 + $0x2e8] sm:$0xff] %v4857
                %v4859 = vld [vmem:[%s4761 + $0x180] sm:$0xff]
                %4860 = vst [vmem:[%s4762 + $0x300] sm:$0xff] %v4859
                %v4861 = vld [vmem:[%s4761 + $0x188] sm:$0xff]
                %4862 = vst [vmem:[%s4762 + $0x308] sm:$0xff] %v4861
                %v4863 = vld [vmem:[%s4761 + $0x190] sm:$0xff]
                %4864 = vst [vmem:[%s4762 + $0x320] sm:$0xff] %v4863
                %v4865 = vld [vmem:[%s4761 + $0x198] sm:$0xff]
                %4866 = vst [vmem:[%s4762 + $0x328] sm:$0xff] %v4865
                %v4867 = vld [vmem:[%s4761 + $0x1a0] sm:$0xff]
                %4868 = vst [vmem:[%s4762 + $0x340] sm:$0xff] %v4867
                %v4869 = vld [vmem:[%s4761 + $0x1a8] sm:$0xff]
                %4870 = vst [vmem:[%s4762 + $0x348] sm:$0xff] %v4869
                %v4871 = vld [vmem:[%s4761 + $0x1b0] sm:$0xff]
                %4872 = vst [vmem:[%s4762 + $0x360] sm:$0xff] %v4871
                %v4873 = vld [vmem:[%s4761 + $0x1b8] sm:$0xff]
                %4874 = vst [vmem:[%s4762 + $0x368] sm:$0xff] %v4873
                %v4875 = vld [vmem:[%s4761 + $0x1c0] sm:$0xff]
                %4876 = vst [vmem:[%s4762 + $0x380] sm:$0xff] %v4875
                %v4877 = vld [vmem:[%s4761 + $0x1c8] sm:$0xff]
                %4878 = vst [vmem:[%s4762 + $0x388] sm:$0xff] %v4877
                %v4879 = vld [vmem:[%s4761 + $0x1d0] sm:$0xff]
                %4880 = vst [vmem:[%s4762 + $0x3a0] sm:$0xff] %v4879
                %v4881 = vld [vmem:[%s4761 + $0x1d8] sm:$0xff]
                %4882 = vst [vmem:[%s4762 + $0x3a8] sm:$0xff] %v4881
                %v4883 = vld [vmem:[%s4761 + $0x1e0] sm:$0xff]
                %4884 = vst [vmem:[%s4762 + $0x3c0] sm:$0xff] %v4883
                %v4885 = vld [vmem:[%s4761 + $0x1e8] sm:$0xff]
                %4886 = vst [vmem:[%s4762 + $0x3c8] sm:$0xff] %v4885
                %v4887 = vld [vmem:[%s4761 + $0x1f0] sm:$0xff]
                %4888 = vst [vmem:[%s4762 + $0x3e0] sm:$0xff] %v4887
                %v4889 = vld [vmem:[%s4761 + $0x1f8] sm:$0xff]
                %4890 = vst [vmem:[%s4762 + $0x3e8] sm:$0xff] %v4889
              $region91: #{relu_conv2d.1} parent=85 // loop_footer
                %s4760 = sadd.s32 1, %s4756
              $region92: #{relu_conv2d.1} parent=85 // loop_footer_branch
                %4755 = sbr.rel target = $region88
              $region93: #{relu_conv2d.1} parent=85 // loop_exit
                _
            $region86: #{relu_conv2d.1} parent=81 // pred_fallthru
              _
            // Predicated region
            $region94: #{relu_conv2d.1} parent=81 // pred_check
              _
            $region95: #{relu_conv2d.1} parent=81 // pred_check_branch
              %4892 = sbr.rel target = $region97
            $region96: #{relu_conv2d.1} parent=81 // pred_region
              _
            $region97: #{relu_conv2d.1} parent=81 // pred_fallthru
              _
          $region82: #{relu_conv2d.1} parent=77 // pred_fallthru
            _
          %4893 = vnop
        $region78: #{relu_conv2d.1} parent=65 // pred_fallthru
          _
      $region66: #{relu_conv2d.1} parent=5 // pred_fallthru
        _
      %p4894 = scmp.le.s32.totalorder 2, %s9
      // Predicated region
      $region98: #{relu_conv2d.1} parent=5 // pred_check
        %p4895 = pneg %p4894
      $region99: #{relu_conv2d.1} parent=5 // pred_check_branch
        %4897 = sbr.rel (%p4895) target = $region101
      $region100: #{relu_conv2d.1} parent=5 // pred_region
        %s4898 = ssub.s32 %s9, 2
        // Predicated region
        $region102: #{relu_conv2d.1} parent=100 // pred_check
          %p4899 = pneg %p125
        $region103: #{relu_conv2d.1} parent=100 // pred_check_branch
          %4901 = sbr.rel (%p4899) target = $region105
        $region104: #{relu_conv2d.1} parent=100 // pred_region
          %s4902 = sand.u32 %s110, 1
          %s4903 = sand.u32 %s110, 1
          %s4904 = smul.addr %s4903, 512
          %s4905 = scalar_lea.vmem [#allocation3], %s4904
        $region105: #{relu_conv2d.1} parent=100 // pred_fallthru
          _
      $region101: #{relu_conv2d.1} parent=5 // pred_fallthru
        _
    $region6: #{relu_conv2d.1} parent=1 // loop_footer
      %s13 = sadd.s32 1, %s9
    $region7: #{relu_conv2d.1} parent=1 // loop_footer_branch
      %8 = sbr.rel target = $region3
    $region8: #{relu_conv2d.1} parent=1 // loop_exit
      _

</llo_original>
